<compile_context>
chip_gen: v5e
topology: v5e:2x2
jax: 0.10.0
libtpu: 0.0.40
codegen_flags: <defaults>
</compile_context>

<pallas_src>
import jax
import jax.numpy as jnp
from jax.experimental import pallas as pl
from jax.experimental.pallas import tpu as pltpu

# ---------------- model config (small shapes consistent with ViT.__init__) ---
N = 2                          # batch
C, H_IMG, W_IMG = 4, 16, 16    # chw
NUM_PATCHES = 4                # patches per side -> 16 patches
PATCH = H_IMG // NUM_PATCHES   # 4
INPUT_D = C * PATCH * PATCH    # 64
HIDDEN = 32                    # hidden_dim
NUM_BLOCKS = 2                 # num_blocks (kept small)
OUT_D = 10
OUT_PAD = 128                  # lane-dense padded head output
STATE_PAD = 128                # lane-dense padded states output
SEQ = NUM_PATCHES ** 2 + 1     # 17 (class token + patches)
FFN = 64                       # dim_feedforward of the encoder layer (small)
SCALING = 0.2                  # Hopfield beta
UPDATE_STEPS = 5               # update_steps_max
LN_EPS = 1e-5
NEG = -1e30                    # padded-logit bias value


# ------------------------------ JAX glue --------------------------------------
def patchify(images, num_patches):
    """Matches torch patchify(): patch flattening order is (C, ph, pw)."""
    n, c, h, w = images.shape
    ps = h // num_patches
    x = images.reshape(n, c, num_patches, ps, num_patches, ps)
    x = x.transpose(0, 2, 4, 1, 3, 5)          # n, pi, pj, c, ph, pw
    return x.reshape(n, num_patches * num_patches, c * ps * ps)


def get_positional_embeddings(seq_len, dim):
    i = jnp.arange(seq_len, dtype=jnp.float32)[:, None]
    j = jnp.arange(dim, dtype=jnp.float32)[None, :]
    angle_even = i / jnp.power(10000.0, j / dim)
    angle_odd = i / jnp.power(10000.0, (j - 1.0) / dim)
    return jnp.where((jnp.arange(dim) % 2 == 0)[None, :],
                     jnp.sin(angle_even), jnp.cos(angle_odd)).astype(jnp.float32)


# ------------------------------ in-kernel helpers ------------------------------
def _dot_t(a, b):
    # a @ b.T via dot_general contracting the last dims (MXU trans_b path,
    # avoids materialising a transpose on the XLU).
    return jax.lax.dot_general(a, b, (((1,), (1,)), ((), ())),
                               preferred_element_type=jnp.float32)


def _masked_softmax(z, mask01):
    # Multiplicative 0/1 mask applied AFTER exp: keeps the mask off the
    # pre-max critical path.  Row max over the full row is >= the in-block
    # max, so exp stays bounded; exact division for numerical parity.
    m = jnp.max(z, axis=-1, keepdims=True)
    e = jnp.exp(z - m) * mask01
    return e / jnp.sum(e, axis=-1, keepdims=True)


def _layernorm(x, gamma, beta):
    mu = jnp.mean(x, axis=-1, keepdims=True)
    xc = x - mu
    var = jnp.mean(xc * xc, axis=-1, keepdims=True)
    return xc * jax.lax.rsqrt(var + LN_EPS) * gamma + beta


# ------------------------------ the fused kernel -------------------------------
def vit_kernel(flat_ref, wmap_ref, combo_ref, mask_ref, sel_ref,
               a3_ref, w1_ref, w2_ref, vec_ref, wh_ref, bh_ref,
               states_ref, probs_ref):
    f32 = jnp.float32

    # Embedding: class-token rows of `flat` are zero, and `combo` already
    # carries pos_emb + class_token (cls rows) + linear-mapper bias (patch
    # rows), so one matmul + one add builds the full embedded sequence.
    x = jnp.dot(flat_ref[...], wmap_ref[...], preferred_element_type=f32) \
        + combo_ref[...]                                    # (TOK, HIDDEN)

    mask01 = mask_ref[...]                                  # (TOK, TOK) block-diag 1 / 0

    for blk in range(NUM_BLOCKS):                           # unrolled (guardrail)
        a3 = a3_ref[blk]                                    # (HIDDEN, 3H) [A_qk|A_kk|W_vo]
        w1 = w1_ref[blk]                                    # (HIDDEN, FFN)
        w2 = w2_ref[blk]                                    # (FFN, HIDDEN)
        vec = vec_ref[blk]                                  # (7, FFN) packed small vectors
        bo = vec[0:1, 0:HIDDEN]
        g1 = vec[1:2, 0:HIDDEN]
        be1 = vec[2:3, 0:HIDDEN]
        b1 = vec[3:4, :]
        b2 = vec[4:5, 0:HIDDEN]
        g2 = vec[5:6, 0:HIDDEN]
        be2 = vec[6:7, 0:HIDDEN]

        # One lane-dense 96-wide push replaces the q/k/v projections.
        xg = jnp.dot(x, a3, preferred_element_type=f32)     # (TOK, 3H)
        xq = xg[:, 0:HIDDEN]                                # x @ (beta wq wk^T)
        xk = xg[:, HIDDEN:2 * HIDDEN]                       # x @ (beta wk wk^T)
        xv = xg[:, 2 * HIDDEN:3 * HIDDEN]                   # x @ (wv wo)

        # Hopfield association.  s0 = beta Q K^T, G = beta K K^T, both folded
        # through the precomputed Gram weights; block-diagonal 0/1 mask keeps
        # the two images independent.
        s0 = _dot_t(xq, x)                                  # (TOK, TOK)
        g_mat = _dot_t(xk, x)                               # (TOK, TOK)
        attn = _masked_softmax(s0, mask01)
        for _ in range(UPDATE_STEPS):                       # unrolled (guardrail)
            attn = _masked_softmax(
                jnp.dot(attn, g_mat, preferred_element_type=f32), mask01)

        # assoc = (A V) Wo == A (x Wv Wo) == attn @ xv : single post-loop push.
        assoc = jnp.dot(attn, xv, preferred_element_type=f32) + bo

        # residual + LayerNorm, FFN (Linear-ReLU-Linear), residual + LayerNorm
        x1 = _layernorm(x + assoc, g1, be1)
        h = jnp.maximum(jnp.dot(x1, w1, preferred_element_type=f32) + b1, 0.0)
        ff = jnp.dot(h, w2, preferred_element_type=f32) + b2
        x = _layernorm(x1 + ff, g2, be2)

    # Lane-dense (TOK, 128) states store: pad with zeros, wrapper slices HIDDEN.
    states_ref[...] = jnp.concatenate(
        [x, jnp.zeros((x.shape[0], STATE_PAD - HIDDEN), f32)], axis=-1)

    # Classification head on the class-token rows.  The rows are extracted by
    # a tiny selector matmul (no unaligned sublane slicing); logits are padded
    # to OUT_PAD lanes (padded bias = -1e30 -> probability exactly 0) so the
    # output store is lane-dense.  Exact division keeps row sums == 1.
    cls = jnp.dot(sel_ref[...], x, preferred_element_type=f32)        # (N, HIDDEN)
    z = jnp.dot(cls, wh_ref[...], preferred_element_type=f32) + bh_ref[...]
    m = jnp.max(z, axis=-1, keepdims=True)
    e = jnp.exp(z - m)
    probs_ref[...] = e / jnp.sum(e, axis=-1, keepdims=True)


# ------------------------------ wrappers ---------------------------------------
_VMEM = pl.BlockSpec(memory_space=pltpu.MemorySpace.VMEM)


def vit_forward(images, packed):
    n = images.shape[0]
    tok = n * SEQ

    patches = patchify(images, NUM_PATCHES)                 # (n, P^2, INPUT_D)
    # prepend a zero row per image for the class token slot
    flat = jnp.pad(patches, ((0, 0), (1, 0), (0, 0))).reshape(tok, INPUT_D)

    states_pad, probs_pad = pl.pallas_call(
        vit_kernel,
        out_shape=(jax.ShapeDtypeStruct((tok, STATE_PAD), jnp.float32),
                   jax.ShapeDtypeStruct((n, OUT_PAD), jnp.float32)),
        in_specs=[_VMEM] * 11,
        out_specs=(_VMEM, _VMEM),
    )(flat, packed["w_map"], packed["combo"], packed["mask01"], packed["sel"],
      packed["a3"], packed["w1"], packed["w2"], packed["vec"],
      packed["wh_pad"], packed["bh_pad"])

    states = states_pad[:, :HIDDEN].reshape(n, SEQ, HIDDEN)
    probs = probs_pad[:, :OUT_D]
    hopfield_states = [states]                              # (.detach().cpu() -> no-op)
    cls_out = states[:, 0]
    return probs, hopfield_states, cls_out


# ------------------------------ deterministic params ---------------------------
def init_params(key):
    ks = iter(jax.random.split(key, 64))

    def w(shape, scale=0.02):
        return (scale * jax.random.normal(next(ks), shape)).astype(jnp.float32)

    params = {
        "w_map": w((INPUT_D, HIDDEN)),
        "b_map": jnp.zeros((1, HIDDEN), jnp.float32),
        "class_token": jax.random.uniform(next(ks), (1, HIDDEN), jnp.float32),
        "pos_emb": get_positional_embeddings(SEQ, HIDDEN),
        "w_mlp": w((HIDDEN, OUT_D)),
        "b_mlp": jnp.zeros((1, OUT_D), jnp.float32),
        "blocks": [],
    }
    for _ in range(NUM_BLOCKS):
        params["blocks"].append({
            "wq": w((HIDDEN, HIDDEN)), "wk": w((HIDDEN, HIDDEN)),
            "wv": w((HIDDEN, HIDDEN)), "wo": w((HIDDEN, HIDDEN)),
            "bo": jnp.zeros((1, HIDDEN), jnp.float32),
            "g1": jnp.ones((1, HIDDEN), jnp.float32),
            "be1": jnp.zeros((1, HIDDEN), jnp.float32),
            "w1": w((HIDDEN, FFN)), "b1": jnp.zeros((1, FFN), jnp.float32),
            "w2": w((FFN, HIDDEN)), "b2": jnp.zeros((1, HIDDEN), jnp.float32),
            "g2": jnp.ones((1, HIDDEN), jnp.float32),
            "be2": jnp.zeros((1, HIDDEN), jnp.float32),
        })
    return params


def pack_params(params, n):
    """One-time repack of the torch-like params into kernel-ready arrays."""
    tok = n * SEQ
    cls_ind = (jnp.arange(tok) % SEQ == 0).astype(jnp.float32)[:, None]   # (TOK, 1)
    pos_all = jnp.tile(params["pos_emb"], (n, 1))                          # (TOK, H)
    # pos_emb everywhere, class token on cls rows, mapper bias on patch rows
    combo = pos_all + cls_ind * params["class_token"] \
        + (1.0 - cls_ind) * params["b_map"]

    bid = jnp.arange(tok) // SEQ
    mask01 = (bid[:, None] == bid[None, :]).astype(jnp.float32)            # (TOK, TOK)
    sel = (jnp.arange(tok)[None, :] ==
           (jnp.arange(n) * SEQ)[:, None]).astype(jnp.float32)             # (n, TOK)

    def pad_h(vrow):
        return jnp.pad(vrow, ((0, 0), (0, FFN - vrow.shape[1])))

    a3, w1, w2, vec = [], [], [], []
    for blk in params["blocks"]:
        a_qk = SCALING * blk["wq"] @ blk["wk"].T            # beta * Wq Wk^T
        a_kk = SCALING * blk["wk"] @ blk["wk"].T            # beta * Wk Wk^T
        w_vo = blk["wv"] @ blk["wo"]                        # Wv Wo
        a3.append(jnp.concatenate([a_qk, a_kk, w_vo], axis=1))   # (H, 3H)
        w1.append(blk["w1"])
        w2.append(blk["w2"])
        vec.append(jnp.concatenate(
            [pad_h(blk["bo"]), pad_h(blk["g1"]), pad_h(blk["be1"]), blk["b1"],
             pad_h(blk["b2"]), pad_h(blk["g2"]), pad_h(blk["be2"])], axis=0))

    wh_pad = jnp.pad(params["w_mlp"], ((0, 0), (0, OUT_PAD - OUT_D)))
    bh_pad = jnp.pad(params["b_mlp"], ((0, 0), (0, OUT_PAD - OUT_D)),
                     constant_values=NEG)

    return {
        "w_map": params["w_map"], "combo": combo, "mask01": mask01, "sel": sel,
        "a3": jnp.stack(a3),           # (NB, H, 3H)
        "w1": jnp.stack(w1),           # (NB, H, FFN)
        "w2": jnp.stack(w2),           # (NB, FFN, H)
        "vec": jnp.stack(vec),         # (NB, 7, FFN)
        "wh_pad": wh_pad, "bh_pad": bh_pad,
    }


if __name__ == "__main__":
    key = jax.random.PRNGKey(0)
    k_img, k_par = jax.random.split(key)
    images = jax.random.normal(k_img, (N, C, H_IMG, W_IMG), jnp.float32)  # NCHW
    params = init_params(k_par)
    packed = pack_params(params, N)

    fwd = jax.jit(vit_forward)
    probs, hopfield_states, cls_feat = fwd(images, packed)
    jax.block_until_ready((probs, hopfield_states[0], cls_feat))

    assert probs.shape == (N, OUT_D)
    assert hopfield_states[0].shape == (N, SEQ, HIDDEN)
    assert cls_feat.shape == (N, HIDDEN)
    # softmax rows must sum to 1
    assert bool(jnp.all(jnp.abs(jnp.sum(probs, axis=-1) - 1.0) < 1e-3))
    assert bool(jnp.all(jnp.isfinite(probs)))
    print("KERNEL_OK")
</pallas_src>

<mosaic_0001>
module attributes {stable_mosaic.version = 11 : i64} {
  func.func @vit_kernel(%arg0: memref<34x64xf32, #tpu.memory_space<vmem>>, %arg1: memref<64x32xf32, #tpu.memory_space<vmem>>, %arg2: memref<34x32xf32, #tpu.memory_space<vmem>>, %arg3: memref<34x34xf32, #tpu.memory_space<vmem>>, %arg4: memref<2x34xf32, #tpu.memory_space<vmem>>, %arg5: memref<2x32x96xf32, #tpu.memory_space<vmem>>, %arg6: memref<2x32x64xf32, #tpu.memory_space<vmem>>, %arg7: memref<2x64x32xf32, #tpu.memory_space<vmem>>, %arg8: memref<2x7x64xf32, #tpu.memory_space<vmem>>, %arg9: memref<32x128xf32, #tpu.memory_space<vmem>>, %arg10: memref<1x128xf32, #tpu.memory_space<vmem>>, %arg11: memref<34x128xf32, #tpu.memory_space<vmem>>, %arg12: memref<2x128xf32, #tpu.memory_space<vmem>>) attributes {dimension_semantics = [], scalar_prefetch = 0 : i64, scratch_operands = 0 : i64, tpu.core_type = #tpu.core_type<tc>} {
    %c0 = arith.constant 0 : index
    %c0_0 = arith.constant 0 : index
    %0 = vector.load %arg0[%c0, %c0_0] : memref<34x64xf32, #tpu.memory_space<vmem>>, vector<34x64xf32>
    %c0_1 = arith.constant 0 : index
    %c0_2 = arith.constant 0 : index
    %1 = vector.load %arg1[%c0_1, %c0_2] : memref<64x32xf32, #tpu.memory_space<vmem>>, vector<64x32xf32>
    %cst = arith.constant dense<0.000000e+00> : vector<34x32xf32>
    %2 = tpu.matmul %0, %1, %cst {dimension_numbers = #tpu.dot_dimension_numbers<[1], [0], [0], [1], [0, 0, 1, 1], [], []>} : vector<34x64xf32>, vector<64x32xf32>, vector<34x32xf32> -> vector<34x32xf32>
    %c0_3 = arith.constant 0 : index
    %c0_4 = arith.constant 0 : index
    %3 = vector.load %arg2[%c0_3, %c0_4] : memref<34x32xf32, #tpu.memory_space<vmem>>, vector<34x32xf32>
    %4 = arith.addf %2, %3 : vector<34x32xf32>
    %c0_5 = arith.constant 0 : index
    %c0_6 = arith.constant 0 : index
    %5 = vector.load %arg3[%c0_5, %c0_6] : memref<34x34xf32, #tpu.memory_space<vmem>>, vector<34x34xf32>
    %c0_7 = arith.constant 0 : index
    %c0_8 = arith.constant 0 : index
    %c0_9 = arith.constant 0 : index
    %6 = vector.load %arg5[%c0_7, %c0_8, %c0_9] : memref<2x32x96xf32, #tpu.memory_space<vmem>>, vector<1x32x96xf32>
    %7 = vector.shape_cast %6 : vector<1x32x96xf32> to vector<32x96xf32>
    %c0_10 = arith.constant 0 : index
    %c0_11 = arith.constant 0 : index
    %c0_12 = arith.constant 0 : index
    %8 = vector.load %arg6[%c0_10, %c0_11, %c0_12] : memref<2x32x64xf32, #tpu.memory_space<vmem>>, vector<1x32x64xf32>
    %9 = vector.shape_cast %8 : vector<1x32x64xf32> to vector<32x64xf32>
    %c0_13 = arith.constant 0 : index
    %c0_14 = arith.constant 0 : index
    %c0_15 = arith.constant 0 : index
    %10 = vector.load %arg7[%c0_13, %c0_14, %c0_15] : memref<2x64x32xf32, #tpu.memory_space<vmem>>, vector<1x64x32xf32>
    %11 = vector.shape_cast %10 : vector<1x64x32xf32> to vector<64x32xf32>
    %c0_16 = arith.constant 0 : index
    %c0_17 = arith.constant 0 : index
    %c0_18 = arith.constant 0 : index
    %12 = vector.load %arg8[%c0_16, %c0_17, %c0_18] : memref<2x7x64xf32, #tpu.memory_space<vmem>>, vector<1x7x64xf32>
    %13 = vector.shape_cast %12 : vector<1x7x64xf32> to vector<7x64xf32>
    %14 = vector.extract_strided_slice %13 {offsets = [0, 0], sizes = [1, 32], strides = [1, 1]} : vector<7x64xf32> to vector<1x32xf32>
    %15 = vector.extract_strided_slice %13 {offsets = [1, 0], sizes = [1, 32], strides = [1, 1]} : vector<7x64xf32> to vector<1x32xf32>
    %16 = vector.extract_strided_slice %13 {offsets = [2, 0], sizes = [1, 32], strides = [1, 1]} : vector<7x64xf32> to vector<1x32xf32>
    %17 = vector.extract_strided_slice %13 {offsets = [3, 0], sizes = [1, 64], strides = [1, 1]} : vector<7x64xf32> to vector<1x64xf32>
    %18 = vector.extract_strided_slice %13 {offsets = [4, 0], sizes = [1, 32], strides = [1, 1]} : vector<7x64xf32> to vector<1x32xf32>
    %19 = vector.extract_strided_slice %13 {offsets = [5, 0], sizes = [1, 32], strides = [1, 1]} : vector<7x64xf32> to vector<1x32xf32>
    %20 = vector.extract_strided_slice %13 {offsets = [6, 0], sizes = [1, 32], strides = [1, 1]} : vector<7x64xf32> to vector<1x32xf32>
    %cst_19 = arith.constant dense<0.000000e+00> : vector<34x96xf32>
    %21 = tpu.matmul %4, %7, %cst_19 {dimension_numbers = #tpu.dot_dimension_numbers<[1], [0], [0], [1], [0, 0, 1, 1], [], []>} : vector<34x32xf32>, vector<32x96xf32>, vector<34x96xf32> -> vector<34x96xf32>
    %22 = vector.extract_strided_slice %21 {offsets = [0, 0], sizes = [34, 32], strides = [1, 1]} : vector<34x96xf32> to vector<34x32xf32>
    %23 = vector.extract_strided_slice %21 {offsets = [0, 32], sizes = [34, 32], strides = [1, 1]} : vector<34x96xf32> to vector<34x32xf32>
    %24 = vector.extract_strided_slice %21 {offsets = [0, 64], sizes = [34, 32], strides = [1, 1]} : vector<34x96xf32> to vector<34x32xf32>
    %cst_20 = arith.constant dense<0.000000e+00> : vector<34x34xf32>
    %25 = tpu.matmul %22, %4, %cst_20 {dimension_numbers = #tpu.dot_dimension_numbers<[1], [1], [0], [0], [0, 0, 1, 0], [], []>} : vector<34x32xf32>, vector<34x32xf32>, vector<34x34xf32> -> vector<34x34xf32>
    %cst_21 = arith.constant dense<0.000000e+00> : vector<34x34xf32>
    %26 = tpu.matmul %23, %4, %cst_21 {dimension_numbers = #tpu.dot_dimension_numbers<[1], [1], [0], [0], [0, 0, 1, 0], [], []>} : vector<34x32xf32>, vector<34x32xf32>, vector<34x34xf32> -> vector<34x34xf32>
    %cst_22 = arith.constant dense<0xFF800000> : vector<34xf32>
    %27 = vector.multi_reduction <maximumf>, %25, %cst_22 [1] : vector<34x34xf32> to vector<34xf32>
    %28 = vector.shape_cast %27 : vector<34xf32> to vector<34x1xf32>
    %29 = vector.broadcast %28 : vector<34x1xf32> to vector<34x34xf32>
    %30 = arith.subf %25, %29 : vector<34x34xf32>
    %31 = math.exp %30 : vector<34x34xf32>
    %32 = arith.mulf %31, %5 : vector<34x34xf32>
    %cst_23 = arith.constant dense<0.000000e+00> : vector<34xf32>
    %33 = vector.multi_reduction <add>, %32, %cst_23 [1] : vector<34x34xf32> to vector<34xf32>
    %34 = vector.shape_cast %33 : vector<34xf32> to vector<34x1xf32>
    %35 = vector.broadcast %34 : vector<34x1xf32> to vector<34x34xf32>
    %36 = arith.divf %32, %35 : vector<34x34xf32>
    %cst_24 = arith.constant dense<0.000000e+00> : vector<34x34xf32>
    %37 = tpu.matmul %36, %26, %cst_24 {dimension_numbers = #tpu.dot_dimension_numbers<[1], [0], [0], [1], [0, 0, 1, 1], [], []>} : vector<34x34xf32>, vector<34x34xf32>, vector<34x34xf32> -> vector<34x34xf32>
    %cst_25 = arith.constant dense<0xFF800000> : vector<34xf32>
    %38 = vector.multi_reduction <maximumf>, %37, %cst_25 [1] : vector<34x34xf32> to vector<34xf32>
    %39 = vector.shape_cast %38 : vector<34xf32> to vector<34x1xf32>
    %40 = vector.broadcast %39 : vector<34x1xf32> to vector<34x34xf32>
    %41 = arith.subf %37, %40 : vector<34x34xf32>
    %42 = math.exp %41 : vector<34x34xf32>
    %43 = arith.mulf %42, %5 : vector<34x34xf32>
    %cst_26 = arith.constant dense<0.000000e+00> : vector<34xf32>
    %44 = vector.multi_reduction <add>, %43, %cst_26 [1] : vector<34x34xf32> to vector<34xf32>
    %45 = vector.shape_cast %44 : vector<34xf32> to vector<34x1xf32>
    %46 = vector.broadcast %45 : vector<34x1xf32> to vector<34x34xf32>
    %47 = arith.divf %43, %46 : vector<34x34xf32>
    %cst_27 = arith.constant dense<0.000000e+00> : vector<34x34xf32>
    %48 = tpu.matmul %47, %26, %cst_27 {dimension_numbers = #tpu.dot_dimension_numbers<[1], [0], [0], [1], [0, 0, 1, 1], [], []>} : vector<34x34xf32>, vector<34x34xf32>, vector<34x34xf32> -> vector<34x34xf32>
    %cst_28 = arith.constant dense<0xFF800000> : vector<34xf32>
    %49 = vector.multi_reduction <maximumf>, %48, %cst_28 [1] : vector<34x34xf32> to vector<34xf32>
    %50 = vector.shape_cast %49 : vector<34xf32> to vector<34x1xf32>
    %51 = vector.broadcast %50 : vector<34x1xf32> to vector<34x34xf32>
    %52 = arith.subf %48, %51 : vector<34x34xf32>
    %53 = math.exp %52 : vector<34x34xf32>
    %54 = arith.mulf %53, %5 : vector<34x34xf32>
    %cst_29 = arith.constant dense<0.000000e+00> : vector<34xf32>
    %55 = vector.multi_reduction <add>, %54, %cst_29 [1] : vector<34x34xf32> to vector<34xf32>
    %56 = vector.shape_cast %55 : vector<34xf32> to vector<34x1xf32>
    %57 = vector.broadcast %56 : vector<34x1xf32> to vector<34x34xf32>
    %58 = arith.divf %54, %57 : vector<34x34xf32>
    %cst_30 = arith.constant dense<0.000000e+00> : vector<34x34xf32>
    %59 = tpu.matmul %58, %26, %cst_30 {dimension_numbers = #tpu.dot_dimension_numbers<[1], [0], [0], [1], [0, 0, 1, 1], [], []>} : vector<34x34xf32>, vector<34x34xf32>, vector<34x34xf32> -> vector<34x34xf32>
    %cst_31 = arith.constant dense<0xFF800000> : vector<34xf32>
    %60 = vector.multi_reduction <maximumf>, %59, %cst_31 [1] : vector<34x34xf32> to vector<34xf32>
    %61 = vector.shape_cast %60 : vector<34xf32> to vector<34x1xf32>
    %62 = vector.broadcast %61 : vector<34x1xf32> to vector<34x34xf32>
    %63 = arith.subf %59, %62 : vector<34x34xf32>
    %64 = math.exp %63 : vector<34x34xf32>
    %65 = arith.mulf %64, %5 : vector<34x34xf32>
    %cst_32 = arith.constant dense<0.000000e+00> : vector<34xf32>
    %66 = vector.multi_reduction <add>, %65, %cst_32 [1] : vector<34x34xf32> to vector<34xf32>
    %67 = vector.shape_cast %66 : vector<34xf32> to vector<34x1xf32>
    %68 = vector.broadcast %67 : vector<34x1xf32> to vector<34x34xf32>
    %69 = arith.divf %65, %68 : vector<34x34xf32>
    %cst_33 = arith.constant dense<0.000000e+00> : vector<34x34xf32>
    %70 = tpu.matmul %69, %26, %cst_33 {dimension_numbers = #tpu.dot_dimension_numbers<[1], [0], [0], [1], [0, 0, 1, 1], [], []>} : vector<34x34xf32>, vector<34x34xf32>, vector<34x34xf32> -> vector<34x34xf32>
    %cst_34 = arith.constant dense<0xFF800000> : vector<34xf32>
    %71 = vector.multi_reduction <maximumf>, %70, %cst_34 [1] : vector<34x34xf32> to vector<34xf32>
    %72 = vector.shape_cast %71 : vector<34xf32> to vector<34x1xf32>
    %73 = vector.broadcast %72 : vector<34x1xf32> to vector<34x34xf32>
    %74 = arith.subf %70, %73 : vector<34x34xf32>
    %75 = math.exp %74 : vector<34x34xf32>
    %76 = arith.mulf %75, %5 : vector<34x34xf32>
    %cst_35 = arith.constant dense<0.000000e+00> : vector<34xf32>
    %77 = vector.multi_reduction <add>, %76, %cst_35 [1] : vector<34x34xf32> to vector<34xf32>
    %78 = vector.shape_cast %77 : vector<34xf32> to vector<34x1xf32>
    %79 = vector.broadcast %78 : vector<34x1xf32> to vector<34x34xf32>
    %80 = arith.divf %76, %79 : vector<34x34xf32>
    %cst_36 = arith.constant dense<0.000000e+00> : vector<34x34xf32>
    %81 = tpu.matmul %80, %26, %cst_36 {dimension_numbers = #tpu.dot_dimension_numbers<[1], [0], [0], [1], [0, 0, 1, 1], [], []>} : vector<34x34xf32>, vector<34x34xf32>, vector<34x34xf32> -> vector<34x34xf32>
    %cst_37 = arith.constant dense<0xFF800000> : vector<34xf32>
    %82 = vector.multi_reduction <maximumf>, %81, %cst_37 [1] : vector<34x34xf32> to vector<34xf32>
    %83 = vector.shape_cast %82 : vector<34xf32> to vector<34x1xf32>
    %84 = vector.broadcast %83 : vector<34x1xf32> to vector<34x34xf32>
    %85 = arith.subf %81, %84 : vector<34x34xf32>
    %86 = math.exp %85 : vector<34x34xf32>
    %87 = arith.mulf %86, %5 : vector<34x34xf32>
    %cst_38 = arith.constant dense<0.000000e+00> : vector<34xf32>
    %88 = vector.multi_reduction <add>, %87, %cst_38 [1] : vector<34x34xf32> to vector<34xf32>
    %89 = vector.shape_cast %88 : vector<34xf32> to vector<34x1xf32>
    %90 = vector.broadcast %89 : vector<34x1xf32> to vector<34x34xf32>
    %91 = arith.divf %87, %90 : vector<34x34xf32>
    %cst_39 = arith.constant dense<0.000000e+00> : vector<34x32xf32>
    %92 = tpu.matmul %91, %24, %cst_39 {dimension_numbers = #tpu.dot_dimension_numbers<[1], [0], [0], [1], [0, 0, 1, 1], [], []>} : vector<34x34xf32>, vector<34x32xf32>, vector<34x32xf32> -> vector<34x32xf32>
    %93 = vector.broadcast %14 : vector<1x32xf32> to vector<34x32xf32>
    %94 = arith.addf %92, %93 : vector<34x32xf32>
    %95 = arith.addf %4, %94 : vector<34x32xf32>
    %cst_40 = arith.constant dense<0.000000e+00> : vector<34xf32>
    %96 = vector.multi_reduction <add>, %95, %cst_40 [1] : vector<34x32xf32> to vector<34xf32>
    %97 = vector.shape_cast %96 : vector<34xf32> to vector<34x1xf32>
    %cst_41 = arith.constant 3.200000e+01 : f32
    %98 = vector.broadcast %cst_41 : f32 to vector<34x1xf32>
    %99 = arith.divf %97, %98 : vector<34x1xf32>
    %100 = vector.broadcast %99 : vector<34x1xf32> to vector<34x32xf32>
    %101 = arith.subf %95, %100 : vector<34x32xf32>
    %102 = arith.mulf %101, %101 : vector<34x32xf32>
    %cst_42 = arith.constant dense<0.000000e+00> : vector<34xf32>
    %103 = vector.multi_reduction <add>, %102, %cst_42 [1] : vector<34x32xf32> to vector<34xf32>
    %104 = vector.shape_cast %103 : vector<34xf32> to vector<34x1xf32>
    %cst_43 = arith.constant 3.200000e+01 : f32
    %105 = vector.broadcast %cst_43 : f32 to vector<34x1xf32>
    %106 = arith.divf %104, %105 : vector<34x1xf32>
    %cst_44 = arith.constant 9.99999974E-6 : f32
    %107 = vector.broadcast %cst_44 : f32 to vector<34x1xf32>
    %108 = arith.addf %106, %107 : vector<34x1xf32>
    %109 = math.rsqrt %108 : vector<34x1xf32>
    %110 = vector.broadcast %109 : vector<34x1xf32> to vector<34x32xf32>
    %111 = arith.mulf %101, %110 : vector<34x32xf32>
    %112 = vector.broadcast %15 : vector<1x32xf32> to vector<34x32xf32>
    %113 = arith.mulf %111, %112 : vector<34x32xf32>
    %114 = vector.broadcast %16 : vector<1x32xf32> to vector<34x32xf32>
    %115 = arith.addf %113, %114 : vector<34x32xf32>
    %cst_45 = arith.constant dense<0.000000e+00> : vector<34x64xf32>
    %116 = tpu.matmul %115, %9, %cst_45 {dimension_numbers = #tpu.dot_dimension_numbers<[1], [0], [0], [1], [0, 0, 1, 1], [], []>} : vector<34x32xf32>, vector<32x64xf32>, vector<34x64xf32> -> vector<34x64xf32>
    %117 = vector.broadcast %17 : vector<1x64xf32> to vector<34x64xf32>
    %118 = arith.addf %116, %117 : vector<34x64xf32>
    %cst_46 = arith.constant 0.000000e+00 : f32
    %119 = vector.broadcast %cst_46 : f32 to vector<34x64xf32>
    %120 = arith.maximumf %118, %119 : vector<34x64xf32>
    %cst_47 = arith.constant dense<0.000000e+00> : vector<34x32xf32>
    %121 = tpu.matmul %120, %11, %cst_47 {dimension_numbers = #tpu.dot_dimension_numbers<[1], [0], [0], [1], [0, 0, 1, 1], [], []>} : vector<34x64xf32>, vector<64x32xf32>, vector<34x32xf32> -> vector<34x32xf32>
    %122 = vector.broadcast %18 : vector<1x32xf32> to vector<34x32xf32>
    %123 = arith.addf %121, %122 : vector<34x32xf32>
    %124 = arith.addf %115, %123 : vector<34x32xf32>
    %cst_48 = arith.constant dense<0.000000e+00> : vector<34xf32>
    %125 = vector.multi_reduction <add>, %124, %cst_48 [1] : vector<34x32xf32> to vector<34xf32>
    %126 = vector.shape_cast %125 : vector<34xf32> to vector<34x1xf32>
    %cst_49 = arith.constant 3.200000e+01 : f32
    %127 = vector.broadcast %cst_49 : f32 to vector<34x1xf32>
    %128 = arith.divf %126, %127 : vector<34x1xf32>
    %129 = vector.broadcast %128 : vector<34x1xf32> to vector<34x32xf32>
    %130 = arith.subf %124, %129 : vector<34x32xf32>
    %131 = arith.mulf %130, %130 : vector<34x32xf32>
    %cst_50 = arith.constant dense<0.000000e+00> : vector<34xf32>
    %132 = vector.multi_reduction <add>, %131, %cst_50 [1] : vector<34x32xf32> to vector<34xf32>
    %133 = vector.shape_cast %132 : vector<34xf32> to vector<34x1xf32>
    %cst_51 = arith.constant 3.200000e+01 : f32
    %134 = vector.broadcast %cst_51 : f32 to vector<34x1xf32>
    %135 = arith.divf %133, %134 : vector<34x1xf32>
    %cst_52 = arith.constant 9.99999974E-6 : f32
    %136 = vector.broadcast %cst_52 : f32 to vector<34x1xf32>
    %137 = arith.addf %135, %136 : vector<34x1xf32>
    %138 = math.rsqrt %137 : vector<34x1xf32>
    %139 = vector.broadcast %138 : vector<34x1xf32> to vector<34x32xf32>
    %140 = arith.mulf %130, %139 : vector<34x32xf32>
    %141 = vector.broadcast %19 : vector<1x32xf32> to vector<34x32xf32>
    %142 = arith.mulf %140, %141 : vector<34x32xf32>
    %143 = vector.broadcast %20 : vector<1x32xf32> to vector<34x32xf32>
    %144 = arith.addf %142, %143 : vector<34x32xf32>
    %c1 = arith.constant 1 : index
    %c0_53 = arith.constant 0 : index
    %c0_54 = arith.constant 0 : index
    %145 = vector.load %arg5[%c1, %c0_53, %c0_54] : memref<2x32x96xf32, #tpu.memory_space<vmem>>, vector<1x32x96xf32>
    %146 = vector.shape_cast %145 : vector<1x32x96xf32> to vector<32x96xf32>
    %c1_55 = arith.constant 1 : index
    %c0_56 = arith.constant 0 : index
    %c0_57 = arith.constant 0 : index
    %147 = vector.load %arg6[%c1_55, %c0_56, %c0_57] : memref<2x32x64xf32, #tpu.memory_space<vmem>>, vector<1x32x64xf32>
    %148 = vector.shape_cast %147 : vector<1x32x64xf32> to vector<32x64xf32>
    %c1_58 = arith.constant 1 : index
    %c0_59 = arith.constant 0 : index
    %c0_60 = arith.constant 0 : index
    %149 = vector.load %arg7[%c1_58, %c0_59, %c0_60] : memref<2x64x32xf32, #tpu.memory_space<vmem>>, vector<1x64x32xf32>
    %150 = vector.shape_cast %149 : vector<1x64x32xf32> to vector<64x32xf32>
    %c1_61 = arith.constant 1 : index
    %c0_62 = arith.constant 0 : index
    %c0_63 = arith.constant 0 : index
    %151 = vector.load %arg8[%c1_61, %c0_62, %c0_63] : memref<2x7x64xf32, #tpu.memory_space<vmem>>, vector<1x7x64xf32>
    %152 = vector.shape_cast %151 : vector<1x7x64xf32> to vector<7x64xf32>
    %153 = vector.extract_strided_slice %152 {offsets = [0, 0], sizes = [1, 32], strides = [1, 1]} : vector<7x64xf32> to vector<1x32xf32>
    %154 = vector.extract_strided_slice %152 {offsets = [1, 0], sizes = [1, 32], strides = [1, 1]} : vector<7x64xf32> to vector<1x32xf32>
    %155 = vector.extract_strided_slice %152 {offsets = [2, 0], sizes = [1, 32], strides = [1, 1]} : vector<7x64xf32> to vector<1x32xf32>
    %156 = vector.extract_strided_slice %152 {offsets = [3, 0], sizes = [1, 64], strides = [1, 1]} : vector<7x64xf32> to vector<1x64xf32>
    %157 = vector.extract_strided_slice %152 {offsets = [4, 0], sizes = [1, 32], strides = [1, 1]} : vector<7x64xf32> to vector<1x32xf32>
    %158 = vector.extract_strided_slice %152 {offsets = [5, 0], sizes = [1, 32], strides = [1, 1]} : vector<7x64xf32> to vector<1x32xf32>
    %159 = vector.extract_strided_slice %152 {offsets = [6, 0], sizes = [1, 32], strides = [1, 1]} : vector<7x64xf32> to vector<1x32xf32>
    %cst_64 = arith.constant dense<0.000000e+00> : vector<34x96xf32>
    %160 = tpu.matmul %144, %146, %cst_64 {dimension_numbers = #tpu.dot_dimension_numbers<[1], [0], [0], [1], [0, 0, 1, 1], [], []>} : vector<34x32xf32>, vector<32x96xf32>, vector<34x96xf32> -> vector<34x96xf32>
    %161 = vector.extract_strided_slice %160 {offsets = [0, 0], sizes = [34, 32], strides = [1, 1]} : vector<34x96xf32> to vector<34x32xf32>
    %162 = vector.extract_strided_slice %160 {offsets = [0, 32], sizes = [34, 32], strides = [1, 1]} : vector<34x96xf32> to vector<34x32xf32>
    %163 = vector.extract_strided_slice %160 {offsets = [0, 64], sizes = [34, 32], strides = [1, 1]} : vector<34x96xf32> to vector<34x32xf32>
    %cst_65 = arith.constant dense<0.000000e+00> : vector<34x34xf32>
    %164 = tpu.matmul %161, %144, %cst_65 {dimension_numbers = #tpu.dot_dimension_numbers<[1], [1], [0], [0], [0, 0, 1, 0], [], []>} : vector<34x32xf32>, vector<34x32xf32>, vector<34x34xf32> -> vector<34x34xf32>
    %cst_66 = arith.constant dense<0.000000e+00> : vector<34x34xf32>
    %165 = tpu.matmul %162, %144, %cst_66 {dimension_numbers = #tpu.dot_dimension_numbers<[1], [1], [0], [0], [0, 0, 1, 0], [], []>} : vector<34x32xf32>, vector<34x32xf32>, vector<34x34xf32> -> vector<34x34xf32>
    %cst_67 = arith.constant dense<0xFF800000> : vector<34xf32>
    %166 = vector.multi_reduction <maximumf>, %164, %cst_67 [1] : vector<34x34xf32> to vector<34xf32>
    %167 = vector.shape_cast %166 : vector<34xf32> to vector<34x1xf32>
    %168 = vector.broadcast %167 : vector<34x1xf32> to vector<34x34xf32>
    %169 = arith.subf %164, %168 : vector<34x34xf32>
    %170 = math.exp %169 : vector<34x34xf32>
    %171 = arith.mulf %170, %5 : vector<34x34xf32>
    %cst_68 = arith.constant dense<0.000000e+00> : vector<34xf32>
    %172 = vector.multi_reduction <add>, %171, %cst_68 [1] : vector<34x34xf32> to vector<34xf32>
    %173 = vector.shape_cast %172 : vector<34xf32> to vector<34x1xf32>
    %174 = vector.broadcast %173 : vector<34x1xf32> to vector<34x34xf32>
    %175 = arith.divf %171, %174 : vector<34x34xf32>
    %cst_69 = arith.constant dense<0.000000e+00> : vector<34x34xf32>
    %176 = tpu.matmul %175, %165, %cst_69 {dimension_numbers = #tpu.dot_dimension_numbers<[1], [0], [0], [1], [0, 0, 1, 1], [], []>} : vector<34x34xf32>, vector<34x34xf32>, vector<34x34xf32> -> vector<34x34xf32>
    %cst_70 = arith.constant dense<0xFF800000> : vector<34xf32>
    %177 = vector.multi_reduction <maximumf>, %176, %cst_70 [1] : vector<34x34xf32> to vector<34xf32>
    %178 = vector.shape_cast %177 : vector<34xf32> to vector<34x1xf32>
    %179 = vector.broadcast %178 : vector<34x1xf32> to vector<34x34xf32>
    %180 = arith.subf %176, %179 : vector<34x34xf32>
    %181 = math.exp %180 : vector<34x34xf32>
    %182 = arith.mulf %181, %5 : vector<34x34xf32>
    %cst_71 = arith.constant dense<0.000000e+00> : vector<34xf32>
    %183 = vector.multi_reduction <add>, %182, %cst_71 [1] : vector<34x34xf32> to vector<34xf32>
    %184 = vector.shape_cast %183 : vector<34xf32> to vector<34x1xf32>
    %185 = vector.broadcast %184 : vector<34x1xf32> to vector<34x34xf32>
    %186 = arith.divf %182, %185 : vector<34x34xf32>
    %cst_72 = arith.constant dense<0.000000e+00> : vector<34x34xf32>
    %187 = tpu.matmul %186, %165, %cst_72 {dimension_numbers = #tpu.dot_dimension_numbers<[1], [0], [0], [1], [0, 0, 1, 1], [], []>} : vector<34x34xf32>, vector<34x34xf32>, vector<34x34xf32> -> vector<34x34xf32>
    %cst_73 = arith.constant dense<0xFF800000> : vector<34xf32>
    %188 = vector.multi_reduction <maximumf>, %187, %cst_73 [1] : vector<34x34xf32> to vector<34xf32>
    %189 = vector.shape_cast %188 : vector<34xf32> to vector<34x1xf32>
    %190 = vector.broadcast %189 : vector<34x1xf32> to vector<34x34xf32>
    %191 = arith.subf %187, %190 : vector<34x34xf32>
    %192 = math.exp %191 : vector<34x34xf32>
    %193 = arith.mulf %192, %5 : vector<34x34xf32>
    %cst_74 = arith.constant dense<0.000000e+00> : vector<34xf32>
    %194 = vector.multi_reduction <add>, %193, %cst_74 [1] : vector<34x34xf32> to vector<34xf32>
    %195 = vector.shape_cast %194 : vector<34xf32> to vector<34x1xf32>
    %196 = vector.broadcast %195 : vector<34x1xf32> to vector<34x34xf32>
    %197 = arith.divf %193, %196 : vector<34x34xf32>
    %cst_75 = arith.constant dense<0.000000e+00> : vector<34x34xf32>
    %198 = tpu.matmul %197, %165, %cst_75 {dimension_numbers = #tpu.dot_dimension_numbers<[1], [0], [0], [1], [0, 0, 1, 1], [], []>} : vector<34x34xf32>, vector<34x34xf32>, vector<34x34xf32> -> vector<34x34xf32>
    %cst_76 = arith.constant dense<0xFF800000> : vector<34xf32>
    %199 = vector.multi_reduction <maximumf>, %198, %cst_76 [1] : vector<34x34xf32> to vector<34xf32>
    %200 = vector.shape_cast %199 : vector<34xf32> to vector<34x1xf32>
    %201 = vector.broadcast %200 : vector<34x1xf32> to vector<34x34xf32>
    %202 = arith.subf %198, %201 : vector<34x34xf32>
    %203 = math.exp %202 : vector<34x34xf32>
    %204 = arith.mulf %203, %5 : vector<34x34xf32>
    %cst_77 = arith.constant dense<0.000000e+00> : vector<34xf32>
    %205 = vector.multi_reduction <add>, %204, %cst_77 [1] : vector<34x34xf32> to vector<34xf32>
    %206 = vector.shape_cast %205 : vector<34xf32> to vector<34x1xf32>
    %207 = vector.broadcast %206 : vector<34x1xf32> to vector<34x34xf32>
    %208 = arith.divf %204, %207 : vector<34x34xf32>
    %cst_78 = arith.constant dense<0.000000e+00> : vector<34x34xf32>
    %209 = tpu.matmul %208, %165, %cst_78 {dimension_numbers = #tpu.dot_dimension_numbers<[1], [0], [0], [1], [0, 0, 1, 1], [], []>} : vector<34x34xf32>, vector<34x34xf32>, vector<34x34xf32> -> vector<34x34xf32>
    %cst_79 = arith.constant dense<0xFF800000> : vector<34xf32>
    %210 = vector.multi_reduction <maximumf>, %209, %cst_79 [1] : vector<34x34xf32> to vector<34xf32>
    %211 = vector.shape_cast %210 : vector<34xf32> to vector<34x1xf32>
    %212 = vector.broadcast %211 : vector<34x1xf32> to vector<34x34xf32>
    %213 = arith.subf %209, %212 : vector<34x34xf32>
    %214 = math.exp %213 : vector<34x34xf32>
    %215 = arith.mulf %214, %5 : vector<34x34xf32>
    %cst_80 = arith.constant dense<0.000000e+00> : vector<34xf32>
    %216 = vector.multi_reduction <add>, %215, %cst_80 [1] : vector<34x34xf32> to vector<34xf32>
    %217 = vector.shape_cast %216 : vector<34xf32> to vector<34x1xf32>
    %218 = vector.broadcast %217 : vector<34x1xf32> to vector<34x34xf32>
    %219 = arith.divf %215, %218 : vector<34x34xf32>
    %cst_81 = arith.constant dense<0.000000e+00> : vector<34x34xf32>
    %220 = tpu.matmul %219, %165, %cst_81 {dimension_numbers = #tpu.dot_dimension_numbers<[1], [0], [0], [1], [0, 0, 1, 1], [], []>} : vector<34x34xf32>, vector<34x34xf32>, vector<34x34xf32> -> vector<34x34xf32>
    %cst_82 = arith.constant dense<0xFF800000> : vector<34xf32>
    %221 = vector.multi_reduction <maximumf>, %220, %cst_82 [1] : vector<34x34xf32> to vector<34xf32>
    %222 = vector.shape_cast %221 : vector<34xf32> to vector<34x1xf32>
    %223 = vector.broadcast %222 : vector<34x1xf32> to vector<34x34xf32>
    %224 = arith.subf %220, %223 : vector<34x34xf32>
    %225 = math.exp %224 : vector<34x34xf32>
    %226 = arith.mulf %225, %5 : vector<34x34xf32>
    %cst_83 = arith.constant dense<0.000000e+00> : vector<34xf32>
    %227 = vector.multi_reduction <add>, %226, %cst_83 [1] : vector<34x34xf32> to vector<34xf32>
    %228 = vector.shape_cast %227 : vector<34xf32> to vector<34x1xf32>
    %229 = vector.broadcast %228 : vector<34x1xf32> to vector<34x34xf32>
    %230 = arith.divf %226, %229 : vector<34x34xf32>
    %cst_84 = arith.constant dense<0.000000e+00> : vector<34x32xf32>
    %231 = tpu.matmul %230, %163, %cst_84 {dimension_numbers = #tpu.dot_dimension_numbers<[1], [0], [0], [1], [0, 0, 1, 1], [], []>} : vector<34x34xf32>, vector<34x32xf32>, vector<34x32xf32> -> vector<34x32xf32>
    %232 = vector.broadcast %153 : vector<1x32xf32> to vector<34x32xf32>
    %233 = arith.addf %231, %232 : vector<34x32xf32>
    %234 = arith.addf %144, %233 : vector<34x32xf32>
    %cst_85 = arith.constant dense<0.000000e+00> : vector<34xf32>
    %235 = vector.multi_reduction <add>, %234, %cst_85 [1] : vector<34x32xf32> to vector<34xf32>
    %236 = vector.shape_cast %235 : vector<34xf32> to vector<34x1xf32>
    %cst_86 = arith.constant 3.200000e+01 : f32
    %237 = vector.broadcast %cst_86 : f32 to vector<34x1xf32>
    %238 = arith.divf %236, %237 : vector<34x1xf32>
    %239 = vector.broadcast %238 : vector<34x1xf32> to vector<34x32xf32>
    %240 = arith.subf %234, %239 : vector<34x32xf32>
    %241 = arith.mulf %240, %240 : vector<34x32xf32>
    %cst_87 = arith.constant dense<0.000000e+00> : vector<34xf32>
    %242 = vector.multi_reduction <add>, %241, %cst_87 [1] : vector<34x32xf32> to vector<34xf32>
    %243 = vector.shape_cast %242 : vector<34xf32> to vector<34x1xf32>
    %cst_88 = arith.constant 3.200000e+01 : f32
    %244 = vector.broadcast %cst_88 : f32 to vector<34x1xf32>
    %245 = arith.divf %243, %244 : vector<34x1xf32>
    %cst_89 = arith.constant 9.99999974E-6 : f32
    %246 = vector.broadcast %cst_89 : f32 to vector<34x1xf32>
    %247 = arith.addf %245, %246 : vector<34x1xf32>
    %248 = math.rsqrt %247 : vector<34x1xf32>
    %249 = vector.broadcast %248 : vector<34x1xf32> to vector<34x32xf32>
    %250 = arith.mulf %240, %249 : vector<34x32xf32>
    %251 = vector.broadcast %154 : vector<1x32xf32> to vector<34x32xf32>
    %252 = arith.mulf %250, %251 : vector<34x32xf32>
    %253 = vector.broadcast %155 : vector<1x32xf32> to vector<34x32xf32>
    %254 = arith.addf %252, %253 : vector<34x32xf32>
    %cst_90 = arith.constant dense<0.000000e+00> : vector<34x64xf32>
    %255 = tpu.matmul %254, %148, %cst_90 {dimension_numbers = #tpu.dot_dimension_numbers<[1], [0], [0], [1], [0, 0, 1, 1], [], []>} : vector<34x32xf32>, vector<32x64xf32>, vector<34x64xf32> -> vector<34x64xf32>
    %256 = vector.broadcast %156 : vector<1x64xf32> to vector<34x64xf32>
    %257 = arith.addf %255, %256 : vector<34x64xf32>
    %cst_91 = arith.constant 0.000000e+00 : f32
    %258 = vector.broadcast %cst_91 : f32 to vector<34x64xf32>
    %259 = arith.maximumf %257, %258 : vector<34x64xf32>
    %cst_92 = arith.constant dense<0.000000e+00> : vector<34x32xf32>
    %260 = tpu.matmul %259, %150, %cst_92 {dimension_numbers = #tpu.dot_dimension_numbers<[1], [0], [0], [1], [0, 0, 1, 1], [], []>} : vector<34x64xf32>, vector<64x32xf32>, vector<34x32xf32> -> vector<34x32xf32>
    %261 = vector.broadcast %157 : vector<1x32xf32> to vector<34x32xf32>
    %262 = arith.addf %260, %261 : vector<34x32xf32>
    %263 = arith.addf %254, %262 : vector<34x32xf32>
    %cst_93 = arith.constant dense<0.000000e+00> : vector<34xf32>
    %264 = vector.multi_reduction <add>, %263, %cst_93 [1] : vector<34x32xf32> to vector<34xf32>
    %265 = vector.shape_cast %264 : vector<34xf32> to vector<34x1xf32>
    %cst_94 = arith.constant 3.200000e+01 : f32
    %266 = vector.broadcast %cst_94 : f32 to vector<34x1xf32>
    %267 = arith.divf %265, %266 : vector<34x1xf32>
    %268 = vector.broadcast %267 : vector<34x1xf32> to vector<34x32xf32>
    %269 = arith.subf %263, %268 : vector<34x32xf32>
    %270 = arith.mulf %269, %269 : vector<34x32xf32>
    %cst_95 = arith.constant dense<0.000000e+00> : vector<34xf32>
    %271 = vector.multi_reduction <add>, %270, %cst_95 [1] : vector<34x32xf32> to vector<34xf32>
    %272 = vector.shape_cast %271 : vector<34xf32> to vector<34x1xf32>
    %cst_96 = arith.constant 3.200000e+01 : f32
    %273 = vector.broadcast %cst_96 : f32 to vector<34x1xf32>
    %274 = arith.divf %272, %273 : vector<34x1xf32>
    %cst_97 = arith.constant 9.99999974E-6 : f32
    %275 = vector.broadcast %cst_97 : f32 to vector<34x1xf32>
    %276 = arith.addf %274, %275 : vector<34x1xf32>
    %277 = math.rsqrt %276 : vector<34x1xf32>
    %278 = vector.broadcast %277 : vector<34x1xf32> to vector<34x32xf32>
    %279 = arith.mulf %269, %278 : vector<34x32xf32>
    %280 = vector.broadcast %158 : vector<1x32xf32> to vector<34x32xf32>
    %281 = arith.mulf %279, %280 : vector<34x32xf32>
    %282 = vector.broadcast %159 : vector<1x32xf32> to vector<34x32xf32>
    %283 = arith.addf %281, %282 : vector<34x32xf32>
    %cst_98 = arith.constant 0.000000e+00 : f32
    %284 = vector.broadcast %cst_98 : f32 to vector<34x96xf32>
    %285 = tpu.concatenate %283, %284 in 1 : vector<34x32xf32>, vector<34x96xf32> -> vector<34x128xf32>
    %c0_99 = arith.constant 0 : index
    %c0_100 = arith.constant 0 : index
    %286 = vector.load %arg11[%c0_99, %c0_100] : memref<34x128xf32, #tpu.memory_space<vmem>>, vector<34x128xf32>
    tpu.vector_store %arg11[%c0_99, %c0_100], %285 {strides = array<i32>} : memref<34x128xf32, #tpu.memory_space<vmem>>, vector<34x128xf32>,
    %c0_101 = arith.constant 0 : index
    %c0_102 = arith.constant 0 : index
    %287 = vector.load %arg4[%c0_101, %c0_102] : memref<2x34xf32, #tpu.memory_space<vmem>>, vector<2x34xf32>
    %cst_103 = arith.constant dense<0.000000e+00> : vector<2x32xf32>
    %288 = tpu.matmul %287, %283, %cst_103 {dimension_numbers = #tpu.dot_dimension_numbers<[1], [0], [0], [1], [0, 0, 1, 1], [], []>} : vector<2x34xf32>, vector<34x32xf32>, vector<2x32xf32> -> vector<2x32xf32>
    %c0_104 = arith.constant 0 : index
    %c0_105 = arith.constant 0 : index
    %289 = vector.load %arg9[%c0_104, %c0_105] : memref<32x128xf32, #tpu.memory_space<vmem>>, vector<32x128xf32>
    %cst_106 = arith.constant dense<0.000000e+00> : vector<2x128xf32>
    %290 = tpu.matmul %288, %289, %cst_106 {dimension_numbers = #tpu.dot_dimension_numbers<[1], [0], [0], [1], [0, 0, 1, 1], [], []>} : vector<2x32xf32>, vector<32x128xf32>, vector<2x128xf32> -> vector<2x128xf32>
    %c0_107 = arith.constant 0 : index
    %c0_108 = arith.constant 0 : index
    %291 = vector.load %arg10[%c0_107, %c0_108] : memref<1x128xf32, #tpu.memory_space<vmem>>, vector<1x128xf32>
    %292 = vector.broadcast %291 : vector<1x128xf32> to vector<2x128xf32>
    %293 = arith.addf %290, %292 : vector<2x128xf32>
    %cst_109 = arith.constant dense<0xFF800000> : vector<2xf32>
    %294 = vector.multi_reduction <maximumf>, %293, %cst_109 [1] : vector<2x128xf32> to vector<2xf32>
    %295 = vector.shape_cast %294 : vector<2xf32> to vector<2x1xf32>
    %296 = vector.broadcast %295 : vector<2x1xf32> to vector<2x128xf32>
    %297 = arith.subf %293, %296 : vector<2x128xf32>
    %298 = math.exp %297 : vector<2x128xf32>
    %cst_110 = arith.constant dense<0.000000e+00> : vector<2xf32>
    %299 = vector.multi_reduction <add>, %298, %cst_110 [1] : vector<2x128xf32> to vector<2xf32>
    %300 = vector.shape_cast %299 : vector<2xf32> to vector<2x1xf32>
    %301 = vector.broadcast %300 : vector<2x1xf32> to vector<2x128xf32>
    %302 = arith.divf %298, %301 : vector<2x128xf32>
    %c0_111 = arith.constant 0 : index
    %c0_112 = arith.constant 0 : index
    %303 = vector.load %arg12[%c0_111, %c0_112] : memref<2x128xf32, #tpu.memory_space<vmem>>, vector<2x128xf32>
    tpu.vector_store %arg12[%c0_111, %c0_112], %302 {strides = array<i32>} : memref<2x128xf32, #tpu.memory_space<vmem>>, vector<2x128xf32>,
    return
  }
}

</mosaic_0001>

<llo_original>
// kernel: vit_forward.1
$region0: #{vit_forward.1}
  #allocation0 [shape = 'u32[]', space=smem, size = 0x4, offset = 0x4, fixed_abs, tag = 'smem constant byte address 0x4 - core index']
  #allocation1 [shape = 'u32[72,128]{1,0:T(1,128)}', space=vmem, size = 0x9000, scoped, tag = 'internal scratch']
  %s0 = inlined_call_operand.vmem [shape: f32[34,64], index: 0, kind: input, shape index: {}]
  %s1 = inlined_call_operand.vmem [shape: f32[64,32], index: 1, kind: input, shape index: {}]
  %s2 = inlined_call_operand.vmem [shape: f32[34,32], index: 2, kind: input, shape index: {}]
  %s3 = inlined_call_operand.vmem [shape: f32[34,34], index: 3, kind: input, shape index: {}]
  %s4 = inlined_call_operand.vmem [shape: f32[2,34], index: 4, kind: input, shape index: {}]
  %s5 = inlined_call_operand.vmem [shape: f32[2,32,96], index: 5, kind: input, shape index: {}]
  %s6 = inlined_call_operand.vmem [shape: f32[2,32,64], index: 6, kind: input, shape index: {}]
  %s7 = inlined_call_operand.vmem [shape: f32[2,64,32], index: 7, kind: input, shape index: {}]
  %s8 = inlined_call_operand.vmem [shape: f32[2,7,64], index: 8, kind: input, shape index: {}]
  %s9 = inlined_call_operand.vmem [shape: f32[32,128], index: 9, kind: input, shape index: {}]
  %s10 = inlined_call_operand.vmem [shape: f32[1,128], index: 10, kind: input, shape index: {}]
  %s11 = inlined_call_operand.vmem [shape: f32[34,128], index: 11, kind: output, shape index: {0}]
  %s12 = inlined_call_operand.hbm [shape: f32[2,128], index: 12, kind: output, shape index: {1}]
  %13 = xla_tuple %s11, %s12
  %s14 = sld [smem:[#allocation0]]
  $region62: #{vit_forward.1} parent=0
    _
  %s16 = ssub.s32 1, %s14
  %s17 = scalar_select 0, %s16, %s14
  $region1: #{vit_forward.1} parent=0
    #allocation2 [shape = 'u8[1024]{0}', space=vmem, size = 0x400, scoped, tag = 'output window, operand 1, single buffered']
    #allocation3 [shape = 's32[1]{0}', space=sflag, size = 0x4, scoped, tag = 'scoped memory for vit_forward.1']
    %18 = vsyncpa [#allocation3], 0
    // Predicated region
    $region2: #{vit_forward.1} parent=1 // pred_check
      _
    $region3: #{vit_forward.1} parent=1 // pred_check_branch
      %20 = sbr.rel (0) target = $region5
    $region4: #{vit_forward.1} parent=1 // pred_region
      _
    $region5: #{vit_forward.1} parent=1 // pred_fallthru
      _
    // Predicated region
    $region6: #{vit_forward.1} parent=1 // pred_check
      _
    $region7: #{vit_forward.1} parent=1 // pred_check_branch
      %22 = sbr.rel (0) target = $region9
    $region8: #{vit_forward.1} parent=1 // pred_region
      _
    $region9: #{vit_forward.1} parent=1 // pred_fallthru
      _
    // Predicated region
    $region10: #{vit_forward.1} parent=1 // pred_check
      _
    $region11: #{vit_forward.1} parent=1 // pred_check_branch
      %24 = sbr.rel (0) target = $region13
    $region12: #{vit_forward.1} parent=1 // pred_region
      _
    $region13: #{vit_forward.1} parent=1 // pred_fallthru
      _
    // Predicated region
    $region14: #{vit_forward.1} parent=1 // pred_check
      _
    $region15: #{vit_forward.1} parent=1 // pred_check_branch
      %26 = sbr.rel (0) target = $region17
    $region16: #{vit_forward.1} parent=1 // pred_region
      _
    $region17: #{vit_forward.1} parent=1 // pred_fallthru
      _
    // Predicated region
    $region18: #{vit_forward.1} parent=1 // pred_check
      _
    $region19: #{vit_forward.1} parent=1 // pred_check_branch
      %28 = sbr.rel (0) target = $region21
    $region20: #{vit_forward.1} parent=1 // pred_region
      _
    $region21: #{vit_forward.1} parent=1 // pred_fallthru
      _
    // Predicated region
    $region22: #{vit_forward.1} parent=1 // pred_check
      _
    $region23: #{vit_forward.1} parent=1 // pred_check_branch
      %30 = sbr.rel (0) target = $region25
    $region24: #{vit_forward.1} parent=1 // pred_region
      _
    $region25: #{vit_forward.1} parent=1 // pred_fallthru
      _
    // Predicated region
    $region26: #{vit_forward.1} parent=1 // pred_check
      _
    $region27: #{vit_forward.1} parent=1 // pred_check_branch
      %32 = sbr.rel (0) target = $region29
    $region28: #{vit_forward.1} parent=1 // pred_region
      _
    $region29: #{vit_forward.1} parent=1 // pred_fallthru
      _
    // Predicated region
    $region30: #{vit_forward.1} parent=1 // pred_check
      _
    $region31: #{vit_forward.1} parent=1 // pred_check_branch
      %34 = sbr.rel (0) target = $region33
    $region32: #{vit_forward.1} parent=1 // pred_region
      _
    $region33: #{vit_forward.1} parent=1 // pred_fallthru
      _
    // Predicated region
    $region34: #{vit_forward.1} parent=1 // pred_check
      _
    $region35: #{vit_forward.1} parent=1 // pred_check_branch
      %36 = sbr.rel (0) target = $region37
    $region36: #{vit_forward.1} parent=1 // pred_region
      _
    $region37: #{vit_forward.1} parent=1 // pred_fallthru
      _
    // Predicated region
    $region38: #{vit_forward.1} parent=1 // pred_check
      _
    $region39: #{vit_forward.1} parent=1 // pred_check_branch
      %38 = sbr.rel (0) target = $region41
    $region40: #{vit_forward.1} parent=1 // pred_region
      _
    $region41: #{vit_forward.1} parent=1 // pred_fallthru
      _
    // Predicated region
    $region42: #{vit_forward.1} parent=1 // pred_check
      _
    $region43: #{vit_forward.1} parent=1 // pred_check_branch
      %40 = sbr.rel (0) target = $region45
    $region44: #{vit_forward.1} parent=1 // pred_region
      _
    $region45: #{vit_forward.1} parent=1 // pred_fallthru
      _
    %v41 = vld [vmem:[%s0] sm:$0xff]
    %v42 = vld [vmem:[%s0 + $0x8] sm:$0xff]
    %v43 = vld [vmem:[%s0 + $0x10] sm:$0xff]
    %v44 = vld [vmem:[%s0 + $0x18] sm:$0xff]
    %v45 = vld [vmem:[%s0 + $0x20] sm:$0x3]
    %v46 = vld [vmem:[%s1] sm:$0xff]
    %v47 = vld [vmem:[%s1 + $0x8] sm:$0xff]
    %v48 = vld [vmem:[%s1 + $0x10] sm:$0xff]
    %v49 = vld [vmem:[%s1 + $0x18] sm:$0xff]
    %v50 = vld [vmem:[%s1 + $0x20] sm:$0xff]
    %v51 = vld [vmem:[%s1 + $0x28] sm:$0xff]
    %v52 = vld [vmem:[%s1 + $0x30] sm:$0xff]
    %v53 = vld [vmem:[%s1 + $0x38] sm:$0xff]
    %v54 = vld [vmem:[%s2] sm:$0xff]
    %v55 = vld [vmem:[%s2 + $0x8] sm:$0xff]
    %v56 = vld [vmem:[%s2 + $0x10] sm:$0xff]
    %v57 = vld [vmem:[%s2 + $0x18] sm:$0xff]
    %v58 = vld [vmem:[%s2 + $0x20] sm:$0x3]
    %vm59 = vcmask 523264
    %v61 = vsel %vm59, %v41, 0
    %v64 = vsel %vm59, %v42, 0
    %v67 = vsel %vm59, %v43, 0
    %v70 = vsel %vm59, %v44, 0
    %v73 = vsel %vm59, %v45, 0
    %75 = vmatpush.msra.mxu0 0.0
    %76 = vmatpush.msra.mxu0 0.0
    %77 = vmatpush.msra.mxu0 0.0
    %78 = vmatpush.msra.mxu0 0.0
    %79 = vmatpush.msra.mxu0 0.0
    %80 = vmatpush.msra.mxu0 0.0
    %81 = vmatpush.msra.mxu0 0.0
    %82 = vmatpush.msra.mxu0 0.0
    %83 = vmatpush.msra.mxu0 %v53
    %84 = vmatpush.msra.mxu0 %v52
    %85 = vmatpush.msra.mxu0 %v51
    %86 = vmatpush.msra.mxu0 %v50
    %87 = vmatpush.msra.mxu0 %v49
    %88 = vmatpush.msra.mxu0 %v48
    %89 = vmatpush.msra.mxu0 %v47
    %90 = vmatpush.msra.mxu0 %v46
    %91 = vmatmul.f32.gmra.mxu0 %v61
    %v92 = vpop.f32.mrf.mxu0
    %v93 = vadd.f32 %v54, %v92
    %94 = vmatmul.f32.gmra.mxu0 %v64
    %v95 = vpop.f32.mrf.mxu0
    %v96 = vadd.f32 %v55, %v95
    %97 = vmatmul.f32.gmra.mxu0 %v67
    %v98 = vpop.f32.mrf.mxu0
    %v99 = vadd.f32 %v56, %v98
    %100 = vmatmul.f32.gmra.mxu0 %v70
    %v101 = vpop.f32.mrf.mxu0
    %v102 = vadd.f32 %v57, %v101
    %103 = vmatmul.f32.gmra.mxu0 %v73
    %v104 = vpop.f32.mrf.mxu0
    %v105 = vadd.f32 %v58, %v104
    %106 = vdwg.mxu0
    %v107 = vld [vmem:[%s3] sm:$0xff]
    %v108 = vld [vmem:[%s3 + $0x8] sm:$0xff]
    %v109 = vld [vmem:[%s3 + $0x10] sm:$0xff]
    %v110 = vld [vmem:[%s3 + $0x18] sm:$0xff]
    %v111 = vld [vmem:[%s3 + $0x20] sm:$0x3]
    %v112 = vld [vmem:[%s5] sm:$0xff]
    %v113 = vld [vmem:[%s5 + $0x8] sm:$0xff]
    %v114 = vld [vmem:[%s5 + $0x10] sm:$0xff]
    %v115 = vld [vmem:[%s5 + $0x18] sm:$0xff]
    %v116 = vld [vmem:[%s6] sm:$0xff]
    %v117 = vld [vmem:[%s6 + $0x8] sm:$0xff]
    %v118 = vld [vmem:[%s6 + $0x10] sm:$0xff]
    %v119 = vld [vmem:[%s6 + $0x18] sm:$0xff]
    %v120 = vld [vmem:[%s7] sm:$0xff]
    %v121 = vld [vmem:[%s7 + $0x8] sm:$0xff]
    %v122 = vld [vmem:[%s7 + $0x10] sm:$0xff]
    %v123 = vld [vmem:[%s7 + $0x18] sm:$0xff]
    %v124 = vld [vmem:[%s7 + $0x20] sm:$0xff]
    %v125 = vld [vmem:[%s7 + $0x28] sm:$0xff]
    %v126 = vld [vmem:[%s7 + $0x30] sm:$0xff]
    %v127 = vld [vmem:[%s7 + $0x38] sm:$0xff]
    %v128 = vld [vmem:[%s8] sm:$0x7f]
    %vm129 = vcmask 261120
    %v131 = vsel %vm129, %v93, 0
    %v134 = vsel %vm129, %v96, 0
    %v137 = vsel %vm129, %v99, 0
    %v140 = vsel %vm129, %v102, 0
    %v143 = vsel %vm129, %v105, 0
    %145 = vmatpush.msra.mxu0 0.0
    %146 = vmatpush.msra.mxu0 0.0
    %147 = vmatpush.msra.mxu0 0.0
    %148 = vmatpush.msra.mxu0 0.0
    %149 = vmatpush.msra.mxu0 0.0
    %150 = vmatpush.msra.mxu0 0.0
    %151 = vmatpush.msra.mxu0 0.0
    %152 = vmatpush.msra.mxu0 0.0
    %153 = vmatpush.msra.mxu0 0.0
    %154 = vmatpush.msra.mxu0 0.0
    %155 = vmatpush.msra.mxu0 0.0
    %156 = vmatpush.msra.mxu0 0.0
    %157 = vmatpush.msra.mxu0 %v115
    %158 = vmatpush.msra.mxu0 %v114
    %159 = vmatpush.msra.mxu0 %v113
    %160 = vmatpush.msra.mxu0 %v112
    %161 = vmatmul.f32.gmra.mxu0 %v131
    %v162 = vpop.f32.mrf.mxu0
    %v163 = vadd.f32 0.0, %v162
    %164 = vmatmul.f32.gmra.mxu0 %v134
    %v165 = vpop.f32.mrf.mxu0
    %v166 = vadd.f32 0.0, %v165
    %167 = vmatmul.f32.gmra.mxu0 %v137
    %v168 = vpop.f32.mrf.mxu0
    %v169 = vadd.f32 0.0, %v168
    %170 = vmatmul.f32.gmra.mxu0 %v140
    %v171 = vpop.f32.mrf.mxu0
    %v172 = vadd.f32 0.0, %v171
    %173 = vmatmul.f32.gmra.mxu0 %v143
    %v174 = vpop.f32.mrf.mxu0
    %v175 = vadd.f32 0.0, %v174
    %176 = vdwg.mxu0
    %v178 = vsel %vm129, %v163, 0
    %v181 = vsel %vm129, %v166, 0
    %v184 = vsel %vm129, %v169, 0
    %v187 = vsel %vm129, %v172, 0
    %v190 = vsel %vm129, %v175, 0
    %192 = vmatpush.xpose.msra.mxu0 0.0
    %193 = vmatpush.xpose.msra.mxu0 0.0
    %194 = vmatpush.xpose.msra.mxu0 0.0
    %195 = vmatpush.xpose.msra.mxu0 0.0
    %196 = vmatpush.xpose.msra.mxu0 0.0
    %197 = vmatpush.xpose.msra.mxu0 0.0
    %198 = vmatpush.xpose.msra.mxu0 0.0
    %199 = vmatpush.xpose.msra.mxu0 0.0
    %200 = vmatpush.xpose.msra.mxu0 0.0
    %201 = vmatpush.xpose.msra.mxu0 0.0
    %202 = vmatpush.xpose.msra.mxu0 0.0
    %203 = vmatpush.xpose.msra.mxu0 %v143
    %204 = vmatpush.xpose.msra.mxu0 %v140
    %205 = vmatpush.xpose.msra.mxu0 %v137
    %206 = vmatpush.xpose.msra.mxu0 %v134
    %207 = vmatpush.xpose.msra.mxu0 %v131
    %208 = vmatmul.f32.gmra.mxu0 %v178
    %v209 = vpop.f32.mrf.mxu0
    %v210 = vadd.f32 0.0, %v209
    %211 = vmatmul.f32.gmra.mxu0 %v181
    %v212 = vpop.f32.mrf.mxu0
    %v213 = vadd.f32 0.0, %v212
    %214 = vmatmul.f32.gmra.mxu0 %v184
    %v215 = vpop.f32.mrf.mxu0
    %v216 = vadd.f32 0.0, %v215
    %217 = vmatmul.f32.gmra.mxu0 %v187
    %v218 = vpop.f32.mrf.mxu0
    %v219 = vadd.f32 0.0, %v218
    %220 = vmatmul.f32.gmra.mxu0 %v190
    %v221 = vpop.f32.mrf.mxu0
    %v222 = vadd.f32 0.0, %v221
    %223 = vdwg.mxu0
    %224 = vrot.lane.b32.xlu0 %v163, 96
    %v225 = vpop.permute.xlu0 %224
    %226 = vrot.lane.b32.xlu0 %v166, 96
    %v227 = vpop.permute.xlu0 %226
    %228 = vrot.lane.b32.xlu0 %v169, 96
    %v229 = vpop.permute.xlu0 %228
    %230 = vrot.lane.b32.xlu0 %v172, 96
    %v231 = vpop.permute.xlu0 %230
    %232 = vrot.lane.b32.xlu0 %v175, 96
    %v233 = vpop.permute.xlu0 %232
    %v234 = vsel %vm129, %v225, 0
    %v236 = vsel %vm129, %v227, 0
    %v238 = vsel %vm129, %v229, 0
    %v240 = vsel %vm129, %v231, 0
    %v242 = vsel %vm129, %v233, 0
    %244 = vmatpush.xpose.msra.mxu0 0.0
    %245 = vmatpush.xpose.msra.mxu0 0.0
    %246 = vmatpush.xpose.msra.mxu0 0.0
    %247 = vmatpush.xpose.msra.mxu0 0.0
    %248 = vmatpush.xpose.msra.mxu0 0.0
    %249 = vmatpush.xpose.msra.mxu0 0.0
    %250 = vmatpush.xpose.msra.mxu0 0.0
    %251 = vmatpush.xpose.msra.mxu0 0.0
    %252 = vmatpush.xpose.msra.mxu0 0.0
    %253 = vmatpush.xpose.msra.mxu0 0.0
    %254 = vmatpush.xpose.msra.mxu0 0.0
    %255 = vmatpush.xpose.msra.mxu0 %v143
    %256 = vmatpush.xpose.msra.mxu0 %v140
    %257 = vmatpush.xpose.msra.mxu0 %v137
    %258 = vmatpush.xpose.msra.mxu0 %v134
    %259 = vmatpush.xpose.msra.mxu0 %v131
    %260 = vmatmul.f32.gmra.mxu0 %v234
    %v261 = vpop.f32.mrf.mxu0
    %v262 = vadd.f32 0.0, %v261
    %263 = vmatmul.f32.gmra.mxu0 %v236
    %v264 = vpop.f32.mrf.mxu0
    %v265 = vadd.f32 0.0, %v264
    %266 = vmatmul.f32.gmra.mxu0 %v238
    %v267 = vpop.f32.mrf.mxu0
    %v268 = vadd.f32 0.0, %v267
    %269 = vmatmul.f32.gmra.mxu0 %v240
    %v270 = vpop.f32.mrf.mxu0
    %v271 = vadd.f32 0.0, %v270
    %272 = vmatmul.f32.gmra.mxu0 %v242
    %v273 = vpop.f32.mrf.mxu0
    %v274 = vadd.f32 0.0, %v273
    %275 = vdwg.mxu0
    %vm276 = vcmask 277504
    %v277 = vsel %vm276, %v210, -inf
    %278 = vmax.xlane.f32.xlu0 %v277
    %v279 = vpop.xlane.xlu0 %278
    %v280 = vsel %vm276, %v213, -inf
    %281 = vmax.xlane.f32.xlu0 %v280
    %v282 = vpop.xlane.xlu0 %281
    %v283 = vsel %vm276, %v216, -inf
    %284 = vmax.xlane.f32.xlu0 %v283
    %v285 = vpop.xlane.xlu0 %284
    %v286 = vsel %vm276, %v219, -inf
    %287 = vmax.xlane.f32.xlu0 %v286
    %v288 = vpop.xlane.xlu0 %287
    %vm289 = vcmask 271360
    %v290 = vsel %vm289, %v222, -inf
    %291 = vmax.xlane.f32.xlu0 %v290
    %v292 = vpop.xlane.xlu0 %291
    %v293 = vsub.f32 %v210, %v279
    %v294 = vsub.f32 %v213, %v282
    %v295 = vsub.f32 %v216, %v285
    %v296 = vsub.f32 %v219, %v288
    %v297 = vsub.f32 %v222, %v292
    %v298 = vmul.f32 %v293, 1.442695
    %v299 = vpow.pop %v298
    %v300 = vmul.f32 %v294, 1.442695
    %v301 = vpow.pop %v300
    %v302 = vmul.f32 %v295, 1.442695
    %v303 = vpow.pop %v302
    %v304 = vmul.f32 %v296, 1.442695
    %v305 = vpow.pop %v304
    %v306 = vmul.f32 %v297, 1.442695
    %v307 = vpow.pop %v306
    %v308 = vmul.f32 %v299, %v107
    %v309 = vmul.f32 %v301, %v108
    %v310 = vmul.f32 %v303, %v109
    %v311 = vmul.f32 %v305, %v110
    %v312 = vmul.f32 %v307, %v111
    %v313 = vsel %vm276, %v308, 0.0
    %314 = vadd.xlane.f32.xlu0 %v313
    %v315 = vpop.xlane.xlu0 %314
    %v316 = vsel %vm276, %v309, 0.0
    %317 = vadd.xlane.f32.xlu0 %v316
    %v318 = vpop.xlane.xlu0 %317
    %v319 = vsel %vm276, %v310, 0.0
    %320 = vadd.xlane.f32.xlu0 %v319
    %v321 = vpop.xlane.xlu0 %320
    %v322 = vsel %vm276, %v311, 0.0
    %323 = vadd.xlane.f32.xlu0 %v322
    %v324 = vpop.xlane.xlu0 %323
    %v325 = vsel %vm289, %v312, 0.0
    %326 = vadd.xlane.f32.xlu0 %v325
    %v327 = vpop.xlane.xlu0 %326
    %v328 = vrcp.pop %v315
    %v329 = vmul.f32 %v315, %v328
    %v330 = vsub.f32 1.0, %v329
    %v331 = vmul.f32 %v328, %v330
    %v332 = vadd.f32 %v328, %v331
    %vm333 = vweird.f32 %v315
    %vm334 = vweird.f32 %v328
    %vm335 = vmor %vm333, %vm334
    %v336 = vsel %vm335, %v328, %v332
    %v337 = vand.u32 2147483647, %v315
    %vm338 = vcmp.eq.f32.partialorder %v337, 8.507059e+37
    %v339 = vand.u32 %v315, 2147483648
    %v340 = vor.u32 1.1754944e-38, %v339
    %v341 = vsel %vm338, %v340, %v336
    %v342 = vmul.f32 %v308, %v341
    %v343 = vrcp.pop %v318
    %v344 = vmul.f32 %v318, %v343
    %v345 = vsub.f32 1.0, %v344
    %v346 = vmul.f32 %v343, %v345
    %v347 = vadd.f32 %v343, %v346
    %vm348 = vweird.f32 %v318
    %vm349 = vweird.f32 %v343
    %vm350 = vmor %vm348, %vm349
    %v351 = vsel %vm350, %v343, %v347
    %v352 = vand.u32 2147483647, %v318
    %vm353 = vcmp.eq.f32.partialorder %v352, 8.507059e+37
    %v354 = vand.u32 %v318, 2147483648
    %v355 = vor.u32 1.1754944e-38, %v354
    %v356 = vsel %vm353, %v355, %v351
    %v357 = vmul.f32 %v309, %v356
    %v358 = vrcp.pop %v321
    %v359 = vmul.f32 %v321, %v358
    %v360 = vsub.f32 1.0, %v359
    %v361 = vmul.f32 %v358, %v360
    %v362 = vadd.f32 %v358, %v361
    %vm363 = vweird.f32 %v321
    %vm364 = vweird.f32 %v358
    %vm365 = vmor %vm363, %vm364
    %v366 = vsel %vm365, %v358, %v362
    %v367 = vand.u32 2147483647, %v321
    %vm368 = vcmp.eq.f32.partialorder %v367, 8.507059e+37
    %v369 = vand.u32 %v321, 2147483648
    %v370 = vor.u32 1.1754944e-38, %v369
    %v371 = vsel %vm368, %v370, %v366
    %v372 = vmul.f32 %v310, %v371
    %v373 = vrcp.pop %v324
    %v374 = vmul.f32 %v324, %v373
    %v375 = vsub.f32 1.0, %v374
    %v376 = vmul.f32 %v373, %v375
    %v377 = vadd.f32 %v373, %v376
    %vm378 = vweird.f32 %v324
    %vm379 = vweird.f32 %v373
    %vm380 = vmor %vm378, %vm379
    %v381 = vsel %vm380, %v373, %v377
    %v382 = vand.u32 2147483647, %v324
    %vm383 = vcmp.eq.f32.partialorder %v382, 8.507059e+37
    %v384 = vand.u32 %v324, 2147483648
    %v385 = vor.u32 1.1754944e-38, %v384
    %v386 = vsel %vm383, %v385, %v381
    %v387 = vmul.f32 %v311, %v386
    %v388 = vrcp.pop %v327
    %v389 = vmul.f32 %v327, %v388
    %v390 = vsub.f32 1.0, %v389
    %v391 = vmul.f32 %v388, %v390
    %v392 = vadd.f32 %v388, %v391
    %vm393 = vweird.f32 %v327
    %vm394 = vweird.f32 %v388
    %vm395 = vmor %vm393, %vm394
    %v396 = vsel %vm395, %v388, %v392
    %v397 = vand.u32 2147483647, %v327
    %vm398 = vcmp.eq.f32.partialorder %v397, 8.507059e+37
    %v399 = vand.u32 %v327, 2147483648
    %v400 = vor.u32 1.1754944e-38, %v399
    %v401 = vsel %vm398, %v400, %v396
    %v402 = vmul.f32 %v312, %v401
    %v404 = vsel %vm276, %v342, 0
    %v407 = vsel %vm276, %v357, 0
    %v410 = vsel %vm276, %v372, 0
    %v413 = vsel %vm276, %v387, 0
    %v416 = vsel %vm276, %v402, 0
    %vm418 = vcmask 1041408
    %v420 = vsel %vm418, %v274, 0
    %422 = vmatpush.msra.mxu0 0.0
    %423 = vmatpush.msra.mxu0 0.0
    %424 = vmatpush.msra.mxu0 0.0
    %425 = vmatpush.msra.mxu0 0.0
    %426 = vmatpush.msra.mxu0 0.0
    %427 = vmatpush.msra.mxu0 0.0
    %428 = vmatpush.msra.mxu0 0.0
    %429 = vmatpush.msra.mxu0 0.0
    %430 = vmatpush.msra.mxu0 0.0
    %431 = vmatpush.msra.mxu0 0.0
    %432 = vmatpush.msra.mxu0 0.0
    %433 = vmatpush.msra.mxu0 %v420
    %434 = vmatpush.msra.mxu0 %v271
    %435 = vmatpush.msra.mxu0 %v268
    %436 = vmatpush.msra.mxu0 %v265
    %437 = vmatpush.msra.mxu0 %v262
    %438 = vmatmul.f32.gmra.mxu0 %v404
    %v439 = vpop.f32.mrf.mxu0
    %v440 = vadd.f32 0.0, %v439
    %441 = vmatmul.f32.gmra.mxu0 %v407
    %v442 = vpop.f32.mrf.mxu0
    %v443 = vadd.f32 0.0, %v442
    %444 = vmatmul.f32.gmra.mxu0 %v410
    %v445 = vpop.f32.mrf.mxu0
    %v446 = vadd.f32 0.0, %v445
    %447 = vmatmul.f32.gmra.mxu0 %v413
    %v448 = vpop.f32.mrf.mxu0
    %v449 = vadd.f32 0.0, %v448
    %450 = vmatmul.f32.gmra.mxu0 %v416
    %v451 = vpop.f32.mrf.mxu0
    %v452 = vadd.f32 0.0, %v451
    %453 = vdwg.mxu0
    %v454 = vsel %vm276, %v440, -inf
    %455 = vmax.xlane.f32.xlu0 %v454
    %v456 = vpop.xlane.xlu0 %455
    %v457 = vsel %vm276, %v443, -inf
    %458 = vmax.xlane.f32.xlu0 %v457
    %v459 = vpop.xlane.xlu0 %458
    %v460 = vsel %vm276, %v446, -inf
    %461 = vmax.xlane.f32.xlu0 %v460
    %v462 = vpop.xlane.xlu0 %461
    %v463 = vsel %vm276, %v449, -inf
    %464 = vmax.xlane.f32.xlu0 %v463
    %v465 = vpop.xlane.xlu0 %464
    %v466 = vsel %vm289, %v452, -inf
    %467 = vmax.xlane.f32.xlu0 %v466
    %v468 = vpop.xlane.xlu0 %467
    %v469 = vsub.f32 %v440, %v456
    %v470 = vsub.f32 %v443, %v459
    %v471 = vsub.f32 %v446, %v462
    %v472 = vsub.f32 %v449, %v465
    %v473 = vsub.f32 %v452, %v468
    %v474 = vmul.f32 %v469, 1.442695
    %v475 = vpow.pop %v474
    %v476 = vmul.f32 %v470, 1.442695
    %v477 = vpow.pop %v476
    %v478 = vmul.f32 %v471, 1.442695
    %v479 = vpow.pop %v478
    %v480 = vmul.f32 %v472, 1.442695
    %v481 = vpow.pop %v480
    %v482 = vmul.f32 %v473, 1.442695
    %v483 = vpow.pop %v482
    %v484 = vmul.f32 %v475, %v107
    %v485 = vmul.f32 %v477, %v108
    %v486 = vmul.f32 %v479, %v109
    %v487 = vmul.f32 %v481, %v110
    %v488 = vmul.f32 %v483, %v111
    %v489 = vsel %vm276, %v484, 0.0
    %490 = vadd.xlane.f32.xlu0 %v489
    %v491 = vpop.xlane.xlu0 %490
    %v492 = vsel %vm276, %v485, 0.0
    %493 = vadd.xlane.f32.xlu0 %v492
    %v494 = vpop.xlane.xlu0 %493
    %v495 = vsel %vm276, %v486, 0.0
    %496 = vadd.xlane.f32.xlu0 %v495
    %v497 = vpop.xlane.xlu0 %496
    %v498 = vsel %vm276, %v487, 0.0
    %499 = vadd.xlane.f32.xlu0 %v498
    %v500 = vpop.xlane.xlu0 %499
    %v501 = vsel %vm289, %v488, 0.0
    %502 = vadd.xlane.f32.xlu0 %v501
    %v503 = vpop.xlane.xlu0 %502
    %v504 = vrcp.pop %v491
    %v505 = vmul.f32 %v491, %v504
    %v506 = vsub.f32 1.0, %v505
    %v507 = vmul.f32 %v504, %v506
    %v508 = vadd.f32 %v504, %v507
    %vm509 = vweird.f32 %v491
    %vm510 = vweird.f32 %v504
    %vm511 = vmor %vm509, %vm510
    %v512 = vsel %vm511, %v504, %v508
    %v513 = vand.u32 2147483647, %v491
    %vm514 = vcmp.eq.f32.partialorder %v513, 8.507059e+37
    %v515 = vand.u32 %v491, 2147483648
    %v516 = vor.u32 1.1754944e-38, %v515
    %v517 = vsel %vm514, %v516, %v512
    %v518 = vmul.f32 %v484, %v517
    %v519 = vrcp.pop %v494
    %v520 = vmul.f32 %v494, %v519
    %v521 = vsub.f32 1.0, %v520
    %v522 = vmul.f32 %v519, %v521
    %v523 = vadd.f32 %v519, %v522
    %vm524 = vweird.f32 %v494
    %vm525 = vweird.f32 %v519
    %vm526 = vmor %vm524, %vm525
    %v527 = vsel %vm526, %v519, %v523
    %v528 = vand.u32 2147483647, %v494
    %vm529 = vcmp.eq.f32.partialorder %v528, 8.507059e+37
    %v530 = vand.u32 %v494, 2147483648
    %v531 = vor.u32 1.1754944e-38, %v530
    %v532 = vsel %vm529, %v531, %v527
    %v533 = vmul.f32 %v485, %v532
    %v534 = vrcp.pop %v497
    %v535 = vmul.f32 %v497, %v534
    %v536 = vsub.f32 1.0, %v535
    %v537 = vmul.f32 %v534, %v536
    %v538 = vadd.f32 %v534, %v537
    %vm539 = vweird.f32 %v497
    %vm540 = vweird.f32 %v534
    %vm541 = vmor %vm539, %vm540
    %v542 = vsel %vm541, %v534, %v538
    %v543 = vand.u32 2147483647, %v497
    %vm544 = vcmp.eq.f32.partialorder %v543, 8.507059e+37
    %v545 = vand.u32 %v497, 2147483648
    %v546 = vor.u32 1.1754944e-38, %v545
    %v547 = vsel %vm544, %v546, %v542
    %v548 = vmul.f32 %v486, %v547
    %v549 = vrcp.pop %v500
    %v550 = vmul.f32 %v500, %v549
    %v551 = vsub.f32 1.0, %v550
    %v552 = vmul.f32 %v549, %v551
    %v553 = vadd.f32 %v549, %v552
    %vm554 = vweird.f32 %v500
    %vm555 = vweird.f32 %v549
    %vm556 = vmor %vm554, %vm555
    %v557 = vsel %vm556, %v549, %v553
    %v558 = vand.u32 2147483647, %v500
    %vm559 = vcmp.eq.f32.partialorder %v558, 8.507059e+37
    %v560 = vand.u32 %v500, 2147483648
    %v561 = vor.u32 1.1754944e-38, %v560
    %v562 = vsel %vm559, %v561, %v557
    %v563 = vmul.f32 %v487, %v562
    %v564 = vrcp.pop %v503
    %v565 = vmul.f32 %v503, %v564
    %v566 = vsub.f32 1.0, %v565
    %v567 = vmul.f32 %v564, %v566
    %v568 = vadd.f32 %v564, %v567
    %vm569 = vweird.f32 %v503
    %vm570 = vweird.f32 %v564
    %vm571 = vmor %vm569, %vm570
    %v572 = vsel %vm571, %v564, %v568
    %v573 = vand.u32 2147483647, %v503
    %vm574 = vcmp.eq.f32.partialorder %v573, 8.507059e+37
    %v575 = vand.u32 %v503, 2147483648
    %v576 = vor.u32 1.1754944e-38, %v575
    %v577 = vsel %vm574, %v576, %v572
    %v578 = vmul.f32 %v488, %v577
    %v580 = vsel %vm276, %v518, 0
    %v583 = vsel %vm276, %v533, 0
    %v586 = vsel %vm276, %v548, 0
    %v589 = vsel %vm276, %v563, 0
    %v592 = vsel %vm276, %v578, 0
    %594 = vmatpush.msra.mxu0 0.0
    %595 = vmatpush.msra.mxu0 0.0
    %596 = vmatpush.msra.mxu0 0.0
    %597 = vmatpush.msra.mxu0 0.0
    %598 = vmatpush.msra.mxu0 0.0
    %599 = vmatpush.msra.mxu0 0.0
    %600 = vmatpush.msra.mxu0 0.0
    %601 = vmatpush.msra.mxu0 0.0
    %602 = vmatpush.msra.mxu0 0.0
    %603 = vmatpush.msra.mxu0 0.0
    %604 = vmatpush.msra.mxu0 0.0
    %605 = vmatpush.msra.mxu0 %v420
    %606 = vmatpush.msra.mxu0 %v271
    %607 = vmatpush.msra.mxu0 %v268
    %608 = vmatpush.msra.mxu0 %v265
    %609 = vmatpush.msra.mxu0 %v262
    %610 = vmatmul.f32.gmra.mxu0 %v580
    %v611 = vpop.f32.mrf.mxu0
    %v612 = vadd.f32 0.0, %v611
    %613 = vmatmul.f32.gmra.mxu0 %v583
    %v614 = vpop.f32.mrf.mxu0
    %v615 = vadd.f32 0.0, %v614
    %616 = vmatmul.f32.gmra.mxu0 %v586
    %v617 = vpop.f32.mrf.mxu0
    %v618 = vadd.f32 0.0, %v617
    %619 = vmatmul.f32.gmra.mxu0 %v589
    %v620 = vpop.f32.mrf.mxu0
    %v621 = vadd.f32 0.0, %v620
    %622 = vmatmul.f32.gmra.mxu0 %v592
    %v623 = vpop.f32.mrf.mxu0
    %v624 = vadd.f32 0.0, %v623
    %625 = vdwg.mxu0
    %v626 = vsel %vm276, %v612, -inf
    %627 = vmax.xlane.f32.xlu0 %v626
    %v628 = vpop.xlane.xlu0 %627
    %v629 = vsel %vm276, %v615, -inf
    %630 = vmax.xlane.f32.xlu0 %v629
    %v631 = vpop.xlane.xlu0 %630
    %v632 = vsel %vm276, %v618, -inf
    %633 = vmax.xlane.f32.xlu0 %v632
    %v634 = vpop.xlane.xlu0 %633
    %v635 = vsel %vm276, %v621, -inf
    %636 = vmax.xlane.f32.xlu0 %v635
    %v637 = vpop.xlane.xlu0 %636
    %v638 = vsel %vm289, %v624, -inf
    %639 = vmax.xlane.f32.xlu0 %v638
    %v640 = vpop.xlane.xlu0 %639
    %v641 = vsub.f32 %v612, %v628
    %v642 = vsub.f32 %v615, %v631
    %v643 = vsub.f32 %v618, %v634
    %v644 = vsub.f32 %v621, %v637
    %v645 = vsub.f32 %v624, %v640
    %v646 = vmul.f32 %v641, 1.442695
    %v647 = vpow.pop %v646
    %v648 = vmul.f32 %v642, 1.442695
    %v649 = vpow.pop %v648
    %v650 = vmul.f32 %v643, 1.442695
    %v651 = vpow.pop %v650
    %v652 = vmul.f32 %v644, 1.442695
    %v653 = vpow.pop %v652
    %v654 = vmul.f32 %v645, 1.442695
    %v655 = vpow.pop %v654
    %v656 = vmul.f32 %v647, %v107
    %v657 = vmul.f32 %v649, %v108
    %v658 = vmul.f32 %v651, %v109
    %v659 = vmul.f32 %v653, %v110
    %v660 = vmul.f32 %v655, %v111
    %v661 = vsel %vm276, %v656, 0.0
    %662 = vadd.xlane.f32.xlu0 %v661
    %v663 = vpop.xlane.xlu0 %662
    %v664 = vsel %vm276, %v657, 0.0
    %665 = vadd.xlane.f32.xlu0 %v664
    %v666 = vpop.xlane.xlu0 %665
    %v667 = vsel %vm276, %v658, 0.0
    %668 = vadd.xlane.f32.xlu0 %v667
    %v669 = vpop.xlane.xlu0 %668
    %v670 = vsel %vm276, %v659, 0.0
    %671 = vadd.xlane.f32.xlu0 %v670
    %v672 = vpop.xlane.xlu0 %671
    %v673 = vsel %vm289, %v660, 0.0
    %674 = vadd.xlane.f32.xlu0 %v673
    %v675 = vpop.xlane.xlu0 %674
    %v676 = vrcp.pop %v663
    %v677 = vmul.f32 %v663, %v676
    %v678 = vsub.f32 1.0, %v677
    %v679 = vmul.f32 %v676, %v678
    %v680 = vadd.f32 %v676, %v679
    %vm681 = vweird.f32 %v663
    %vm682 = vweird.f32 %v676
    %vm683 = vmor %vm681, %vm682
    %v684 = vsel %vm683, %v676, %v680
    %v685 = vand.u32 2147483647, %v663
    %vm686 = vcmp.eq.f32.partialorder %v685, 8.507059e+37
    %v687 = vand.u32 %v663, 2147483648
    %v688 = vor.u32 1.1754944e-38, %v687
    %v689 = vsel %vm686, %v688, %v684
    %v690 = vmul.f32 %v656, %v689
    %v691 = vrcp.pop %v666
    %v692 = vmul.f32 %v666, %v691
    %v693 = vsub.f32 1.0, %v692
    %v694 = vmul.f32 %v691, %v693
    %v695 = vadd.f32 %v691, %v694
    %vm696 = vweird.f32 %v666
    %vm697 = vweird.f32 %v691
    %vm698 = vmor %vm696, %vm697
    %v699 = vsel %vm698, %v691, %v695
    %v700 = vand.u32 2147483647, %v666
    %vm701 = vcmp.eq.f32.partialorder %v700, 8.507059e+37
    %v702 = vand.u32 %v666, 2147483648
    %v703 = vor.u32 1.1754944e-38, %v702
    %v704 = vsel %vm701, %v703, %v699
    %v705 = vmul.f32 %v657, %v704
    %v706 = vrcp.pop %v669
    %v707 = vmul.f32 %v669, %v706
    %v708 = vsub.f32 1.0, %v707
    %v709 = vmul.f32 %v706, %v708
    %v710 = vadd.f32 %v706, %v709
    %vm711 = vweird.f32 %v669
    %vm712 = vweird.f32 %v706
    %vm713 = vmor %vm711, %vm712
    %v714 = vsel %vm713, %v706, %v710
    %v715 = vand.u32 2147483647, %v669
    %vm716 = vcmp.eq.f32.partialorder %v715, 8.507059e+37
    %v717 = vand.u32 %v669, 2147483648
    %v718 = vor.u32 1.1754944e-38, %v717
    %v719 = vsel %vm716, %v718, %v714
    %v720 = vmul.f32 %v658, %v719
    %v721 = vrcp.pop %v672
    %v722 = vmul.f32 %v672, %v721
    %v723 = vsub.f32 1.0, %v722
    %v724 = vmul.f32 %v721, %v723
    %v725 = vadd.f32 %v721, %v724
    %vm726 = vweird.f32 %v672
    %vm727 = vweird.f32 %v721
    %vm728 = vmor %vm726, %vm727
    %v729 = vsel %vm728, %v721, %v725
    %v730 = vand.u32 2147483647, %v672
    %vm731 = vcmp.eq.f32.partialorder %v730, 8.507059e+37
    %v732 = vand.u32 %v672, 2147483648
    %v733 = vor.u32 1.1754944e-38, %v732
    %v734 = vsel %vm731, %v733, %v729
    %v735 = vmul.f32 %v659, %v734
    %v736 = vrcp.pop %v675
    %v737 = vmul.f32 %v675, %v736
    %v738 = vsub.f32 1.0, %v737
    %v739 = vmul.f32 %v736, %v738
    %v740 = vadd.f32 %v736, %v739
    %vm741 = vweird.f32 %v675
    %vm742 = vweird.f32 %v736
    %vm743 = vmor %vm741, %vm742
    %v744 = vsel %vm743, %v736, %v740
    %v745 = vand.u32 2147483647, %v675
    %vm746 = vcmp.eq.f32.partialorder %v745, 8.507059e+37
    %v747 = vand.u32 %v675, 2147483648
    %v748 = vor.u32 1.1754944e-38, %v747
    %v749 = vsel %vm746, %v748, %v744
    %v750 = vmul.f32 %v660, %v749
    %v752 = vsel %vm276, %v690, 0
    %v755 = vsel %vm276, %v705, 0
    %v758 = vsel %vm276, %v720, 0
    %v761 = vsel %vm276, %v735, 0
    %v764 = vsel %vm276, %v750, 0
    %766 = vmatpush.msra.mxu0 0.0
    %767 = vmatpush.msra.mxu0 0.0
    %768 = vmatpush.msra.mxu0 0.0
    %769 = vmatpush.msra.mxu0 0.0
    %770 = vmatpush.msra.mxu0 0.0
    %771 = vmatpush.msra.mxu0 0.0
    %772 = vmatpush.msra.mxu0 0.0
    %773 = vmatpush.msra.mxu0 0.0
    %774 = vmatpush.msra.mxu0 0.0
    %775 = vmatpush.msra.mxu0 0.0
    %776 = vmatpush.msra.mxu0 0.0
    %777 = vmatpush.msra.mxu0 %v420
    %778 = vmatpush.msra.mxu0 %v271
    %779 = vmatpush.msra.mxu0 %v268
    %780 = vmatpush.msra.mxu0 %v265
    %781 = vmatpush.msra.mxu0 %v262
    %782 = vmatmul.f32.gmra.mxu0 %v752
    %v783 = vpop.f32.mrf.mxu0
    %v784 = vadd.f32 0.0, %v783
    %785 = vmatmul.f32.gmra.mxu0 %v755
    %v786 = vpop.f32.mrf.mxu0
    %v787 = vadd.f32 0.0, %v786
    %788 = vmatmul.f32.gmra.mxu0 %v758
    %v789 = vpop.f32.mrf.mxu0
    %v790 = vadd.f32 0.0, %v789
    %791 = vmatmul.f32.gmra.mxu0 %v761
    %v792 = vpop.f32.mrf.mxu0
    %v793 = vadd.f32 0.0, %v792
    %794 = vmatmul.f32.gmra.mxu0 %v764
    %v795 = vpop.f32.mrf.mxu0
    %v796 = vadd.f32 0.0, %v795
    %797 = vdwg.mxu0
    %v798 = vsel %vm276, %v784, -inf
    %799 = vmax.xlane.f32.xlu0 %v798
    %v800 = vpop.xlane.xlu0 %799
    %v801 = vsel %vm276, %v787, -inf
    %802 = vmax.xlane.f32.xlu0 %v801
    %v803 = vpop.xlane.xlu0 %802
    %v804 = vsel %vm276, %v790, -inf
    %805 = vmax.xlane.f32.xlu0 %v804
    %v806 = vpop.xlane.xlu0 %805
    %v807 = vsel %vm276, %v793, -inf
    %808 = vmax.xlane.f32.xlu0 %v807
    %v809 = vpop.xlane.xlu0 %808
    %v810 = vsel %vm289, %v796, -inf
    %811 = vmax.xlane.f32.xlu0 %v810
    %v812 = vpop.xlane.xlu0 %811
    %v813 = vsub.f32 %v784, %v800
    %v814 = vsub.f32 %v787, %v803
    %v815 = vsub.f32 %v790, %v806
    %v816 = vsub.f32 %v793, %v809
    %v817 = vsub.f32 %v796, %v812
    %v818 = vmul.f32 %v813, 1.442695
    %v819 = vpow.pop %v818
    %v820 = vmul.f32 %v814, 1.442695
    %v821 = vpow.pop %v820
    %v822 = vmul.f32 %v815, 1.442695
    %v823 = vpow.pop %v822
    %v824 = vmul.f32 %v816, 1.442695
    %v825 = vpow.pop %v824
    %v826 = vmul.f32 %v817, 1.442695
    %v827 = vpow.pop %v826
    %v828 = vmul.f32 %v819, %v107
    %v829 = vmul.f32 %v821, %v108
    %v830 = vmul.f32 %v823, %v109
    %v831 = vmul.f32 %v825, %v110
    %v832 = vmul.f32 %v827, %v111
    %v833 = vsel %vm276, %v828, 0.0
    %834 = vadd.xlane.f32.xlu0 %v833
    %v835 = vpop.xlane.xlu0 %834
    %v836 = vsel %vm276, %v829, 0.0
    %837 = vadd.xlane.f32.xlu0 %v836
    %v838 = vpop.xlane.xlu0 %837
    %v839 = vsel %vm276, %v830, 0.0
    %840 = vadd.xlane.f32.xlu0 %v839
    %v841 = vpop.xlane.xlu0 %840
    %v842 = vsel %vm276, %v831, 0.0
    %843 = vadd.xlane.f32.xlu0 %v842
    %v844 = vpop.xlane.xlu0 %843
    %v845 = vsel %vm289, %v832, 0.0
    %846 = vadd.xlane.f32.xlu0 %v845
    %v847 = vpop.xlane.xlu0 %846
    %v848 = vrcp.pop %v835
    %v849 = vmul.f32 %v835, %v848
    %v850 = vsub.f32 1.0, %v849
    %v851 = vmul.f32 %v848, %v850
    %v852 = vadd.f32 %v848, %v851
    %vm853 = vweird.f32 %v835
    %vm854 = vweird.f32 %v848
    %vm855 = vmor %vm853, %vm854
    %v856 = vsel %vm855, %v848, %v852
    %v857 = vand.u32 2147483647, %v835
    %vm858 = vcmp.eq.f32.partialorder %v857, 8.507059e+37
    %v859 = vand.u32 %v835, 2147483648
    %v860 = vor.u32 1.1754944e-38, %v859
    %v861 = vsel %vm858, %v860, %v856
    %v862 = vmul.f32 %v828, %v861
    %v863 = vrcp.pop %v838
    %v864 = vmul.f32 %v838, %v863
    %v865 = vsub.f32 1.0, %v864
    %v866 = vmul.f32 %v863, %v865
    %v867 = vadd.f32 %v863, %v866
    %vm868 = vweird.f32 %v838
    %vm869 = vweird.f32 %v863
    %vm870 = vmor %vm868, %vm869
    %v871 = vsel %vm870, %v863, %v867
    %v872 = vand.u32 2147483647, %v838
    %vm873 = vcmp.eq.f32.partialorder %v872, 8.507059e+37
    %v874 = vand.u32 %v838, 2147483648
    %v875 = vor.u32 1.1754944e-38, %v874
    %v876 = vsel %vm873, %v875, %v871
    %v877 = vmul.f32 %v829, %v876
    %v878 = vrcp.pop %v841
    %v879 = vmul.f32 %v841, %v878
    %v880 = vsub.f32 1.0, %v879
    %v881 = vmul.f32 %v878, %v880
    %v882 = vadd.f32 %v878, %v881
    %vm883 = vweird.f32 %v841
    %vm884 = vweird.f32 %v878
    %vm885 = vmor %vm883, %vm884
    %v886 = vsel %vm885, %v878, %v882
    %v887 = vand.u32 2147483647, %v841
    %vm888 = vcmp.eq.f32.partialorder %v887, 8.507059e+37
    %v889 = vand.u32 %v841, 2147483648
    %v890 = vor.u32 1.1754944e-38, %v889
    %v891 = vsel %vm888, %v890, %v886
    %v892 = vmul.f32 %v830, %v891
    %v893 = vrcp.pop %v844
    %v894 = vmul.f32 %v844, %v893
    %v895 = vsub.f32 1.0, %v894
    %v896 = vmul.f32 %v893, %v895
    %v897 = vadd.f32 %v893, %v896
    %vm898 = vweird.f32 %v844
    %vm899 = vweird.f32 %v893
    %vm900 = vmor %vm898, %vm899
    %v901 = vsel %vm900, %v893, %v897
    %v902 = vand.u32 2147483647, %v844
    %vm903 = vcmp.eq.f32.partialorder %v902, 8.507059e+37
    %v904 = vand.u32 %v844, 2147483648
    %v905 = vor.u32 1.1754944e-38, %v904
    %v906 = vsel %vm903, %v905, %v901
    %v907 = vmul.f32 %v831, %v906
    %v908 = vrcp.pop %v847
    %v909 = vmul.f32 %v847, %v908
    %v910 = vsub.f32 1.0, %v909
    %v911 = vmul.f32 %v908, %v910
    %v912 = vadd.f32 %v908, %v911
    %vm913 = vweird.f32 %v847
    %vm914 = vweird.f32 %v908
    %vm915 = vmor %vm913, %vm914
    %v916 = vsel %vm915, %v908, %v912
    %v917 = vand.u32 2147483647, %v847
    %vm918 = vcmp.eq.f32.partialorder %v917, 8.507059e+37
    %v919 = vand.u32 %v847, 2147483648
    %v920 = vor.u32 1.1754944e-38, %v919
    %v921 = vsel %vm918, %v920, %v916
    %v922 = vmul.f32 %v832, %v921
    %v924 = vsel %vm276, %v862, 0
    %v927 = vsel %vm276, %v877, 0
    %v930 = vsel %vm276, %v892, 0
    %v933 = vsel %vm276, %v907, 0
    %v936 = vsel %vm276, %v922, 0
    %938 = vmatpush.msra.mxu0 0.0
    %939 = vmatpush.msra.mxu0 0.0
    %940 = vmatpush.msra.mxu0 0.0
    %941 = vmatpush.msra.mxu0 0.0
    %942 = vmatpush.msra.mxu0 0.0
    %943 = vmatpush.msra.mxu0 0.0
    %944 = vmatpush.msra.mxu0 0.0
    %945 = vmatpush.msra.mxu0 0.0
    %946 = vmatpush.msra.mxu0 0.0
    %947 = vmatpush.msra.mxu0 0.0
    %948 = vmatpush.msra.mxu0 0.0
    %949 = vmatpush.msra.mxu0 %v420
    %950 = vmatpush.msra.mxu0 %v271
    %951 = vmatpush.msra.mxu0 %v268
    %952 = vmatpush.msra.mxu0 %v265
    %953 = vmatpush.msra.mxu0 %v262
    %954 = vmatmul.f32.gmra.mxu0 %v924
    %v955 = vpop.f32.mrf.mxu0
    %v956 = vadd.f32 0.0, %v955
    %957 = vmatmul.f32.gmra.mxu0 %v927
    %v958 = vpop.f32.mrf.mxu0
    %v959 = vadd.f32 0.0, %v958
    %960 = vmatmul.f32.gmra.mxu0 %v930
    %v961 = vpop.f32.mrf.mxu0
    %v962 = vadd.f32 0.0, %v961
    %963 = vmatmul.f32.gmra.mxu0 %v933
    %v964 = vpop.f32.mrf.mxu0
    %v965 = vadd.f32 0.0, %v964
    %966 = vmatmul.f32.gmra.mxu0 %v936
    %v967 = vpop.f32.mrf.mxu0
    %v968 = vadd.f32 0.0, %v967
    %969 = vdwg.mxu0
    %v970 = vsel %vm276, %v956, -inf
    %971 = vmax.xlane.f32.xlu0 %v970
    %v972 = vpop.xlane.xlu0 %971
    %v973 = vsel %vm276, %v959, -inf
    %974 = vmax.xlane.f32.xlu0 %v973
    %v975 = vpop.xlane.xlu0 %974
    %v976 = vsel %vm276, %v962, -inf
    %977 = vmax.xlane.f32.xlu0 %v976
    %v978 = vpop.xlane.xlu0 %977
    %v979 = vsel %vm276, %v965, -inf
    %980 = vmax.xlane.f32.xlu0 %v979
    %v981 = vpop.xlane.xlu0 %980
    %v982 = vsel %vm289, %v968, -inf
    %983 = vmax.xlane.f32.xlu0 %v982
    %v984 = vpop.xlane.xlu0 %983
    %v985 = vsub.f32 %v956, %v972
    %v986 = vsub.f32 %v959, %v975
    %v987 = vsub.f32 %v962, %v978
    %v988 = vsub.f32 %v965, %v981
    %v989 = vsub.f32 %v968, %v984
    %v990 = vmul.f32 %v985, 1.442695
    %v991 = vpow.pop %v990
    %v992 = vmul.f32 %v986, 1.442695
    %v993 = vpow.pop %v992
    %v994 = vmul.f32 %v987, 1.442695
    %v995 = vpow.pop %v994
    %v996 = vmul.f32 %v988, 1.442695
    %v997 = vpow.pop %v996
    %v998 = vmul.f32 %v989, 1.442695
    %v999 = vpow.pop %v998
    %v1000 = vmul.f32 %v991, %v107
    %v1001 = vmul.f32 %v993, %v108
    %v1002 = vmul.f32 %v995, %v109
    %v1003 = vmul.f32 %v997, %v110
    %v1004 = vmul.f32 %v999, %v111
    %v1005 = vsel %vm276, %v1000, 0.0
    %1006 = vadd.xlane.f32.xlu0 %v1005
    %v1007 = vpop.xlane.xlu0 %1006
    %v1008 = vsel %vm276, %v1001, 0.0
    %1009 = vadd.xlane.f32.xlu0 %v1008
    %v1010 = vpop.xlane.xlu0 %1009
    %v1011 = vsel %vm276, %v1002, 0.0
    %1012 = vadd.xlane.f32.xlu0 %v1011
    %v1013 = vpop.xlane.xlu0 %1012
    %v1014 = vsel %vm276, %v1003, 0.0
    %1015 = vadd.xlane.f32.xlu0 %v1014
    %v1016 = vpop.xlane.xlu0 %1015
    %v1017 = vsel %vm289, %v1004, 0.0
    %1018 = vadd.xlane.f32.xlu0 %v1017
    %v1019 = vpop.xlane.xlu0 %1018
    %v1020 = vrcp.pop %v1007
    %v1021 = vmul.f32 %v1007, %v1020
    %v1022 = vsub.f32 1.0, %v1021
    %v1023 = vmul.f32 %v1020, %v1022
    %v1024 = vadd.f32 %v1020, %v1023
    %vm1025 = vweird.f32 %v1007
    %vm1026 = vweird.f32 %v1020
    %vm1027 = vmor %vm1025, %vm1026
    %v1028 = vsel %vm1027, %v1020, %v1024
    %v1029 = vand.u32 2147483647, %v1007
    %vm1030 = vcmp.eq.f32.partialorder %v1029, 8.507059e+37
    %v1031 = vand.u32 %v1007, 2147483648
    %v1032 = vor.u32 1.1754944e-38, %v1031
    %v1033 = vsel %vm1030, %v1032, %v1028
    %v1034 = vmul.f32 %v1000, %v1033
    %v1035 = vrcp.pop %v1010
    %v1036 = vmul.f32 %v1010, %v1035
    %v1037 = vsub.f32 1.0, %v1036
    %v1038 = vmul.f32 %v1035, %v1037
    %v1039 = vadd.f32 %v1035, %v1038
    %vm1040 = vweird.f32 %v1010
    %vm1041 = vweird.f32 %v1035
    %vm1042 = vmor %vm1040, %vm1041
    %v1043 = vsel %vm1042, %v1035, %v1039
    %v1044 = vand.u32 2147483647, %v1010
    %vm1045 = vcmp.eq.f32.partialorder %v1044, 8.507059e+37
    %v1046 = vand.u32 %v1010, 2147483648
    %v1047 = vor.u32 1.1754944e-38, %v1046
    %v1048 = vsel %vm1045, %v1047, %v1043
    %v1049 = vmul.f32 %v1001, %v1048
    %v1050 = vrcp.pop %v1013
    %v1051 = vmul.f32 %v1013, %v1050
    %v1052 = vsub.f32 1.0, %v1051
    %v1053 = vmul.f32 %v1050, %v1052
    %v1054 = vadd.f32 %v1050, %v1053
    %vm1055 = vweird.f32 %v1013
    %vm1056 = vweird.f32 %v1050
    %vm1057 = vmor %vm1055, %vm1056
    %v1058 = vsel %vm1057, %v1050, %v1054
    %v1059 = vand.u32 2147483647, %v1013
    %vm1060 = vcmp.eq.f32.partialorder %v1059, 8.507059e+37
    %v1061 = vand.u32 %v1013, 2147483648
    %v1062 = vor.u32 1.1754944e-38, %v1061
    %v1063 = vsel %vm1060, %v1062, %v1058
    %v1064 = vmul.f32 %v1002, %v1063
    %v1065 = vrcp.pop %v1016
    %v1066 = vmul.f32 %v1016, %v1065
    %v1067 = vsub.f32 1.0, %v1066
    %v1068 = vmul.f32 %v1065, %v1067
    %v1069 = vadd.f32 %v1065, %v1068
    %vm1070 = vweird.f32 %v1016
    %vm1071 = vweird.f32 %v1065
    %vm1072 = vmor %vm1070, %vm1071
    %v1073 = vsel %vm1072, %v1065, %v1069
    %v1074 = vand.u32 2147483647, %v1016
    %vm1075 = vcmp.eq.f32.partialorder %v1074, 8.507059e+37
    %v1076 = vand.u32 %v1016, 2147483648
    %v1077 = vor.u32 1.1754944e-38, %v1076
    %v1078 = vsel %vm1075, %v1077, %v1073
    %v1079 = vmul.f32 %v1003, %v1078
    %v1080 = vrcp.pop %v1019
    %v1081 = vmul.f32 %v1019, %v1080
    %v1082 = vsub.f32 1.0, %v1081
    %v1083 = vmul.f32 %v1080, %v1082
    %v1084 = vadd.f32 %v1080, %v1083
    %vm1085 = vweird.f32 %v1019
    %vm1086 = vweird.f32 %v1080
    %vm1087 = vmor %vm1085, %vm1086
    %v1088 = vsel %vm1087, %v1080, %v1084
    %v1089 = vand.u32 2147483647, %v1019
    %vm1090 = vcmp.eq.f32.partialorder %v1089, 8.507059e+37
    %v1091 = vand.u32 %v1019, 2147483648
    %v1092 = vor.u32 1.1754944e-38, %v1091
    %v1093 = vsel %vm1090, %v1092, %v1088
    %v1094 = vmul.f32 %v1004, %v1093
    %v1096 = vsel %vm276, %v1034, 0
    %v1099 = vsel %vm276, %v1049, 0
    %v1102 = vsel %vm276, %v1064, 0
    %v1105 = vsel %vm276, %v1079, 0
    %v1108 = vsel %vm276, %v1094, 0
    %1110 = vmatpush.msra.mxu0 0.0
    %1111 = vmatpush.msra.mxu0 0.0
    %1112 = vmatpush.msra.mxu0 0.0
    %1113 = vmatpush.msra.mxu0 0.0
    %1114 = vmatpush.msra.mxu0 0.0
    %1115 = vmatpush.msra.mxu0 0.0
    %1116 = vmatpush.msra.mxu0 0.0
    %1117 = vmatpush.msra.mxu0 0.0
    %1118 = vmatpush.msra.mxu0 0.0
    %1119 = vmatpush.msra.mxu0 0.0
    %1120 = vmatpush.msra.mxu0 0.0
    %1121 = vmatpush.msra.mxu0 %v420
    %1122 = vmatpush.msra.mxu0 %v271
    %1123 = vmatpush.msra.mxu0 %v268
    %1124 = vmatpush.msra.mxu0 %v265
    %1125 = vmatpush.msra.mxu0 %v262
    %1126 = vmatmul.f32.gmra.mxu0 %v1096
    %v1127 = vpop.f32.mrf.mxu0
    %v1128 = vadd.f32 0.0, %v1127
    %1129 = vmatmul.f32.gmra.mxu0 %v1099
    %v1130 = vpop.f32.mrf.mxu0
    %v1131 = vadd.f32 0.0, %v1130
    %1132 = vmatmul.f32.gmra.mxu0 %v1102
    %v1133 = vpop.f32.mrf.mxu0
    %v1134 = vadd.f32 0.0, %v1133
    %1135 = vmatmul.f32.gmra.mxu0 %v1105
    %v1136 = vpop.f32.mrf.mxu0
    %v1137 = vadd.f32 0.0, %v1136
    %1138 = vmatmul.f32.gmra.mxu0 %v1108
    %v1139 = vpop.f32.mrf.mxu0
    %v1140 = vadd.f32 0.0, %v1139
    %1141 = vdwg.mxu0
    %v1142 = vsel %vm276, %v1128, -inf
    %1143 = vmax.xlane.f32.xlu0 %v1142
    %v1144 = vpop.xlane.xlu0 %1143
    %v1145 = vsel %vm276, %v1131, -inf
    %1146 = vmax.xlane.f32.xlu0 %v1145
    %v1147 = vpop.xlane.xlu0 %1146
    %v1148 = vsel %vm276, %v1134, -inf
    %1149 = vmax.xlane.f32.xlu0 %v1148
    %v1150 = vpop.xlane.xlu0 %1149
    %v1151 = vsel %vm276, %v1137, -inf
    %1152 = vmax.xlane.f32.xlu0 %v1151
    %v1153 = vpop.xlane.xlu0 %1152
    %v1154 = vsel %vm289, %v1140, -inf
    %1155 = vmax.xlane.f32.xlu0 %v1154
    %v1156 = vpop.xlane.xlu0 %1155
    %v1157 = vsub.f32 %v1128, %v1144
    %v1158 = vsub.f32 %v1131, %v1147
    %v1159 = vsub.f32 %v1134, %v1150
    %v1160 = vsub.f32 %v1137, %v1153
    %v1161 = vsub.f32 %v1140, %v1156
    %v1162 = vmul.f32 %v1157, 1.442695
    %v1163 = vpow.pop %v1162
    %v1164 = vmul.f32 %v1158, 1.442695
    %v1165 = vpow.pop %v1164
    %v1166 = vmul.f32 %v1159, 1.442695
    %v1167 = vpow.pop %v1166
    %v1168 = vmul.f32 %v1160, 1.442695
    %v1169 = vpow.pop %v1168
    %v1170 = vmul.f32 %v1161, 1.442695
    %v1171 = vpow.pop %v1170
    %v1172 = vmul.f32 %v1163, %v107
    %v1173 = vmul.f32 %v1165, %v108
    %v1174 = vmul.f32 %v1167, %v109
    %v1175 = vmul.f32 %v1169, %v110
    %v1176 = vmul.f32 %v1171, %v111
    %v1177 = vsel %vm276, %v1172, 0.0
    %1178 = vadd.xlane.f32.xlu0 %v1177
    %v1179 = vpop.xlane.xlu0 %1178
    %v1180 = vsel %vm276, %v1173, 0.0
    %1181 = vadd.xlane.f32.xlu0 %v1180
    %v1182 = vpop.xlane.xlu0 %1181
    %v1183 = vsel %vm276, %v1174, 0.0
    %1184 = vadd.xlane.f32.xlu0 %v1183
    %v1185 = vpop.xlane.xlu0 %1184
    %v1186 = vsel %vm276, %v1175, 0.0
    %1187 = vadd.xlane.f32.xlu0 %v1186
    %v1188 = vpop.xlane.xlu0 %1187
    %v1189 = vsel %vm289, %v1176, 0.0
    %1190 = vadd.xlane.f32.xlu0 %v1189
    %v1191 = vpop.xlane.xlu0 %1190
    %v1192 = vrcp.pop %v1179
    %v1193 = vmul.f32 %v1179, %v1192
    %v1194 = vsub.f32 1.0, %v1193
    %v1195 = vmul.f32 %v1192, %v1194
    %v1196 = vadd.f32 %v1192, %v1195
    %vm1197 = vweird.f32 %v1179
    %vm1198 = vweird.f32 %v1192
    %vm1199 = vmor %vm1197, %vm1198
    %v1200 = vsel %vm1199, %v1192, %v1196
    %v1201 = vand.u32 2147483647, %v1179
    %vm1202 = vcmp.eq.f32.partialorder %v1201, 8.507059e+37
    %v1203 = vand.u32 %v1179, 2147483648
    %v1204 = vor.u32 1.1754944e-38, %v1203
    %v1205 = vsel %vm1202, %v1204, %v1200
    %v1206 = vmul.f32 %v1172, %v1205
    %v1207 = vrcp.pop %v1182
    %v1208 = vmul.f32 %v1182, %v1207
    %v1209 = vsub.f32 1.0, %v1208
    %v1210 = vmul.f32 %v1207, %v1209
    %v1211 = vadd.f32 %v1207, %v1210
    %vm1212 = vweird.f32 %v1182
    %vm1213 = vweird.f32 %v1207
    %vm1214 = vmor %vm1212, %vm1213
    %v1215 = vsel %vm1214, %v1207, %v1211
    %v1216 = vand.u32 2147483647, %v1182
    %vm1217 = vcmp.eq.f32.partialorder %v1216, 8.507059e+37
    %v1218 = vand.u32 %v1182, 2147483648
    %v1219 = vor.u32 1.1754944e-38, %v1218
    %v1220 = vsel %vm1217, %v1219, %v1215
    %v1221 = vmul.f32 %v1173, %v1220
    %v1222 = vrcp.pop %v1185
    %v1223 = vmul.f32 %v1185, %v1222
    %v1224 = vsub.f32 1.0, %v1223
    %v1225 = vmul.f32 %v1222, %v1224
    %v1226 = vadd.f32 %v1222, %v1225
    %vm1227 = vweird.f32 %v1185
    %vm1228 = vweird.f32 %v1222
    %vm1229 = vmor %vm1227, %vm1228
    %v1230 = vsel %vm1229, %v1222, %v1226
    %v1231 = vand.u32 2147483647, %v1185
    %vm1232 = vcmp.eq.f32.partialorder %v1231, 8.507059e+37
    %v1233 = vand.u32 %v1185, 2147483648
    %v1234 = vor.u32 1.1754944e-38, %v1233
    %v1235 = vsel %vm1232, %v1234, %v1230
    %v1236 = vmul.f32 %v1174, %v1235
    %v1237 = vrcp.pop %v1188
    %v1238 = vmul.f32 %v1188, %v1237
    %v1239 = vsub.f32 1.0, %v1238
    %v1240 = vmul.f32 %v1237, %v1239
    %v1241 = vadd.f32 %v1237, %v1240
    %vm1242 = vweird.f32 %v1188
    %vm1243 = vweird.f32 %v1237
    %vm1244 = vmor %vm1242, %vm1243
    %v1245 = vsel %vm1244, %v1237, %v1241
    %v1246 = vand.u32 2147483647, %v1188
    %vm1247 = vcmp.eq.f32.partialorder %v1246, 8.507059e+37
    %v1248 = vand.u32 %v1188, 2147483648
    %v1249 = vor.u32 1.1754944e-38, %v1248
    %v1250 = vsel %vm1247, %v1249, %v1245
    %v1251 = vmul.f32 %v1175, %v1250
    %v1252 = vrcp.pop %v1191
    %v1253 = vmul.f32 %v1191, %v1252
    %v1254 = vsub.f32 1.0, %v1253
    %v1255 = vmul.f32 %v1252, %v1254
    %v1256 = vadd.f32 %v1252, %v1255
    %vm1257 = vweird.f32 %v1191
    %vm1258 = vweird.f32 %v1252
    %vm1259 = vmor %vm1257, %vm1258
    %v1260 = vsel %vm1259, %v1252, %v1256
    %v1261 = vand.u32 2147483647, %v1191
    %vm1262 = vcmp.eq.f32.partialorder %v1261, 8.507059e+37
    %v1263 = vand.u32 %v1191, 2147483648
    %v1264 = vor.u32 1.1754944e-38, %v1263
    %v1265 = vsel %vm1262, %v1264, %v1260
    %v1266 = vmul.f32 %v1176, %v1265
    %v1267 = vperm.slane %v128, 0
    %1268 = vrot.lane.b32.xlu0 %v163, 64
    %v1269 = vpop.permute.xlu0 %1268
    %1270 = vrot.lane.b32.xlu0 %v166, 64
    %v1271 = vpop.permute.xlu0 %1270
    %1272 = vrot.lane.b32.xlu0 %v169, 64
    %v1273 = vpop.permute.xlu0 %1272
    %1274 = vrot.lane.b32.xlu0 %v172, 64
    %v1275 = vpop.permute.xlu0 %1274
    %1276 = vrot.lane.b32.xlu0 %v175, 64
    %v1277 = vpop.permute.xlu0 %1276
    %v1283 = vsel %vm276, %v1206, 0
    %v1286 = vsel %vm276, %v1221, 0
    %v1289 = vsel %vm276, %v1236, 0
    %v1292 = vsel %vm276, %v1251, 0
    %v1295 = vsel %vm276, %v1266, 0
    %v1297 = vsel %vm418, %v1277, 0
    %1299 = vmatpush.msra.mxu0 0.0
    %1300 = vmatpush.msra.mxu0 0.0
    %1301 = vmatpush.msra.mxu0 0.0
    %1302 = vmatpush.msra.mxu0 0.0
    %1303 = vmatpush.msra.mxu0 0.0
    %1304 = vmatpush.msra.mxu0 0.0
    %1305 = vmatpush.msra.mxu0 0.0
    %1306 = vmatpush.msra.mxu0 0.0
    %1307 = vmatpush.msra.mxu0 0.0
    %1308 = vmatpush.msra.mxu0 0.0
    %1309 = vmatpush.msra.mxu0 0.0
    %1310 = vmatpush.msra.mxu0 %v1297
    %1311 = vmatpush.msra.mxu0 %v1275
    %1312 = vmatpush.msra.mxu0 %v1273
    %1313 = vmatpush.msra.mxu0 %v1271
    %1314 = vmatpush.msra.mxu0 %v1269
    %1315 = vmatmul.f32.gmra.mxu0 %v1283
    %v1316 = vpop.f32.mrf.mxu0
    %v1317 = vadd.f32 %v1267, %v1316
    %1318 = vmatmul.f32.gmra.mxu0 %v1286
    %v1319 = vpop.f32.mrf.mxu0
    %v1320 = vadd.f32 %v1267, %v1319
    %1321 = vmatmul.f32.gmra.mxu0 %v1289
    %v1322 = vpop.f32.mrf.mxu0
    %v1323 = vadd.f32 %v1267, %v1322
    %1324 = vmatmul.f32.gmra.mxu0 %v1292
    %v1325 = vpop.f32.mrf.mxu0
    %v1326 = vadd.f32 %v1267, %v1325
    %1327 = vmatmul.f32.gmra.mxu0 %v1295
    %v1328 = vpop.f32.mrf.mxu0
    %v1329 = vadd.f32 %v1267, %v1328
    %1330 = vdwg.mxu0
    %v1331 = vadd.f32 %v93, %v1317
    %v1332 = vadd.f32 %v96, %v1320
    %v1333 = vadd.f32 %v99, %v1323
    %v1334 = vadd.f32 %v102, %v1326
    %v1335 = vadd.f32 %v105, %v1329
    %v1336 = vsel %vm129, %v1331, 0.0
    %1337 = vadd.xlane.f32.xlu0 %v1336
    %v1338 = vpop.xlane.xlu0 %1337
    %v1339 = vsel %vm129, %v1332, 0.0
    %1340 = vadd.xlane.f32.xlu0 %v1339
    %v1341 = vpop.xlane.xlu0 %1340
    %v1342 = vsel %vm129, %v1333, 0.0
    %1343 = vadd.xlane.f32.xlu0 %v1342
    %v1344 = vpop.xlane.xlu0 %1343
    %v1345 = vsel %vm129, %v1334, 0.0
    %1346 = vadd.xlane.f32.xlu0 %v1345
    %v1347 = vpop.xlane.xlu0 %1346
    %vm1348 = vcmask 254976
    %v1349 = vsel %vm1348, %v1335, 0.0
    %1350 = vadd.xlane.f32.xlu0 %v1349
    %v1351 = vpop.xlane.xlu0 %1350
    %v1352 = vrcp.pop 32.0
    %v1353 = vmul.f32 32.0, %v1352
    %v1354 = vsub.f32 1.0, %v1353
    %v1355 = vmul.f32 %v1352, %v1354
    %v1356 = vadd.f32 %v1352, %v1355
    %vm1357 = vweird.f32 %v1352
    %v1358 = vsel %vm1357, %v1352, %v1356
    %v1359 = vmul.f32 %v1338, %v1358
    %v1360 = vmul.f32 %v1341, %v1358
    %v1361 = vmul.f32 %v1344, %v1358
    %v1362 = vmul.f32 %v1347, %v1358
    %v1363 = vmul.f32 %v1351, %v1358
    %v1364 = vsub.f32 %v1331, %v1359
    %v1365 = vsub.f32 %v1332, %v1360
    %v1366 = vsub.f32 %v1333, %v1361
    %v1367 = vsub.f32 %v1334, %v1362
    %v1368 = vsub.f32 %v1335, %v1363
    %v1369 = vmul.f32 %v1364, %v1364
    %v1370 = vmul.f32 %v1365, %v1365
    %v1371 = vmul.f32 %v1366, %v1366
    %v1372 = vmul.f32 %v1367, %v1367
    %v1373 = vmul.f32 %v1368, %v1368
    %v1374 = vsel %vm129, %v1369, 0.0
    %1375 = vadd.xlane.f32.xlu0 %v1374
    %v1376 = vpop.xlane.xlu0 %1375
    %v1377 = vsel %vm129, %v1370, 0.0
    %1378 = vadd.xlane.f32.xlu0 %v1377
    %v1379 = vpop.xlane.xlu0 %1378
    %v1380 = vsel %vm129, %v1371, 0.0
    %1381 = vadd.xlane.f32.xlu0 %v1380
    %v1382 = vpop.xlane.xlu0 %1381
    %v1383 = vsel %vm129, %v1372, 0.0
    %1384 = vadd.xlane.f32.xlu0 %v1383
    %v1385 = vpop.xlane.xlu0 %1384
    %v1386 = vsel %vm1348, %v1373, 0.0
    %1387 = vadd.xlane.f32.xlu0 %v1386
    %v1388 = vpop.xlane.xlu0 %1387
    %v1389 = vmul.f32 %v1376, %v1358
    %v1390 = vmul.f32 %v1379, %v1358
    %v1391 = vmul.f32 %v1382, %v1358
    %v1392 = vmul.f32 %v1385, %v1358
    %v1393 = vmul.f32 %v1388, %v1358
    %v1394 = vadd.f32 %v1389, 1e-05
    %v1395 = vadd.f32 %v1390, 1e-05
    %v1396 = vadd.f32 %v1391, 1e-05
    %v1397 = vadd.f32 %v1392, 1e-05
    %v1398 = vadd.f32 %v1393, 1e-05
    %v1399 = vrsqrt.pop %v1394
    %v1400 = vmul.f32 %v1399, %v1394
    %v1401 = vmul.f32 %v1400, %v1399
    %v1402 = vmul.f32 0.5, %v1401
    %v1403 = vsub.f32 1.5, %v1402
    %v1404 = vmul.f32 %v1399, %v1403
    %vm1405 = vweird.f32 %v1394
    %vm1406 = vweird.f32 %v1399
    %vm1407 = vmor %vm1405, %vm1406
    %v1408 = vsel %vm1407, %v1399, %v1404
    %v1409 = vrsqrt.pop %v1395
    %v1410 = vmul.f32 %v1409, %v1395
    %v1411 = vmul.f32 %v1410, %v1409
    %v1412 = vmul.f32 0.5, %v1411
    %v1413 = vsub.f32 1.5, %v1412
    %v1414 = vmul.f32 %v1409, %v1413
    %vm1415 = vweird.f32 %v1395
    %vm1416 = vweird.f32 %v1409
    %vm1417 = vmor %vm1415, %vm1416
    %v1418 = vsel %vm1417, %v1409, %v1414
    %v1419 = vrsqrt.pop %v1396
    %v1420 = vmul.f32 %v1419, %v1396
    %v1421 = vmul.f32 %v1420, %v1419
    %v1422 = vmul.f32 0.5, %v1421
    %v1423 = vsub.f32 1.5, %v1422
    %v1424 = vmul.f32 %v1419, %v1423
    %vm1425 = vweird.f32 %v1396
    %vm1426 = vweird.f32 %v1419
    %vm1427 = vmor %vm1425, %vm1426
    %v1428 = vsel %vm1427, %v1419, %v1424
    %v1429 = vrsqrt.pop %v1397
    %v1430 = vmul.f32 %v1429, %v1397
    %v1431 = vmul.f32 %v1430, %v1429
    %v1432 = vmul.f32 0.5, %v1431
    %v1433 = vsub.f32 1.5, %v1432
    %v1434 = vmul.f32 %v1429, %v1433
    %vm1435 = vweird.f32 %v1397
    %vm1436 = vweird.f32 %v1429
    %vm1437 = vmor %vm1435, %vm1436
    %v1438 = vsel %vm1437, %v1429, %v1434
    %v1439 = vrsqrt.pop %v1398
    %v1440 = vmul.f32 %v1439, %v1398
    %v1441 = vmul.f32 %v1440, %v1439
    %v1442 = vmul.f32 0.5, %v1441
    %v1443 = vsub.f32 1.5, %v1442
    %v1444 = vmul.f32 %v1439, %v1443
    %vm1445 = vweird.f32 %v1398
    %vm1446 = vweird.f32 %v1439
    %vm1447 = vmor %vm1445, %vm1446
    %v1448 = vsel %vm1447, %v1439, %v1444
    %v1449 = vmul.f32 %v1364, %v1408
    %v1450 = vmul.f32 %v1365, %v1418
    %v1451 = vmul.f32 %v1366, %v1428
    %v1452 = vmul.f32 %v1367, %v1438
    %v1453 = vmul.f32 %v1368, %v1448
    %v1454 = vperm.slane %v128, 1
    %v1455 = vmul.f32 %v1449, %v1454
    %v1456 = vmul.f32 %v1450, %v1454
    %v1457 = vmul.f32 %v1451, %v1454
    %v1458 = vmul.f32 %v1452, %v1454
    %v1459 = vmul.f32 %v1453, %v1454
    %v1460 = vperm.slane %v128, 2
    %v1461 = vadd.f32 %v1455, %v1460
    %v1462 = vadd.f32 %v1456, %v1460
    %v1463 = vadd.f32 %v1457, %v1460
    %v1464 = vadd.f32 %v1458, %v1460
    %v1465 = vadd.f32 %v1459, %v1460
    %v1466 = vperm.slane %v128, 3
    %v1468 = vsel %vm129, %v1461, 0
    %v1471 = vsel %vm129, %v1462, 0
    %v1474 = vsel %vm129, %v1463, 0
    %v1477 = vsel %vm129, %v1464, 0
    %v1480 = vsel %vm129, %v1465, 0
    %1482 = vmatpush.msra.mxu0 0.0
    %1483 = vmatpush.msra.mxu0 0.0
    %1484 = vmatpush.msra.mxu0 0.0
    %1485 = vmatpush.msra.mxu0 0.0
    %1486 = vmatpush.msra.mxu0 0.0
    %1487 = vmatpush.msra.mxu0 0.0
    %1488 = vmatpush.msra.mxu0 0.0
    %1489 = vmatpush.msra.mxu0 0.0
    %1490 = vmatpush.msra.mxu0 0.0
    %1491 = vmatpush.msra.mxu0 0.0
    %1492 = vmatpush.msra.mxu0 0.0
    %1493 = vmatpush.msra.mxu0 0.0
    %1494 = vmatpush.msra.mxu0 %v119
    %1495 = vmatpush.msra.mxu0 %v118
    %1496 = vmatpush.msra.mxu0 %v117
    %1497 = vmatpush.msra.mxu0 %v116
    %1498 = vmatmul.f32.gmra.mxu0 %v1468
    %v1499 = vpop.f32.mrf.mxu0
    %v1500 = vadd.f32 %v1466, %v1499
    %1501 = vmatmul.f32.gmra.mxu0 %v1471
    %v1502 = vpop.f32.mrf.mxu0
    %v1503 = vadd.f32 %v1466, %v1502
    %1504 = vmatmul.f32.gmra.mxu0 %v1474
    %v1505 = vpop.f32.mrf.mxu0
    %v1506 = vadd.f32 %v1466, %v1505
    %1507 = vmatmul.f32.gmra.mxu0 %v1477
    %v1508 = vpop.f32.mrf.mxu0
    %v1509 = vadd.f32 %v1466, %v1508
    %1510 = vmatmul.f32.gmra.mxu0 %v1480
    %v1511 = vpop.f32.mrf.mxu0
    %v1512 = vadd.f32 %v1466, %v1511
    %1513 = vdwg.mxu0
    %v1514 = vmax.f32 %v1500, 0.0
    %v1515 = vmax.f32 %v1503, 0.0
    %v1516 = vmax.f32 %v1506, 0.0
    %v1517 = vmax.f32 %v1509, 0.0
    %v1518 = vmax.f32 %v1512, 0.0
    %v1519 = vperm.slane %v128, 4
    %v1521 = vsel %vm59, %v1514, 0
    %v1524 = vsel %vm59, %v1515, 0
    %v1527 = vsel %vm59, %v1516, 0
    %v1530 = vsel %vm59, %v1517, 0
    %v1533 = vsel %vm59, %v1518, 0
    %1535 = vmatpush.msra.mxu0 0.0
    %1536 = vmatpush.msra.mxu0 0.0
    %1537 = vmatpush.msra.mxu0 0.0
    %1538 = vmatpush.msra.mxu0 0.0
    %1539 = vmatpush.msra.mxu0 0.0
    %1540 = vmatpush.msra.mxu0 0.0
    %1541 = vmatpush.msra.mxu0 0.0
    %1542 = vmatpush.msra.mxu0 0.0
    %1543 = vmatpush.msra.mxu0 %v127
    %1544 = vmatpush.msra.mxu0 %v126
    %1545 = vmatpush.msra.mxu0 %v125
    %1546 = vmatpush.msra.mxu0 %v124
    %1547 = vmatpush.msra.mxu0 %v123
    %1548 = vmatpush.msra.mxu0 %v122
    %1549 = vmatpush.msra.mxu0 %v121
    %1550 = vmatpush.msra.mxu0 %v120
    %1551 = vmatmul.f32.gmra.mxu0 %v1521
    %v1552 = vpop.f32.mrf.mxu0
    %v1553 = vadd.f32 %v1519, %v1552
    %1554 = vmatmul.f32.gmra.mxu0 %v1524
    %v1555 = vpop.f32.mrf.mxu0
    %v1556 = vadd.f32 %v1519, %v1555
    %1557 = vmatmul.f32.gmra.mxu0 %v1527
    %v1558 = vpop.f32.mrf.mxu0
    %v1559 = vadd.f32 %v1519, %v1558
    %1560 = vmatmul.f32.gmra.mxu0 %v1530
    %v1561 = vpop.f32.mrf.mxu0
    %v1562 = vadd.f32 %v1519, %v1561
    %1563 = vmatmul.f32.gmra.mxu0 %v1533
    %v1564 = vpop.f32.mrf.mxu0
    %v1565 = vadd.f32 %v1519, %v1564
    %1566 = vdwg.mxu0
    %v1567 = vadd.f32 %v1461, %v1553
    %v1568 = vadd.f32 %v1462, %v1556
    %v1569 = vadd.f32 %v1463, %v1559
    %v1570 = vadd.f32 %v1464, %v1562
    %v1571 = vadd.f32 %v1465, %v1565
    %v1572 = vsel %vm129, %v1567, 0.0
    %1573 = vadd.xlane.f32.xlu0 %v1572
    %v1574 = vpop.xlane.xlu0 %1573
    %v1575 = vsel %vm129, %v1568, 0.0
    %1576 = vadd.xlane.f32.xlu0 %v1575
    %v1577 = vpop.xlane.xlu0 %1576
    %v1578 = vsel %vm129, %v1569, 0.0
    %1579 = vadd.xlane.f32.xlu0 %v1578
    %v1580 = vpop.xlane.xlu0 %1579
    %v1581 = vsel %vm129, %v1570, 0.0
    %1582 = vadd.xlane.f32.xlu0 %v1581
    %v1583 = vpop.xlane.xlu0 %1582
    %v1584 = vsel %vm1348, %v1571, 0.0
    %1585 = vadd.xlane.f32.xlu0 %v1584
    %v1586 = vpop.xlane.xlu0 %1585
    %v1587 = vmul.f32 %v1574, %v1358
    %v1588 = vmul.f32 %v1577, %v1358
    %v1589 = vmul.f32 %v1580, %v1358
    %v1590 = vmul.f32 %v1583, %v1358
    %v1591 = vmul.f32 %v1586, %v1358
    %v1592 = vsub.f32 %v1567, %v1587
    %v1593 = vsub.f32 %v1568, %v1588
    %v1594 = vsub.f32 %v1569, %v1589
    %v1595 = vsub.f32 %v1570, %v1590
    %v1596 = vsub.f32 %v1571, %v1591
    %v1597 = vmul.f32 %v1592, %v1592
    %v1598 = vmul.f32 %v1593, %v1593
    %v1599 = vmul.f32 %v1594, %v1594
    %v1600 = vmul.f32 %v1595, %v1595
    %v1601 = vmul.f32 %v1596, %v1596
    %v1602 = vsel %vm129, %v1597, 0.0
    %1603 = vadd.xlane.f32.xlu0 %v1602
    %v1604 = vpop.xlane.xlu0 %1603
    %v1605 = vsel %vm129, %v1598, 0.0
    %1606 = vadd.xlane.f32.xlu0 %v1605
    %v1607 = vpop.xlane.xlu0 %1606
    %v1608 = vsel %vm129, %v1599, 0.0
    %1609 = vadd.xlane.f32.xlu0 %v1608
    %v1610 = vpop.xlane.xlu0 %1609
    %v1611 = vsel %vm129, %v1600, 0.0
    %1612 = vadd.xlane.f32.xlu0 %v1611
    %v1613 = vpop.xlane.xlu0 %1612
    %v1614 = vsel %vm1348, %v1601, 0.0
    %1615 = vadd.xlane.f32.xlu0 %v1614
    %v1616 = vpop.xlane.xlu0 %1615
    %v1617 = vmul.f32 %v1604, %v1358
    %v1618 = vmul.f32 %v1607, %v1358
    %v1619 = vmul.f32 %v1610, %v1358
    %v1620 = vmul.f32 %v1613, %v1358
    %v1621 = vmul.f32 %v1616, %v1358
    %v1622 = vadd.f32 %v1617, 1e-05
    %v1623 = vadd.f32 %v1618, 1e-05
    %v1624 = vadd.f32 %v1619, 1e-05
    %v1625 = vadd.f32 %v1620, 1e-05
    %v1626 = vadd.f32 %v1621, 1e-05
    %v1627 = vrsqrt.pop %v1622
    %v1628 = vmul.f32 %v1627, %v1622
    %v1629 = vmul.f32 %v1628, %v1627
    %v1630 = vmul.f32 0.5, %v1629
    %v1631 = vsub.f32 1.5, %v1630
    %v1632 = vmul.f32 %v1627, %v1631
    %vm1633 = vweird.f32 %v1622
    %vm1634 = vweird.f32 %v1627
    %vm1635 = vmor %vm1633, %vm1634
    %v1636 = vsel %vm1635, %v1627, %v1632
    %v1637 = vrsqrt.pop %v1623
    %v1638 = vmul.f32 %v1637, %v1623
    %v1639 = vmul.f32 %v1638, %v1637
    %v1640 = vmul.f32 0.5, %v1639
    %v1641 = vsub.f32 1.5, %v1640
    %v1642 = vmul.f32 %v1637, %v1641
    %vm1643 = vweird.f32 %v1623
    %vm1644 = vweird.f32 %v1637
    %vm1645 = vmor %vm1643, %vm1644
    %v1646 = vsel %vm1645, %v1637, %v1642
    %v1647 = vrsqrt.pop %v1624
    %v1648 = vmul.f32 %v1647, %v1624
    %v1649 = vmul.f32 %v1648, %v1647
    %v1650 = vmul.f32 0.5, %v1649
    %v1651 = vsub.f32 1.5, %v1650
    %v1652 = vmul.f32 %v1647, %v1651
    %vm1653 = vweird.f32 %v1624
    %vm1654 = vweird.f32 %v1647
    %vm1655 = vmor %vm1653, %vm1654
    %v1656 = vsel %vm1655, %v1647, %v1652
    %v1657 = vrsqrt.pop %v1625
    %v1658 = vmul.f32 %v1657, %v1625
    %v1659 = vmul.f32 %v1658, %v1657
    %v1660 = vmul.f32 0.5, %v1659
    %v1661 = vsub.f32 1.5, %v1660
    %v1662 = vmul.f32 %v1657, %v1661
    %vm1663 = vweird.f32 %v1625
    %vm1664 = vweird.f32 %v1657
    %vm1665 = vmor %vm1663, %vm1664
    %v1666 = vsel %vm1665, %v1657, %v1662
    %v1667 = vrsqrt.pop %v1626
    %v1668 = vmul.f32 %v1667, %v1626
    %v1669 = vmul.f32 %v1668, %v1667
    %v1670 = vmul.f32 0.5, %v1669
    %v1671 = vsub.f32 1.5, %v1670
    %v1672 = vmul.f32 %v1667, %v1671
    %vm1673 = vweird.f32 %v1626
    %vm1674 = vweird.f32 %v1667
    %vm1675 = vmor %vm1673, %vm1674
    %v1676 = vsel %vm1675, %v1667, %v1672
    %v1677 = vmul.f32 %v1592, %v1636
    %v1678 = vmul.f32 %v1593, %v1646
    %v1679 = vmul.f32 %v1594, %v1656
    %v1680 = vmul.f32 %v1595, %v1666
    %v1681 = vmul.f32 %v1596, %v1676
    %v1682 = vperm.slane %v128, 5
    %v1683 = vmul.f32 %v1677, %v1682
    %v1684 = vmul.f32 %v1678, %v1682
    %v1685 = vmul.f32 %v1679, %v1682
    %v1686 = vmul.f32 %v1680, %v1682
    %v1687 = vmul.f32 %v1681, %v1682
    %v1688 = vperm.slane %v128, 6
    %v1689 = vadd.f32 %v1683, %v1688
    %v1690 = vadd.f32 %v1684, %v1688
    %v1691 = vadd.f32 %v1685, %v1688
    %v1692 = vadd.f32 %v1686, %v1688
    %v1693 = vadd.f32 %v1687, %v1688
    %s1694 = scalar_lea.vmem %s5, 32
    %v1695 = vld [vmem:[%s1694] sm:$0xff]
    %v1696 = vld [vmem:[%s1694 + $0x8] sm:$0xff]
    %v1697 = vld [vmem:[%s1694 + $0x10] sm:$0xff]
    %v1698 = vld [vmem:[%s1694 + $0x18] sm:$0xff]
    %s1699 = scalar_lea.vmem %s6, 32
    %v1700 = vld [vmem:[%s1699] sm:$0xff]
    %v1701 = vld [vmem:[%s1699 + $0x8] sm:$0xff]
    %v1702 = vld [vmem:[%s1699 + $0x10] sm:$0xff]
    %v1703 = vld [vmem:[%s1699 + $0x18] sm:$0xff]
    %s1704 = scalar_lea.vmem %s7, 64
    %v1705 = vld [vmem:[%s1704] sm:$0xff]
    %v1706 = vld [vmem:[%s1704 + $0x8] sm:$0xff]
    %v1707 = vld [vmem:[%s1704 + $0x10] sm:$0xff]
    %v1708 = vld [vmem:[%s1704 + $0x18] sm:$0xff]
    %v1709 = vld [vmem:[%s1704 + $0x20] sm:$0xff]
    %v1710 = vld [vmem:[%s1704 + $0x28] sm:$0xff]
    %v1711 = vld [vmem:[%s1704 + $0x30] sm:$0xff]
    %v1712 = vld [vmem:[%s1704 + $0x38] sm:$0xff]
    %s1713 = scalar_lea.vmem %s8, 8
    %v1714 = vld [vmem:[%s1713] sm:$0x7f]
    %v1716 = vsel %vm129, %v1689, 0
    %v1719 = vsel %vm129, %v1690, 0
    %v1722 = vsel %vm129, %v1691, 0
    %v1725 = vsel %vm129, %v1692, 0
    %v1728 = vsel %vm129, %v1693, 0
    %1730 = vmatpush.msra.mxu0 0.0
    %1731 = vmatpush.msra.mxu0 0.0
    %1732 = vmatpush.msra.mxu0 0.0
    %1733 = vmatpush.msra.mxu0 0.0
    %1734 = vmatpush.msra.mxu0 0.0
    %1735 = vmatpush.msra.mxu0 0.0
    %1736 = vmatpush.msra.mxu0 0.0
    %1737 = vmatpush.msra.mxu0 0.0
    %1738 = vmatpush.msra.mxu0 0.0
    %1739 = vmatpush.msra.mxu0 0.0
    %1740 = vmatpush.msra.mxu0 0.0
    %1741 = vmatpush.msra.mxu0 0.0
    %1742 = vmatpush.msra.mxu0 %v1698
    %1743 = vmatpush.msra.mxu0 %v1697
    %1744 = vmatpush.msra.mxu0 %v1696
    %1745 = vmatpush.msra.mxu0 %v1695
    %1746 = vmatmul.f32.gmra.mxu0 %v1716
    %v1747 = vpop.f32.mrf.mxu0
    %v1748 = vadd.f32 0.0, %v1747
    %1749 = vmatmul.f32.gmra.mxu0 %v1719
    %v1750 = vpop.f32.mrf.mxu0
    %v1751 = vadd.f32 0.0, %v1750
    %1752 = vmatmul.f32.gmra.mxu0 %v1722
    %v1753 = vpop.f32.mrf.mxu0
    %v1754 = vadd.f32 0.0, %v1753
    %1755 = vmatmul.f32.gmra.mxu0 %v1725
    %v1756 = vpop.f32.mrf.mxu0
    %v1757 = vadd.f32 0.0, %v1756
    %1758 = vmatmul.f32.gmra.mxu0 %v1728
    %v1759 = vpop.f32.mrf.mxu0
    %v1760 = vadd.f32 0.0, %v1759
    %1761 = vdwg.mxu0
    %v1763 = vsel %vm129, %v1748, 0
    %v1766 = vsel %vm129, %v1751, 0
    %v1769 = vsel %vm129, %v1754, 0
    %v1772 = vsel %vm129, %v1757, 0
    %v1775 = vsel %vm129, %v1760, 0
    %1777 = vmatpush.xpose.msra.mxu0 0.0
    %1778 = vmatpush.xpose.msra.mxu0 0.0
    %1779 = vmatpush.xpose.msra.mxu0 0.0
    %1780 = vmatpush.xpose.msra.mxu0 0.0
    %1781 = vmatpush.xpose.msra.mxu0 0.0
    %1782 = vmatpush.xpose.msra.mxu0 0.0
    %1783 = vmatpush.xpose.msra.mxu0 0.0
    %1784 = vmatpush.xpose.msra.mxu0 0.0
    %1785 = vmatpush.xpose.msra.mxu0 0.0
    %1786 = vmatpush.xpose.msra.mxu0 0.0
    %1787 = vmatpush.xpose.msra.mxu0 0.0
    %1788 = vmatpush.xpose.msra.mxu0 %v1728
    %1789 = vmatpush.xpose.msra.mxu0 %v1725
    %1790 = vmatpush.xpose.msra.mxu0 %v1722
    %1791 = vmatpush.xpose.msra.mxu0 %v1719
    %1792 = vmatpush.xpose.msra.mxu0 %v1716
    %1793 = vmatmul.f32.gmra.mxu0 %v1763
    %v1794 = vpop.f32.mrf.mxu0
    %v1795 = vadd.f32 0.0, %v1794
    %1796 = vmatmul.f32.gmra.mxu0 %v1766
    %v1797 = vpop.f32.mrf.mxu0
    %v1798 = vadd.f32 0.0, %v1797
    %1799 = vmatmul.f32.gmra.mxu0 %v1769
    %v1800 = vpop.f32.mrf.mxu0
    %v1801 = vadd.f32 0.0, %v1800
    %1802 = vmatmul.f32.gmra.mxu0 %v1772
    %v1803 = vpop.f32.mrf.mxu0
    %v1804 = vadd.f32 0.0, %v1803
    %1805 = vmatmul.f32.gmra.mxu0 %v1775
    %v1806 = vpop.f32.mrf.mxu0
    %v1807 = vadd.f32 0.0, %v1806
    %1808 = vdwg.mxu0
    %1809 = vrot.lane.b32.xlu0 %v1748, 96
    %v1810 = vpop.permute.xlu0 %1809
    %1811 = vrot.lane.b32.xlu0 %v1751, 96
    %v1812 = vpop.permute.xlu0 %1811
    %1813 = vrot.lane.b32.xlu0 %v1754, 96
    %v1814 = vpop.permute.xlu0 %1813
    %1815 = vrot.lane.b32.xlu0 %v1757, 96
    %v1816 = vpop.permute.xlu0 %1815
    %1817 = vrot.lane.b32.xlu0 %v1760, 96
    %v1818 = vpop.permute.xlu0 %1817
    %v1819 = vsel %vm129, %v1810, 0
    %v1821 = vsel %vm129, %v1812, 0
    %v1823 = vsel %vm129, %v1814, 0
    %v1825 = vsel %vm129, %v1816, 0
    %v1827 = vsel %vm129, %v1818, 0
    %1829 = vmatpush.xpose.msra.mxu0 0.0
    %1830 = vmatpush.xpose.msra.mxu0 0.0
    %1831 = vmatpush.xpose.msra.mxu0 0.0
    %1832 = vmatpush.xpose.msra.mxu0 0.0
    %1833 = vmatpush.xpose.msra.mxu0 0.0
    %1834 = vmatpush.xpose.msra.mxu0 0.0
    %1835 = vmatpush.xpose.msra.mxu0 0.0
    %1836 = vmatpush.xpose.msra.mxu0 0.0
    %1837 = vmatpush.xpose.msra.mxu0 0.0
    %1838 = vmatpush.xpose.msra.mxu0 0.0
    %1839 = vmatpush.xpose.msra.mxu0 0.0
    %1840 = vmatpush.xpose.msra.mxu0 %v1728
    %1841 = vmatpush.xpose.msra.mxu0 %v1725
    %1842 = vmatpush.xpose.msra.mxu0 %v1722
    %1843 = vmatpush.xpose.msra.mxu0 %v1719
    %1844 = vmatpush.xpose.msra.mxu0 %v1716
    %1845 = vmatmul.f32.gmra.mxu0 %v1819
    %v1846 = vpop.f32.mrf.mxu0
    %v1847 = vadd.f32 0.0, %v1846
    %1848 = vmatmul.f32.gmra.mxu0 %v1821
    %v1849 = vpop.f32.mrf.mxu0
    %v1850 = vadd.f32 0.0, %v1849
    %1851 = vmatmul.f32.gmra.mxu0 %v1823
    %v1852 = vpop.f32.mrf.mxu0
    %v1853 = vadd.f32 0.0, %v1852
    %1854 = vmatmul.f32.gmra.mxu0 %v1825
    %v1855 = vpop.f32.mrf.mxu0
    %v1856 = vadd.f32 0.0, %v1855
    %1857 = vmatmul.f32.gmra.mxu0 %v1827
    %v1858 = vpop.f32.mrf.mxu0
    %v1859 = vadd.f32 0.0, %v1858
    %1860 = vdwg.mxu0
    %v1861 = vsel %vm276, %v1795, -inf
    %1862 = vmax.xlane.f32.xlu0 %v1861
    %v1863 = vpop.xlane.xlu0 %1862
    %v1864 = vsel %vm276, %v1798, -inf
    %1865 = vmax.xlane.f32.xlu0 %v1864
    %v1866 = vpop.xlane.xlu0 %1865
    %v1867 = vsel %vm276, %v1801, -inf
    %1868 = vmax.xlane.f32.xlu0 %v1867
    %v1869 = vpop.xlane.xlu0 %1868
    %v1870 = vsel %vm276, %v1804, -inf
    %1871 = vmax.xlane.f32.xlu0 %v1870
    %v1872 = vpop.xlane.xlu0 %1871
    %v1873 = vsel %vm289, %v1807, -inf
    %1874 = vmax.xlane.f32.xlu0 %v1873
    %v1875 = vpop.xlane.xlu0 %1874
    %v1876 = vsub.f32 %v1795, %v1863
    %v1877 = vsub.f32 %v1798, %v1866
    %v1878 = vsub.f32 %v1801, %v1869
    %v1879 = vsub.f32 %v1804, %v1872
    %v1880 = vsub.f32 %v1807, %v1875
    %v1881 = vmul.f32 %v1876, 1.442695
    %v1882 = vpow.pop %v1881
    %v1883 = vmul.f32 %v1877, 1.442695
    %v1884 = vpow.pop %v1883
    %v1885 = vmul.f32 %v1878, 1.442695
    %v1886 = vpow.pop %v1885
    %v1887 = vmul.f32 %v1879, 1.442695
    %v1888 = vpow.pop %v1887
    %v1889 = vmul.f32 %v1880, 1.442695
    %v1890 = vpow.pop %v1889
    %v1891 = vmul.f32 %v1882, %v107
    %v1892 = vmul.f32 %v1884, %v108
    %v1893 = vmul.f32 %v1886, %v109
    %v1894 = vmul.f32 %v1888, %v110
    %v1895 = vmul.f32 %v1890, %v111
    %v1896 = vsel %vm276, %v1891, 0.0
    %1897 = vadd.xlane.f32.xlu0 %v1896
    %v1898 = vpop.xlane.xlu0 %1897
    %v1899 = vsel %vm276, %v1892, 0.0
    %1900 = vadd.xlane.f32.xlu0 %v1899
    %v1901 = vpop.xlane.xlu0 %1900
    %v1902 = vsel %vm276, %v1893, 0.0
    %1903 = vadd.xlane.f32.xlu0 %v1902
    %v1904 = vpop.xlane.xlu0 %1903
    %v1905 = vsel %vm276, %v1894, 0.0
    %1906 = vadd.xlane.f32.xlu0 %v1905
    %v1907 = vpop.xlane.xlu0 %1906
    %v1908 = vsel %vm289, %v1895, 0.0
    %1909 = vadd.xlane.f32.xlu0 %v1908
    %v1910 = vpop.xlane.xlu0 %1909
    %v1911 = vrcp.pop %v1898
    %v1912 = vmul.f32 %v1898, %v1911
    %v1913 = vsub.f32 1.0, %v1912
    %v1914 = vmul.f32 %v1911, %v1913
    %v1915 = vadd.f32 %v1911, %v1914
    %vm1916 = vweird.f32 %v1898
    %vm1917 = vweird.f32 %v1911
    %vm1918 = vmor %vm1916, %vm1917
    %v1919 = vsel %vm1918, %v1911, %v1915
    %v1920 = vand.u32 2147483647, %v1898
    %vm1921 = vcmp.eq.f32.partialorder %v1920, 8.507059e+37
    %v1922 = vand.u32 %v1898, 2147483648
    %v1923 = vor.u32 1.1754944e-38, %v1922
    %v1924 = vsel %vm1921, %v1923, %v1919
    %v1925 = vmul.f32 %v1891, %v1924
    %v1926 = vrcp.pop %v1901
    %v1927 = vmul.f32 %v1901, %v1926
    %v1928 = vsub.f32 1.0, %v1927
    %v1929 = vmul.f32 %v1926, %v1928
    %v1930 = vadd.f32 %v1926, %v1929
    %vm1931 = vweird.f32 %v1901
    %vm1932 = vweird.f32 %v1926
    %vm1933 = vmor %vm1931, %vm1932
    %v1934 = vsel %vm1933, %v1926, %v1930
    %v1935 = vand.u32 2147483647, %v1901
    %vm1936 = vcmp.eq.f32.partialorder %v1935, 8.507059e+37
    %v1937 = vand.u32 %v1901, 2147483648
    %v1938 = vor.u32 1.1754944e-38, %v1937
    %v1939 = vsel %vm1936, %v1938, %v1934
    %v1940 = vmul.f32 %v1892, %v1939
    %v1941 = vrcp.pop %v1904
    %v1942 = vmul.f32 %v1904, %v1941
    %v1943 = vsub.f32 1.0, %v1942
    %v1944 = vmul.f32 %v1941, %v1943
    %v1945 = vadd.f32 %v1941, %v1944
    %vm1946 = vweird.f32 %v1904
    %vm1947 = vweird.f32 %v1941
    %vm1948 = vmor %vm1946, %vm1947
    %v1949 = vsel %vm1948, %v1941, %v1945
    %v1950 = vand.u32 2147483647, %v1904
    %vm1951 = vcmp.eq.f32.partialorder %v1950, 8.507059e+37
    %v1952 = vand.u32 %v1904, 2147483648
    %v1953 = vor.u32 1.1754944e-38, %v1952
    %v1954 = vsel %vm1951, %v1953, %v1949
    %v1955 = vmul.f32 %v1893, %v1954
    %v1956 = vrcp.pop %v1907
    %v1957 = vmul.f32 %v1907, %v1956
    %v1958 = vsub.f32 1.0, %v1957
    %v1959 = vmul.f32 %v1956, %v1958
    %v1960 = vadd.f32 %v1956, %v1959
    %vm1961 = vweird.f32 %v1907
    %vm1962 = vweird.f32 %v1956
    %vm1963 = vmor %vm1961, %vm1962
    %v1964 = vsel %vm1963, %v1956, %v1960
    %v1965 = vand.u32 2147483647, %v1907
    %vm1966 = vcmp.eq.f32.partialorder %v1965, 8.507059e+37
    %v1967 = vand.u32 %v1907, 2147483648
    %v1968 = vor.u32 1.1754944e-38, %v1967
    %v1969 = vsel %vm1966, %v1968, %v1964
    %v1970 = vmul.f32 %v1894, %v1969
    %v1971 = vrcp.pop %v1910
    %v1972 = vmul.f32 %v1910, %v1971
    %v1973 = vsub.f32 1.0, %v1972
    %v1974 = vmul.f32 %v1971, %v1973
    %v1975 = vadd.f32 %v1971, %v1974
    %vm1976 = vweird.f32 %v1910
    %vm1977 = vweird.f32 %v1971
    %vm1978 = vmor %vm1976, %vm1977
    %v1979 = vsel %vm1978, %v1971, %v1975
    %v1980 = vand.u32 2147483647, %v1910
    %vm1981 = vcmp.eq.f32.partialorder %v1980, 8.507059e+37
    %v1982 = vand.u32 %v1910, 2147483648
    %v1983 = vor.u32 1.1754944e-38, %v1982
    %v1984 = vsel %vm1981, %v1983, %v1979
    %v1985 = vmul.f32 %v1895, %v1984
    %v1987 = vsel %vm276, %v1925, 0
    %v1990 = vsel %vm276, %v1940, 0
    %v1993 = vsel %vm276, %v1955, 0
    %v1996 = vsel %vm276, %v1970, 0
    %v1999 = vsel %vm276, %v1985, 0
    %v2002 = vsel %vm418, %v1859, 0
    %2004 = vmatpush.msra.mxu0 0.0
    %2005 = vmatpush.msra.mxu0 0.0
    %2006 = vmatpush.msra.mxu0 0.0
    %2007 = vmatpush.msra.mxu0 0.0
    %2008 = vmatpush.msra.mxu0 0.0
    %2009 = vmatpush.msra.mxu0 0.0
    %2010 = vmatpush.msra.mxu0 0.0
    %2011 = vmatpush.msra.mxu0 0.0
    %2012 = vmatpush.msra.mxu0 0.0
    %2013 = vmatpush.msra.mxu0 0.0
    %2014 = vmatpush.msra.mxu0 0.0
    %2015 = vmatpush.msra.mxu0 %v2002
    %2016 = vmatpush.msra.mxu0 %v1856
    %2017 = vmatpush.msra.mxu0 %v1853
    %2018 = vmatpush.msra.mxu0 %v1850
    %2019 = vmatpush.msra.mxu0 %v1847
    %2020 = vmatmul.f32.gmra.mxu0 %v1987
    %v2021 = vpop.f32.mrf.mxu0
    %v2022 = vadd.f32 0.0, %v2021
    %2023 = vmatmul.f32.gmra.mxu0 %v1990
    %v2024 = vpop.f32.mrf.mxu0
    %v2025 = vadd.f32 0.0, %v2024
    %2026 = vmatmul.f32.gmra.mxu0 %v1993
    %v2027 = vpop.f32.mrf.mxu0
    %v2028 = vadd.f32 0.0, %v2027
    %2029 = vmatmul.f32.gmra.mxu0 %v1996
    %v2030 = vpop.f32.mrf.mxu0
    %v2031 = vadd.f32 0.0, %v2030
    %2032 = vmatmul.f32.gmra.mxu0 %v1999
    %v2033 = vpop.f32.mrf.mxu0
    %v2034 = vadd.f32 0.0, %v2033
    %2035 = vdwg.mxu0
    %v2036 = vsel %vm276, %v2022, -inf
    %2037 = vmax.xlane.f32.xlu0 %v2036
    %v2038 = vpop.xlane.xlu0 %2037
    %v2039 = vsel %vm276, %v2025, -inf
    %2040 = vmax.xlane.f32.xlu0 %v2039
    %v2041 = vpop.xlane.xlu0 %2040
    %v2042 = vsel %vm276, %v2028, -inf
    %2043 = vmax.xlane.f32.xlu0 %v2042
    %v2044 = vpop.xlane.xlu0 %2043
    %v2045 = vsel %vm276, %v2031, -inf
    %2046 = vmax.xlane.f32.xlu0 %v2045
    %v2047 = vpop.xlane.xlu0 %2046
    %v2048 = vsel %vm289, %v2034, -inf
    %2049 = vmax.xlane.f32.xlu0 %v2048
    %v2050 = vpop.xlane.xlu0 %2049
    %v2051 = vsub.f32 %v2022, %v2038
    %v2052 = vsub.f32 %v2025, %v2041
    %v2053 = vsub.f32 %v2028, %v2044
    %v2054 = vsub.f32 %v2031, %v2047
    %v2055 = vsub.f32 %v2034, %v2050
    %v2056 = vmul.f32 %v2051, 1.442695
    %v2057 = vpow.pop %v2056
    %v2058 = vmul.f32 %v2052, 1.442695
    %v2059 = vpow.pop %v2058
    %v2060 = vmul.f32 %v2053, 1.442695
    %v2061 = vpow.pop %v2060
    %v2062 = vmul.f32 %v2054, 1.442695
    %v2063 = vpow.pop %v2062
    %v2064 = vmul.f32 %v2055, 1.442695
    %v2065 = vpow.pop %v2064
    %v2066 = vmul.f32 %v2057, %v107
    %v2067 = vmul.f32 %v2059, %v108
    %v2068 = vmul.f32 %v2061, %v109
    %v2069 = vmul.f32 %v2063, %v110
    %v2070 = vmul.f32 %v2065, %v111
    %v2071 = vsel %vm276, %v2066, 0.0
    %2072 = vadd.xlane.f32.xlu0 %v2071
    %v2073 = vpop.xlane.xlu0 %2072
    %v2074 = vsel %vm276, %v2067, 0.0
    %2075 = vadd.xlane.f32.xlu0 %v2074
    %v2076 = vpop.xlane.xlu0 %2075
    %v2077 = vsel %vm276, %v2068, 0.0
    %2078 = vadd.xlane.f32.xlu0 %v2077
    %v2079 = vpop.xlane.xlu0 %2078
    %v2080 = vsel %vm276, %v2069, 0.0
    %2081 = vadd.xlane.f32.xlu0 %v2080
    %v2082 = vpop.xlane.xlu0 %2081
    %v2083 = vsel %vm289, %v2070, 0.0
    %2084 = vadd.xlane.f32.xlu0 %v2083
    %v2085 = vpop.xlane.xlu0 %2084
    %v2086 = vrcp.pop %v2073
    %v2087 = vmul.f32 %v2073, %v2086
    %v2088 = vsub.f32 1.0, %v2087
    %v2089 = vmul.f32 %v2086, %v2088
    %v2090 = vadd.f32 %v2086, %v2089
    %vm2091 = vweird.f32 %v2073
    %vm2092 = vweird.f32 %v2086
    %vm2093 = vmor %vm2091, %vm2092
    %v2094 = vsel %vm2093, %v2086, %v2090
    %v2095 = vand.u32 2147483647, %v2073
    %vm2096 = vcmp.eq.f32.partialorder %v2095, 8.507059e+37
    %v2097 = vand.u32 %v2073, 2147483648
    %v2098 = vor.u32 1.1754944e-38, %v2097
    %v2099 = vsel %vm2096, %v2098, %v2094
    %v2100 = vmul.f32 %v2066, %v2099
    %v2101 = vrcp.pop %v2076
    %v2102 = vmul.f32 %v2076, %v2101
    %v2103 = vsub.f32 1.0, %v2102
    %v2104 = vmul.f32 %v2101, %v2103
    %v2105 = vadd.f32 %v2101, %v2104
    %vm2106 = vweird.f32 %v2076
    %vm2107 = vweird.f32 %v2101
    %vm2108 = vmor %vm2106, %vm2107
    %v2109 = vsel %vm2108, %v2101, %v2105
    %v2110 = vand.u32 2147483647, %v2076
    %vm2111 = vcmp.eq.f32.partialorder %v2110, 8.507059e+37
    %v2112 = vand.u32 %v2076, 2147483648
    %v2113 = vor.u32 1.1754944e-38, %v2112
    %v2114 = vsel %vm2111, %v2113, %v2109
    %v2115 = vmul.f32 %v2067, %v2114
    %v2116 = vrcp.pop %v2079
    %v2117 = vmul.f32 %v2079, %v2116
    %v2118 = vsub.f32 1.0, %v2117
    %v2119 = vmul.f32 %v2116, %v2118
    %v2120 = vadd.f32 %v2116, %v2119
    %vm2121 = vweird.f32 %v2079
    %vm2122 = vweird.f32 %v2116
    %vm2123 = vmor %vm2121, %vm2122
    %v2124 = vsel %vm2123, %v2116, %v2120
    %v2125 = vand.u32 2147483647, %v2079
    %vm2126 = vcmp.eq.f32.partialorder %v2125, 8.507059e+37
    %v2127 = vand.u32 %v2079, 2147483648
    %v2128 = vor.u32 1.1754944e-38, %v2127
    %v2129 = vsel %vm2126, %v2128, %v2124
    %v2130 = vmul.f32 %v2068, %v2129
    %v2131 = vrcp.pop %v2082
    %v2132 = vmul.f32 %v2082, %v2131
    %v2133 = vsub.f32 1.0, %v2132
    %v2134 = vmul.f32 %v2131, %v2133
    %v2135 = vadd.f32 %v2131, %v2134
    %vm2136 = vweird.f32 %v2082
    %vm2137 = vweird.f32 %v2131
    %vm2138 = vmor %vm2136, %vm2137
    %v2139 = vsel %vm2138, %v2131, %v2135
    %v2140 = vand.u32 2147483647, %v2082
    %vm2141 = vcmp.eq.f32.partialorder %v2140, 8.507059e+37
    %v2142 = vand.u32 %v2082, 2147483648
    %v2143 = vor.u32 1.1754944e-38, %v2142
    %v2144 = vsel %vm2141, %v2143, %v2139
    %v2145 = vmul.f32 %v2069, %v2144
    %v2146 = vrcp.pop %v2085
    %v2147 = vmul.f32 %v2085, %v2146
    %v2148 = vsub.f32 1.0, %v2147
    %v2149 = vmul.f32 %v2146, %v2148
    %v2150 = vadd.f32 %v2146, %v2149
    %vm2151 = vweird.f32 %v2085
    %vm2152 = vweird.f32 %v2146
    %vm2153 = vmor %vm2151, %vm2152
    %v2154 = vsel %vm2153, %v2146, %v2150
    %v2155 = vand.u32 2147483647, %v2085
    %vm2156 = vcmp.eq.f32.partialorder %v2155, 8.507059e+37
    %v2157 = vand.u32 %v2085, 2147483648
    %v2158 = vor.u32 1.1754944e-38, %v2157
    %v2159 = vsel %vm2156, %v2158, %v2154
    %v2160 = vmul.f32 %v2070, %v2159
    %v2162 = vsel %vm276, %v2100, 0
    %v2165 = vsel %vm276, %v2115, 0
    %v2168 = vsel %vm276, %v2130, 0
    %v2171 = vsel %vm276, %v2145, 0
    %v2174 = vsel %vm276, %v2160, 0
    %2176 = vmatpush.msra.mxu0 0.0
    %2177 = vmatpush.msra.mxu0 0.0
    %2178 = vmatpush.msra.mxu0 0.0
    %2179 = vmatpush.msra.mxu0 0.0
    %2180 = vmatpush.msra.mxu0 0.0
    %2181 = vmatpush.msra.mxu0 0.0
    %2182 = vmatpush.msra.mxu0 0.0
    %2183 = vmatpush.msra.mxu0 0.0
    %2184 = vmatpush.msra.mxu0 0.0
    %2185 = vmatpush.msra.mxu0 0.0
    %2186 = vmatpush.msra.mxu0 0.0
    %2187 = vmatpush.msra.mxu0 %v2002
    %2188 = vmatpush.msra.mxu0 %v1856
    %2189 = vmatpush.msra.mxu0 %v1853
    %2190 = vmatpush.msra.mxu0 %v1850
    %2191 = vmatpush.msra.mxu0 %v1847
    %2192 = vmatmul.f32.gmra.mxu0 %v2162
    %v2193 = vpop.f32.mrf.mxu0
    %v2194 = vadd.f32 0.0, %v2193
    %2195 = vmatmul.f32.gmra.mxu0 %v2165
    %v2196 = vpop.f32.mrf.mxu0
    %v2197 = vadd.f32 0.0, %v2196
    %2198 = vmatmul.f32.gmra.mxu0 %v2168
    %v2199 = vpop.f32.mrf.mxu0
    %v2200 = vadd.f32 0.0, %v2199
    %2201 = vmatmul.f32.gmra.mxu0 %v2171
    %v2202 = vpop.f32.mrf.mxu0
    %v2203 = vadd.f32 0.0, %v2202
    %2204 = vmatmul.f32.gmra.mxu0 %v2174
    %v2205 = vpop.f32.mrf.mxu0
    %v2206 = vadd.f32 0.0, %v2205
    %2207 = vdwg.mxu0
    %v2208 = vsel %vm276, %v2194, -inf
    %2209 = vmax.xlane.f32.xlu0 %v2208
    %v2210 = vpop.xlane.xlu0 %2209
    %v2211 = vsel %vm276, %v2197, -inf
    %2212 = vmax.xlane.f32.xlu0 %v2211
    %v2213 = vpop.xlane.xlu0 %2212
    %v2214 = vsel %vm276, %v2200, -inf
    %2215 = vmax.xlane.f32.xlu0 %v2214
    %v2216 = vpop.xlane.xlu0 %2215
    %v2217 = vsel %vm276, %v2203, -inf
    %2218 = vmax.xlane.f32.xlu0 %v2217
    %v2219 = vpop.xlane.xlu0 %2218
    %v2220 = vsel %vm289, %v2206, -inf
    %2221 = vmax.xlane.f32.xlu0 %v2220
    %v2222 = vpop.xlane.xlu0 %2221
    %v2223 = vsub.f32 %v2194, %v2210
    %v2224 = vsub.f32 %v2197, %v2213
    %v2225 = vsub.f32 %v2200, %v2216
    %v2226 = vsub.f32 %v2203, %v2219
    %v2227 = vsub.f32 %v2206, %v2222
    %v2228 = vmul.f32 %v2223, 1.442695
    %v2229 = vpow.pop %v2228
    %v2230 = vmul.f32 %v2224, 1.442695
    %v2231 = vpow.pop %v2230
    %v2232 = vmul.f32 %v2225, 1.442695
    %v2233 = vpow.pop %v2232
    %v2234 = vmul.f32 %v2226, 1.442695
    %v2235 = vpow.pop %v2234
    %v2236 = vmul.f32 %v2227, 1.442695
    %v2237 = vpow.pop %v2236
    %v2238 = vmul.f32 %v2229, %v107
    %v2239 = vmul.f32 %v2231, %v108
    %v2240 = vmul.f32 %v2233, %v109
    %v2241 = vmul.f32 %v2235, %v110
    %v2242 = vmul.f32 %v2237, %v111
    %v2243 = vsel %vm276, %v2238, 0.0
    %2244 = vadd.xlane.f32.xlu0 %v2243
    %v2245 = vpop.xlane.xlu0 %2244
    %v2246 = vsel %vm276, %v2239, 0.0
    %2247 = vadd.xlane.f32.xlu0 %v2246
    %v2248 = vpop.xlane.xlu0 %2247
    %v2249 = vsel %vm276, %v2240, 0.0
    %2250 = vadd.xlane.f32.xlu0 %v2249
    %v2251 = vpop.xlane.xlu0 %2250
    %v2252 = vsel %vm276, %v2241, 0.0
    %2253 = vadd.xlane.f32.xlu0 %v2252
    %v2254 = vpop.xlane.xlu0 %2253
    %v2255 = vsel %vm289, %v2242, 0.0
    %2256 = vadd.xlane.f32.xlu0 %v2255
    %v2257 = vpop.xlane.xlu0 %2256
    %v2258 = vrcp.pop %v2245
    %v2259 = vmul.f32 %v2245, %v2258
    %v2260 = vsub.f32 1.0, %v2259
    %v2261 = vmul.f32 %v2258, %v2260
    %v2262 = vadd.f32 %v2258, %v2261
    %vm2263 = vweird.f32 %v2245
    %vm2264 = vweird.f32 %v2258
    %vm2265 = vmor %vm2263, %vm2264
    %v2266 = vsel %vm2265, %v2258, %v2262
    %v2267 = vand.u32 2147483647, %v2245
    %vm2268 = vcmp.eq.f32.partialorder %v2267, 8.507059e+37
    %v2269 = vand.u32 %v2245, 2147483648
    %v2270 = vor.u32 1.1754944e-38, %v2269
    %v2271 = vsel %vm2268, %v2270, %v2266
    %v2272 = vmul.f32 %v2238, %v2271
    %v2273 = vrcp.pop %v2248
    %v2274 = vmul.f32 %v2248, %v2273
    %v2275 = vsub.f32 1.0, %v2274
    %v2276 = vmul.f32 %v2273, %v2275
    %v2277 = vadd.f32 %v2273, %v2276
    %vm2278 = vweird.f32 %v2248
    %vm2279 = vweird.f32 %v2273
    %vm2280 = vmor %vm2278, %vm2279
    %v2281 = vsel %vm2280, %v2273, %v2277
    %v2282 = vand.u32 2147483647, %v2248
    %vm2283 = vcmp.eq.f32.partialorder %v2282, 8.507059e+37
    %v2284 = vand.u32 %v2248, 2147483648
    %v2285 = vor.u32 1.1754944e-38, %v2284
    %v2286 = vsel %vm2283, %v2285, %v2281
    %v2287 = vmul.f32 %v2239, %v2286
    %v2288 = vrcp.pop %v2251
    %v2289 = vmul.f32 %v2251, %v2288
    %v2290 = vsub.f32 1.0, %v2289
    %v2291 = vmul.f32 %v2288, %v2290
    %v2292 = vadd.f32 %v2288, %v2291
    %vm2293 = vweird.f32 %v2251
    %vm2294 = vweird.f32 %v2288
    %vm2295 = vmor %vm2293, %vm2294
    %v2296 = vsel %vm2295, %v2288, %v2292
    %v2297 = vand.u32 2147483647, %v2251
    %vm2298 = vcmp.eq.f32.partialorder %v2297, 8.507059e+37
    %v2299 = vand.u32 %v2251, 2147483648
    %v2300 = vor.u32 1.1754944e-38, %v2299
    %v2301 = vsel %vm2298, %v2300, %v2296
    %v2302 = vmul.f32 %v2240, %v2301
    %v2303 = vrcp.pop %v2254
    %v2304 = vmul.f32 %v2254, %v2303
    %v2305 = vsub.f32 1.0, %v2304
    %v2306 = vmul.f32 %v2303, %v2305
    %v2307 = vadd.f32 %v2303, %v2306
    %vm2308 = vweird.f32 %v2254
    %vm2309 = vweird.f32 %v2303
    %vm2310 = vmor %vm2308, %vm2309
    %v2311 = vsel %vm2310, %v2303, %v2307
    %v2312 = vand.u32 2147483647, %v2254
    %vm2313 = vcmp.eq.f32.partialorder %v2312, 8.507059e+37
    %v2314 = vand.u32 %v2254, 2147483648
    %v2315 = vor.u32 1.1754944e-38, %v2314
    %v2316 = vsel %vm2313, %v2315, %v2311
    %v2317 = vmul.f32 %v2241, %v2316
    %v2318 = vrcp.pop %v2257
    %v2319 = vmul.f32 %v2257, %v2318
    %v2320 = vsub.f32 1.0, %v2319
    %v2321 = vmul.f32 %v2318, %v2320
    %v2322 = vadd.f32 %v2318, %v2321
    %vm2323 = vweird.f32 %v2257
    %vm2324 = vweird.f32 %v2318
    %vm2325 = vmor %vm2323, %vm2324
    %v2326 = vsel %vm2325, %v2318, %v2322
    %v2327 = vand.u32 2147483647, %v2257
    %vm2328 = vcmp.eq.f32.partialorder %v2327, 8.507059e+37
    %v2329 = vand.u32 %v2257, 2147483648
    %v2330 = vor.u32 1.1754944e-38, %v2329
    %v2331 = vsel %vm2328, %v2330, %v2326
    %v2332 = vmul.f32 %v2242, %v2331
    %v2334 = vsel %vm276, %v2272, 0
    %v2337 = vsel %vm276, %v2287, 0
    %v2340 = vsel %vm276, %v2302, 0
    %v2343 = vsel %vm276, %v2317, 0
    %v2346 = vsel %vm276, %v2332, 0
    %2348 = vmatpush.msra.mxu0 0.0
    %2349 = vmatpush.msra.mxu0 0.0
    %2350 = vmatpush.msra.mxu0 0.0
    %2351 = vmatpush.msra.mxu0 0.0
    %2352 = vmatpush.msra.mxu0 0.0
    %2353 = vmatpush.msra.mxu0 0.0
    %2354 = vmatpush.msra.mxu0 0.0
    %2355 = vmatpush.msra.mxu0 0.0
    %2356 = vmatpush.msra.mxu0 0.0
    %2357 = vmatpush.msra.mxu0 0.0
    %2358 = vmatpush.msra.mxu0 0.0
    %2359 = vmatpush.msra.mxu0 %v2002
    %2360 = vmatpush.msra.mxu0 %v1856
    %2361 = vmatpush.msra.mxu0 %v1853
    %2362 = vmatpush.msra.mxu0 %v1850
    %2363 = vmatpush.msra.mxu0 %v1847
    %2364 = vmatmul.f32.gmra.mxu0 %v2334
    %v2365 = vpop.f32.mrf.mxu0
    %v2366 = vadd.f32 0.0, %v2365
    %2367 = vmatmul.f32.gmra.mxu0 %v2337
    %v2368 = vpop.f32.mrf.mxu0
    %v2369 = vadd.f32 0.0, %v2368
    %2370 = vmatmul.f32.gmra.mxu0 %v2340
    %v2371 = vpop.f32.mrf.mxu0
    %v2372 = vadd.f32 0.0, %v2371
    %2373 = vmatmul.f32.gmra.mxu0 %v2343
    %v2374 = vpop.f32.mrf.mxu0
    %v2375 = vadd.f32 0.0, %v2374
    %2376 = vmatmul.f32.gmra.mxu0 %v2346
    %v2377 = vpop.f32.mrf.mxu0
    %v2378 = vadd.f32 0.0, %v2377
    %2379 = vdwg.mxu0
    %v2380 = vsel %vm276, %v2366, -inf
    %2381 = vmax.xlane.f32.xlu0 %v2380
    %v2382 = vpop.xlane.xlu0 %2381
    %v2383 = vsel %vm276, %v2369, -inf
    %2384 = vmax.xlane.f32.xlu0 %v2383
    %v2385 = vpop.xlane.xlu0 %2384
    %v2386 = vsel %vm276, %v2372, -inf
    %2387 = vmax.xlane.f32.xlu0 %v2386
    %v2388 = vpop.xlane.xlu0 %2387
    %v2389 = vsel %vm276, %v2375, -inf
    %2390 = vmax.xlane.f32.xlu0 %v2389
    %v2391 = vpop.xlane.xlu0 %2390
    %v2392 = vsel %vm289, %v2378, -inf
    %2393 = vmax.xlane.f32.xlu0 %v2392
    %v2394 = vpop.xlane.xlu0 %2393
    %v2395 = vsub.f32 %v2366, %v2382
    %v2396 = vsub.f32 %v2369, %v2385
    %v2397 = vsub.f32 %v2372, %v2388
    %v2398 = vsub.f32 %v2375, %v2391
    %v2399 = vsub.f32 %v2378, %v2394
    %v2400 = vmul.f32 %v2395, 1.442695
    %v2401 = vpow.pop %v2400
    %v2402 = vmul.f32 %v2396, 1.442695
    %v2403 = vpow.pop %v2402
    %v2404 = vmul.f32 %v2397, 1.442695
    %v2405 = vpow.pop %v2404
    %v2406 = vmul.f32 %v2398, 1.442695
    %v2407 = vpow.pop %v2406
    %v2408 = vmul.f32 %v2399, 1.442695
    %v2409 = vpow.pop %v2408
    %v2410 = vmul.f32 %v2401, %v107
    %v2411 = vmul.f32 %v2403, %v108
    %v2412 = vmul.f32 %v2405, %v109
    %v2413 = vmul.f32 %v2407, %v110
    %v2414 = vmul.f32 %v2409, %v111
    %v2415 = vsel %vm276, %v2410, 0.0
    %2416 = vadd.xlane.f32.xlu0 %v2415
    %v2417 = vpop.xlane.xlu0 %2416
    %v2418 = vsel %vm276, %v2411, 0.0
    %2419 = vadd.xlane.f32.xlu0 %v2418
    %v2420 = vpop.xlane.xlu0 %2419
    %v2421 = vsel %vm276, %v2412, 0.0
    %2422 = vadd.xlane.f32.xlu0 %v2421
    %v2423 = vpop.xlane.xlu0 %2422
    %v2424 = vsel %vm276, %v2413, 0.0
    %2425 = vadd.xlane.f32.xlu0 %v2424
    %v2426 = vpop.xlane.xlu0 %2425
    %v2427 = vsel %vm289, %v2414, 0.0
    %2428 = vadd.xlane.f32.xlu0 %v2427
    %v2429 = vpop.xlane.xlu0 %2428
    %v2430 = vrcp.pop %v2417
    %v2431 = vmul.f32 %v2417, %v2430
    %v2432 = vsub.f32 1.0, %v2431
    %v2433 = vmul.f32 %v2430, %v2432
    %v2434 = vadd.f32 %v2430, %v2433
    %vm2435 = vweird.f32 %v2417
    %vm2436 = vweird.f32 %v2430
    %vm2437 = vmor %vm2435, %vm2436
    %v2438 = vsel %vm2437, %v2430, %v2434
    %v2439 = vand.u32 2147483647, %v2417
    %vm2440 = vcmp.eq.f32.partialorder %v2439, 8.507059e+37
    %v2441 = vand.u32 %v2417, 2147483648
    %v2442 = vor.u32 1.1754944e-38, %v2441
    %v2443 = vsel %vm2440, %v2442, %v2438
    %v2444 = vmul.f32 %v2410, %v2443
    %v2445 = vrcp.pop %v2420
    %v2446 = vmul.f32 %v2420, %v2445
    %v2447 = vsub.f32 1.0, %v2446
    %v2448 = vmul.f32 %v2445, %v2447
    %v2449 = vadd.f32 %v2445, %v2448
    %vm2450 = vweird.f32 %v2420
    %vm2451 = vweird.f32 %v2445
    %vm2452 = vmor %vm2450, %vm2451
    %v2453 = vsel %vm2452, %v2445, %v2449
    %v2454 = vand.u32 2147483647, %v2420
    %vm2455 = vcmp.eq.f32.partialorder %v2454, 8.507059e+37
    %v2456 = vand.u32 %v2420, 2147483648
    %v2457 = vor.u32 1.1754944e-38, %v2456
    %v2458 = vsel %vm2455, %v2457, %v2453
    %v2459 = vmul.f32 %v2411, %v2458
    %v2460 = vrcp.pop %v2423
    %v2461 = vmul.f32 %v2423, %v2460
    %v2462 = vsub.f32 1.0, %v2461
    %v2463 = vmul.f32 %v2460, %v2462
    %v2464 = vadd.f32 %v2460, %v2463
    %vm2465 = vweird.f32 %v2423
    %vm2466 = vweird.f32 %v2460
    %vm2467 = vmor %vm2465, %vm2466
    %v2468 = vsel %vm2467, %v2460, %v2464
    %v2469 = vand.u32 2147483647, %v2423
    %vm2470 = vcmp.eq.f32.partialorder %v2469, 8.507059e+37
    %v2471 = vand.u32 %v2423, 2147483648
    %v2472 = vor.u32 1.1754944e-38, %v2471
    %v2473 = vsel %vm2470, %v2472, %v2468
    %v2474 = vmul.f32 %v2412, %v2473
    %v2475 = vrcp.pop %v2426
    %v2476 = vmul.f32 %v2426, %v2475
    %v2477 = vsub.f32 1.0, %v2476
    %v2478 = vmul.f32 %v2475, %v2477
    %v2479 = vadd.f32 %v2475, %v2478
    %vm2480 = vweird.f32 %v2426
    %vm2481 = vweird.f32 %v2475
    %vm2482 = vmor %vm2480, %vm2481
    %v2483 = vsel %vm2482, %v2475, %v2479
    %v2484 = vand.u32 2147483647, %v2426
    %vm2485 = vcmp.eq.f32.partialorder %v2484, 8.507059e+37
    %v2486 = vand.u32 %v2426, 2147483648
    %v2487 = vor.u32 1.1754944e-38, %v2486
    %v2488 = vsel %vm2485, %v2487, %v2483
    %v2489 = vmul.f32 %v2413, %v2488
    %v2490 = vrcp.pop %v2429
    %v2491 = vmul.f32 %v2429, %v2490
    %v2492 = vsub.f32 1.0, %v2491
    %v2493 = vmul.f32 %v2490, %v2492
    %v2494 = vadd.f32 %v2490, %v2493
    %vm2495 = vweird.f32 %v2429
    %vm2496 = vweird.f32 %v2490
    %vm2497 = vmor %vm2495, %vm2496
    %v2498 = vsel %vm2497, %v2490, %v2494
    %v2499 = vand.u32 2147483647, %v2429
    %vm2500 = vcmp.eq.f32.partialorder %v2499, 8.507059e+37
    %v2501 = vand.u32 %v2429, 2147483648
    %v2502 = vor.u32 1.1754944e-38, %v2501
    %v2503 = vsel %vm2500, %v2502, %v2498
    %v2504 = vmul.f32 %v2414, %v2503
    %v2506 = vsel %vm276, %v2444, 0
    %v2509 = vsel %vm276, %v2459, 0
    %v2512 = vsel %vm276, %v2474, 0
    %v2515 = vsel %vm276, %v2489, 0
    %v2518 = vsel %vm276, %v2504, 0
    %2520 = vmatpush.msra.mxu0 0.0
    %2521 = vmatpush.msra.mxu0 0.0
    %2522 = vmatpush.msra.mxu0 0.0
    %2523 = vmatpush.msra.mxu0 0.0
    %2524 = vmatpush.msra.mxu0 0.0
    %2525 = vmatpush.msra.mxu0 0.0
    %2526 = vmatpush.msra.mxu0 0.0
    %2527 = vmatpush.msra.mxu0 0.0
    %2528 = vmatpush.msra.mxu0 0.0
    %2529 = vmatpush.msra.mxu0 0.0
    %2530 = vmatpush.msra.mxu0 0.0
    %2531 = vmatpush.msra.mxu0 %v2002
    %2532 = vmatpush.msra.mxu0 %v1856
    %2533 = vmatpush.msra.mxu0 %v1853
    %2534 = vmatpush.msra.mxu0 %v1850
    %2535 = vmatpush.msra.mxu0 %v1847
    %2536 = vmatmul.f32.gmra.mxu0 %v2506
    %v2537 = vpop.f32.mrf.mxu0
    %v2538 = vadd.f32 0.0, %v2537
    %2539 = vmatmul.f32.gmra.mxu0 %v2509
    %v2540 = vpop.f32.mrf.mxu0
    %v2541 = vadd.f32 0.0, %v2540
    %2542 = vmatmul.f32.gmra.mxu0 %v2512
    %v2543 = vpop.f32.mrf.mxu0
    %v2544 = vadd.f32 0.0, %v2543
    %2545 = vmatmul.f32.gmra.mxu0 %v2515
    %v2546 = vpop.f32.mrf.mxu0
    %v2547 = vadd.f32 0.0, %v2546
    %2548 = vmatmul.f32.gmra.mxu0 %v2518
    %v2549 = vpop.f32.mrf.mxu0
    %v2550 = vadd.f32 0.0, %v2549
    %2551 = vdwg.mxu0
    %v2552 = vsel %vm276, %v2538, -inf
    %2553 = vmax.xlane.f32.xlu0 %v2552
    %v2554 = vpop.xlane.xlu0 %2553
    %v2555 = vsel %vm276, %v2541, -inf
    %2556 = vmax.xlane.f32.xlu0 %v2555
    %v2557 = vpop.xlane.xlu0 %2556
    %v2558 = vsel %vm276, %v2544, -inf
    %2559 = vmax.xlane.f32.xlu0 %v2558
    %v2560 = vpop.xlane.xlu0 %2559
    %v2561 = vsel %vm276, %v2547, -inf
    %2562 = vmax.xlane.f32.xlu0 %v2561
    %v2563 = vpop.xlane.xlu0 %2562
    %v2564 = vsel %vm289, %v2550, -inf
    %2565 = vmax.xlane.f32.xlu0 %v2564
    %v2566 = vpop.xlane.xlu0 %2565
    %v2567 = vsub.f32 %v2538, %v2554
    %v2568 = vsub.f32 %v2541, %v2557
    %v2569 = vsub.f32 %v2544, %v2560
    %v2570 = vsub.f32 %v2547, %v2563
    %v2571 = vsub.f32 %v2550, %v2566
    %v2572 = vmul.f32 %v2567, 1.442695
    %v2573 = vpow.pop %v2572
    %v2574 = vmul.f32 %v2568, 1.442695
    %v2575 = vpow.pop %v2574
    %v2576 = vmul.f32 %v2569, 1.442695
    %v2577 = vpow.pop %v2576
    %v2578 = vmul.f32 %v2570, 1.442695
    %v2579 = vpow.pop %v2578
    %v2580 = vmul.f32 %v2571, 1.442695
    %v2581 = vpow.pop %v2580
    %v2582 = vmul.f32 %v2573, %v107
    %v2583 = vmul.f32 %v2575, %v108
    %v2584 = vmul.f32 %v2577, %v109
    %v2585 = vmul.f32 %v2579, %v110
    %v2586 = vmul.f32 %v2581, %v111
    %v2587 = vsel %vm276, %v2582, 0.0
    %2588 = vadd.xlane.f32.xlu0 %v2587
    %v2589 = vpop.xlane.xlu0 %2588
    %v2590 = vsel %vm276, %v2583, 0.0
    %2591 = vadd.xlane.f32.xlu0 %v2590
    %v2592 = vpop.xlane.xlu0 %2591
    %v2593 = vsel %vm276, %v2584, 0.0
    %2594 = vadd.xlane.f32.xlu0 %v2593
    %v2595 = vpop.xlane.xlu0 %2594
    %v2596 = vsel %vm276, %v2585, 0.0
    %2597 = vadd.xlane.f32.xlu0 %v2596
    %v2598 = vpop.xlane.xlu0 %2597
    %v2599 = vsel %vm289, %v2586, 0.0
    %2600 = vadd.xlane.f32.xlu0 %v2599
    %v2601 = vpop.xlane.xlu0 %2600
    %v2602 = vrcp.pop %v2589
    %v2603 = vmul.f32 %v2589, %v2602
    %v2604 = vsub.f32 1.0, %v2603
    %v2605 = vmul.f32 %v2602, %v2604
    %v2606 = vadd.f32 %v2602, %v2605
    %vm2607 = vweird.f32 %v2589
    %vm2608 = vweird.f32 %v2602
    %vm2609 = vmor %vm2607, %vm2608
    %v2610 = vsel %vm2609, %v2602, %v2606
    %v2611 = vand.u32 2147483647, %v2589
    %vm2612 = vcmp.eq.f32.partialorder %v2611, 8.507059e+37
    %v2613 = vand.u32 %v2589, 2147483648
    %v2614 = vor.u32 1.1754944e-38, %v2613
    %v2615 = vsel %vm2612, %v2614, %v2610
    %v2616 = vmul.f32 %v2582, %v2615
    %v2617 = vrcp.pop %v2592
    %v2618 = vmul.f32 %v2592, %v2617
    %v2619 = vsub.f32 1.0, %v2618
    %v2620 = vmul.f32 %v2617, %v2619
    %v2621 = vadd.f32 %v2617, %v2620
    %vm2622 = vweird.f32 %v2592
    %vm2623 = vweird.f32 %v2617
    %vm2624 = vmor %vm2622, %vm2623
    %v2625 = vsel %vm2624, %v2617, %v2621
    %v2626 = vand.u32 2147483647, %v2592
    %vm2627 = vcmp.eq.f32.partialorder %v2626, 8.507059e+37
    %v2628 = vand.u32 %v2592, 2147483648
    %v2629 = vor.u32 1.1754944e-38, %v2628
    %v2630 = vsel %vm2627, %v2629, %v2625
    %v2631 = vmul.f32 %v2583, %v2630
    %v2632 = vrcp.pop %v2595
    %v2633 = vmul.f32 %v2595, %v2632
    %v2634 = vsub.f32 1.0, %v2633
    %v2635 = vmul.f32 %v2632, %v2634
    %v2636 = vadd.f32 %v2632, %v2635
    %vm2637 = vweird.f32 %v2595
    %vm2638 = vweird.f32 %v2632
    %vm2639 = vmor %vm2637, %vm2638
    %v2640 = vsel %vm2639, %v2632, %v2636
    %v2641 = vand.u32 2147483647, %v2595
    %vm2642 = vcmp.eq.f32.partialorder %v2641, 8.507059e+37
    %v2643 = vand.u32 %v2595, 2147483648
    %v2644 = vor.u32 1.1754944e-38, %v2643
    %v2645 = vsel %vm2642, %v2644, %v2640
    %v2646 = vmul.f32 %v2584, %v2645
    %v2647 = vrcp.pop %v2598
    %v2648 = vmul.f32 %v2598, %v2647
    %v2649 = vsub.f32 1.0, %v2648
    %v2650 = vmul.f32 %v2647, %v2649
    %v2651 = vadd.f32 %v2647, %v2650
    %vm2652 = vweird.f32 %v2598
    %vm2653 = vweird.f32 %v2647
    %vm2654 = vmor %vm2652, %vm2653
    %v2655 = vsel %vm2654, %v2647, %v2651
    %v2656 = vand.u32 2147483647, %v2598
    %vm2657 = vcmp.eq.f32.partialorder %v2656, 8.507059e+37
    %v2658 = vand.u32 %v2598, 2147483648
    %v2659 = vor.u32 1.1754944e-38, %v2658
    %v2660 = vsel %vm2657, %v2659, %v2655
    %v2661 = vmul.f32 %v2585, %v2660
    %v2662 = vrcp.pop %v2601
    %v2663 = vmul.f32 %v2601, %v2662
    %v2664 = vsub.f32 1.0, %v2663
    %v2665 = vmul.f32 %v2662, %v2664
    %v2666 = vadd.f32 %v2662, %v2665
    %vm2667 = vweird.f32 %v2601
    %vm2668 = vweird.f32 %v2662
    %vm2669 = vmor %vm2667, %vm2668
    %v2670 = vsel %vm2669, %v2662, %v2666
    %v2671 = vand.u32 2147483647, %v2601
    %vm2672 = vcmp.eq.f32.partialorder %v2671, 8.507059e+37
    %v2673 = vand.u32 %v2601, 2147483648
    %v2674 = vor.u32 1.1754944e-38, %v2673
    %v2675 = vsel %vm2672, %v2674, %v2670
    %v2676 = vmul.f32 %v2586, %v2675
    %v2678 = vsel %vm276, %v2616, 0
    %v2681 = vsel %vm276, %v2631, 0
    %v2684 = vsel %vm276, %v2646, 0
    %v2687 = vsel %vm276, %v2661, 0
    %v2690 = vsel %vm276, %v2676, 0
    %2692 = vmatpush.msra.mxu0 0.0
    %2693 = vmatpush.msra.mxu0 0.0
    %2694 = vmatpush.msra.mxu0 0.0
    %2695 = vmatpush.msra.mxu0 0.0
    %2696 = vmatpush.msra.mxu0 0.0
    %2697 = vmatpush.msra.mxu0 0.0
    %2698 = vmatpush.msra.mxu0 0.0
    %2699 = vmatpush.msra.mxu0 0.0
    %2700 = vmatpush.msra.mxu0 0.0
    %2701 = vmatpush.msra.mxu0 0.0
    %2702 = vmatpush.msra.mxu0 0.0
    %2703 = vmatpush.msra.mxu0 %v2002
    %2704 = vmatpush.msra.mxu0 %v1856
    %2705 = vmatpush.msra.mxu0 %v1853
    %2706 = vmatpush.msra.mxu0 %v1850
    %2707 = vmatpush.msra.mxu0 %v1847
    %2708 = vmatmul.f32.gmra.mxu0 %v2678
    %v2709 = vpop.f32.mrf.mxu0
    %v2710 = vadd.f32 0.0, %v2709
    %2711 = vmatmul.f32.gmra.mxu0 %v2681
    %v2712 = vpop.f32.mrf.mxu0
    %v2713 = vadd.f32 0.0, %v2712
    %2714 = vmatmul.f32.gmra.mxu0 %v2684
    %v2715 = vpop.f32.mrf.mxu0
    %v2716 = vadd.f32 0.0, %v2715
    %2717 = vmatmul.f32.gmra.mxu0 %v2687
    %v2718 = vpop.f32.mrf.mxu0
    %v2719 = vadd.f32 0.0, %v2718
    %2720 = vmatmul.f32.gmra.mxu0 %v2690
    %v2721 = vpop.f32.mrf.mxu0
    %v2722 = vadd.f32 0.0, %v2721
    %2723 = vdwg.mxu0
    %v2724 = vsel %vm276, %v2710, -inf
    %2725 = vmax.xlane.f32.xlu0 %v2724
    %v2726 = vpop.xlane.xlu0 %2725
    %v2727 = vsel %vm276, %v2713, -inf
    %2728 = vmax.xlane.f32.xlu0 %v2727
    %v2729 = vpop.xlane.xlu0 %2728
    %v2730 = vsel %vm276, %v2716, -inf
    %2731 = vmax.xlane.f32.xlu0 %v2730
    %v2732 = vpop.xlane.xlu0 %2731
    %v2733 = vsel %vm276, %v2719, -inf
    %2734 = vmax.xlane.f32.xlu0 %v2733
    %v2735 = vpop.xlane.xlu0 %2734
    %v2736 = vsel %vm289, %v2722, -inf
    %2737 = vmax.xlane.f32.xlu0 %v2736
    %v2738 = vpop.xlane.xlu0 %2737
    %v2739 = vsub.f32 %v2710, %v2726
    %v2740 = vsub.f32 %v2713, %v2729
    %v2741 = vsub.f32 %v2716, %v2732
    %v2742 = vsub.f32 %v2719, %v2735
    %v2743 = vsub.f32 %v2722, %v2738
    %v2744 = vmul.f32 %v2739, 1.442695
    %v2745 = vpow.pop %v2744
    %v2746 = vmul.f32 %v2740, 1.442695
    %v2747 = vpow.pop %v2746
    %v2748 = vmul.f32 %v2741, 1.442695
    %v2749 = vpow.pop %v2748
    %v2750 = vmul.f32 %v2742, 1.442695
    %v2751 = vpow.pop %v2750
    %v2752 = vmul.f32 %v2743, 1.442695
    %v2753 = vpow.pop %v2752
    %v2754 = vmul.f32 %v2745, %v107
    %v2755 = vmul.f32 %v2747, %v108
    %v2756 = vmul.f32 %v2749, %v109
    %v2757 = vmul.f32 %v2751, %v110
    %v2758 = vmul.f32 %v2753, %v111
    %v2759 = vsel %vm276, %v2754, 0.0
    %2760 = vadd.xlane.f32.xlu0 %v2759
    %v2761 = vpop.xlane.xlu0 %2760
    %v2762 = vsel %vm276, %v2755, 0.0
    %2763 = vadd.xlane.f32.xlu0 %v2762
    %v2764 = vpop.xlane.xlu0 %2763
    %v2765 = vsel %vm276, %v2756, 0.0
    %2766 = vadd.xlane.f32.xlu0 %v2765
    %v2767 = vpop.xlane.xlu0 %2766
    %v2768 = vsel %vm276, %v2757, 0.0
    %2769 = vadd.xlane.f32.xlu0 %v2768
    %v2770 = vpop.xlane.xlu0 %2769
    %v2771 = vsel %vm289, %v2758, 0.0
    %2772 = vadd.xlane.f32.xlu0 %v2771
    %v2773 = vpop.xlane.xlu0 %2772
    %v2774 = vrcp.pop %v2761
    %v2775 = vmul.f32 %v2761, %v2774
    %v2776 = vsub.f32 1.0, %v2775
    %v2777 = vmul.f32 %v2774, %v2776
    %v2778 = vadd.f32 %v2774, %v2777
    %vm2779 = vweird.f32 %v2761
    %vm2780 = vweird.f32 %v2774
    %vm2781 = vmor %vm2779, %vm2780
    %v2782 = vsel %vm2781, %v2774, %v2778
    %v2783 = vand.u32 2147483647, %v2761
    %vm2784 = vcmp.eq.f32.partialorder %v2783, 8.507059e+37
    %v2785 = vand.u32 %v2761, 2147483648
    %v2786 = vor.u32 1.1754944e-38, %v2785
    %v2787 = vsel %vm2784, %v2786, %v2782
    %v2788 = vmul.f32 %v2754, %v2787
    %v2789 = vrcp.pop %v2764
    %v2790 = vmul.f32 %v2764, %v2789
    %v2791 = vsub.f32 1.0, %v2790
    %v2792 = vmul.f32 %v2789, %v2791
    %v2793 = vadd.f32 %v2789, %v2792
    %vm2794 = vweird.f32 %v2764
    %vm2795 = vweird.f32 %v2789
    %vm2796 = vmor %vm2794, %vm2795
    %v2797 = vsel %vm2796, %v2789, %v2793
    %v2798 = vand.u32 2147483647, %v2764
    %vm2799 = vcmp.eq.f32.partialorder %v2798, 8.507059e+37
    %v2800 = vand.u32 %v2764, 2147483648
    %v2801 = vor.u32 1.1754944e-38, %v2800
    %v2802 = vsel %vm2799, %v2801, %v2797
    %v2803 = vmul.f32 %v2755, %v2802
    %v2804 = vrcp.pop %v2767
    %v2805 = vmul.f32 %v2767, %v2804
    %v2806 = vsub.f32 1.0, %v2805
    %v2807 = vmul.f32 %v2804, %v2806
    %v2808 = vadd.f32 %v2804, %v2807
    %vm2809 = vweird.f32 %v2767
    %vm2810 = vweird.f32 %v2804
    %vm2811 = vmor %vm2809, %vm2810
    %v2812 = vsel %vm2811, %v2804, %v2808
    %v2813 = vand.u32 2147483647, %v2767
    %vm2814 = vcmp.eq.f32.partialorder %v2813, 8.507059e+37
    %v2815 = vand.u32 %v2767, 2147483648
    %v2816 = vor.u32 1.1754944e-38, %v2815
    %v2817 = vsel %vm2814, %v2816, %v2812
    %v2818 = vmul.f32 %v2756, %v2817
    %v2819 = vrcp.pop %v2770
    %v2820 = vmul.f32 %v2770, %v2819
    %v2821 = vsub.f32 1.0, %v2820
    %v2822 = vmul.f32 %v2819, %v2821
    %v2823 = vadd.f32 %v2819, %v2822
    %vm2824 = vweird.f32 %v2770
    %vm2825 = vweird.f32 %v2819
    %vm2826 = vmor %vm2824, %vm2825
    %v2827 = vsel %vm2826, %v2819, %v2823
    %v2828 = vand.u32 2147483647, %v2770
    %vm2829 = vcmp.eq.f32.partialorder %v2828, 8.507059e+37
    %v2830 = vand.u32 %v2770, 2147483648
    %v2831 = vor.u32 1.1754944e-38, %v2830
    %v2832 = vsel %vm2829, %v2831, %v2827
    %v2833 = vmul.f32 %v2757, %v2832
    %v2834 = vrcp.pop %v2773
    %v2835 = vmul.f32 %v2773, %v2834
    %v2836 = vsub.f32 1.0, %v2835
    %v2837 = vmul.f32 %v2834, %v2836
    %v2838 = vadd.f32 %v2834, %v2837
    %vm2839 = vweird.f32 %v2773
    %vm2840 = vweird.f32 %v2834
    %vm2841 = vmor %vm2839, %vm2840
    %v2842 = vsel %vm2841, %v2834, %v2838
    %v2843 = vand.u32 2147483647, %v2773
    %vm2844 = vcmp.eq.f32.partialorder %v2843, 8.507059e+37
    %v2845 = vand.u32 %v2773, 2147483648
    %v2846 = vor.u32 1.1754944e-38, %v2845
    %v2847 = vsel %vm2844, %v2846, %v2842
    %v2848 = vmul.f32 %v2758, %v2847
    %v2849 = vperm.slane %v1714, 0
    %2850 = vrot.lane.b32.xlu0 %v1748, 64
    %v2851 = vpop.permute.xlu0 %2850
    %2852 = vrot.lane.b32.xlu0 %v1751, 64
    %v2853 = vpop.permute.xlu0 %2852
    %2854 = vrot.lane.b32.xlu0 %v1754, 64
    %v2855 = vpop.permute.xlu0 %2854
    %2856 = vrot.lane.b32.xlu0 %v1757, 64
    %v2857 = vpop.permute.xlu0 %2856
    %2858 = vrot.lane.b32.xlu0 %v1760, 64
    %v2859 = vpop.permute.xlu0 %2858
    %v2865 = vsel %vm276, %v2788, 0
    %v2868 = vsel %vm276, %v2803, 0
    %v2871 = vsel %vm276, %v2818, 0
    %v2874 = vsel %vm276, %v2833, 0
    %v2877 = vsel %vm276, %v2848, 0
    %v2879 = vsel %vm418, %v2859, 0
    %2881 = vmatpush.msra.mxu0 0.0
    %2882 = vmatpush.msra.mxu0 0.0
    %2883 = vmatpush.msra.mxu0 0.0
    %2884 = vmatpush.msra.mxu0 0.0
    %2885 = vmatpush.msra.mxu0 0.0
    %2886 = vmatpush.msra.mxu0 0.0
    %2887 = vmatpush.msra.mxu0 0.0
    %2888 = vmatpush.msra.mxu0 0.0
    %2889 = vmatpush.msra.mxu0 0.0
    %2890 = vmatpush.msra.mxu0 0.0
    %2891 = vmatpush.msra.mxu0 0.0
    %2892 = vmatpush.msra.mxu0 %v2879
    %2893 = vmatpush.msra.mxu0 %v2857
    %2894 = vmatpush.msra.mxu0 %v2855
    %2895 = vmatpush.msra.mxu0 %v2853
    %2896 = vmatpush.msra.mxu0 %v2851
    %2897 = vmatmul.f32.gmra.mxu0 %v2865
    %v2898 = vpop.f32.mrf.mxu0
    %v2899 = vadd.f32 %v2849, %v2898
    %2900 = vmatmul.f32.gmra.mxu0 %v2868
    %v2901 = vpop.f32.mrf.mxu0
    %v2902 = vadd.f32 %v2849, %v2901
    %2903 = vmatmul.f32.gmra.mxu0 %v2871
    %v2904 = vpop.f32.mrf.mxu0
    %v2905 = vadd.f32 %v2849, %v2904
    %2906 = vmatmul.f32.gmra.mxu0 %v2874
    %v2907 = vpop.f32.mrf.mxu0
    %v2908 = vadd.f32 %v2849, %v2907
    %2909 = vmatmul.f32.gmra.mxu0 %v2877
    %v2910 = vpop.f32.mrf.mxu0
    %v2911 = vadd.f32 %v2849, %v2910
    %2912 = vdwg.mxu0
    %v2913 = vadd.f32 %v1689, %v2899
    %v2914 = vadd.f32 %v1690, %v2902
    %v2915 = vadd.f32 %v1691, %v2905
    %v2916 = vadd.f32 %v1692, %v2908
    %v2917 = vadd.f32 %v1693, %v2911
    %v2918 = vsel %vm129, %v2913, 0.0
    %2919 = vadd.xlane.f32.xlu0 %v2918
    %v2920 = vpop.xlane.xlu0 %2919
    %v2921 = vsel %vm129, %v2914, 0.0
    %2922 = vadd.xlane.f32.xlu0 %v2921
    %v2923 = vpop.xlane.xlu0 %2922
    %v2924 = vsel %vm129, %v2915, 0.0
    %2925 = vadd.xlane.f32.xlu0 %v2924
    %v2926 = vpop.xlane.xlu0 %2925
    %v2927 = vsel %vm129, %v2916, 0.0
    %2928 = vadd.xlane.f32.xlu0 %v2927
    %v2929 = vpop.xlane.xlu0 %2928
    %v2930 = vsel %vm1348, %v2917, 0.0
    %2931 = vadd.xlane.f32.xlu0 %v2930
    %v2932 = vpop.xlane.xlu0 %2931
    %v2933 = vmul.f32 %v2920, %v1358
    %v2934 = vmul.f32 %v2923, %v1358
    %v2935 = vmul.f32 %v2926, %v1358
    %v2936 = vmul.f32 %v2929, %v1358
    %v2937 = vmul.f32 %v2932, %v1358
    %v2938 = vsub.f32 %v2913, %v2933
    %v2939 = vsub.f32 %v2914, %v2934
    %v2940 = vsub.f32 %v2915, %v2935
    %v2941 = vsub.f32 %v2916, %v2936
    %v2942 = vsub.f32 %v2917, %v2937
    %v2943 = vmul.f32 %v2938, %v2938
    %v2944 = vmul.f32 %v2939, %v2939
    %v2945 = vmul.f32 %v2940, %v2940
    %v2946 = vmul.f32 %v2941, %v2941
    %v2947 = vmul.f32 %v2942, %v2942
    %v2948 = vsel %vm129, %v2943, 0.0
    %2949 = vadd.xlane.f32.xlu0 %v2948
    %v2950 = vpop.xlane.xlu0 %2949
    %v2951 = vsel %vm129, %v2944, 0.0
    %2952 = vadd.xlane.f32.xlu0 %v2951
    %v2953 = vpop.xlane.xlu0 %2952
    %v2954 = vsel %vm129, %v2945, 0.0
    %2955 = vadd.xlane.f32.xlu0 %v2954
    %v2956 = vpop.xlane.xlu0 %2955
    %v2957 = vsel %vm129, %v2946, 0.0
    %2958 = vadd.xlane.f32.xlu0 %v2957
    %v2959 = vpop.xlane.xlu0 %2958
    %v2960 = vsel %vm1348, %v2947, 0.0
    %2961 = vadd.xlane.f32.xlu0 %v2960
    %v2962 = vpop.xlane.xlu0 %2961
    %v2963 = vmul.f32 %v2950, %v1358
    %v2964 = vmul.f32 %v2953, %v1358
    %v2965 = vmul.f32 %v2956, %v1358
    %v2966 = vmul.f32 %v2959, %v1358
    %v2967 = vmul.f32 %v2962, %v1358
    %v2968 = vadd.f32 %v2963, 1e-05
    %v2969 = vadd.f32 %v2964, 1e-05
    %v2970 = vadd.f32 %v2965, 1e-05
    %v2971 = vadd.f32 %v2966, 1e-05
    %v2972 = vadd.f32 %v2967, 1e-05
    %v2973 = vrsqrt.pop %v2968
    %v2974 = vmul.f32 %v2973, %v2968
    %v2975 = vmul.f32 %v2974, %v2973
    %v2976 = vmul.f32 0.5, %v2975
    %v2977 = vsub.f32 1.5, %v2976
    %v2978 = vmul.f32 %v2973, %v2977
    %vm2979 = vweird.f32 %v2968
    %vm2980 = vweird.f32 %v2973
    %vm2981 = vmor %vm2979, %vm2980
    %v2982 = vsel %vm2981, %v2973, %v2978
    %v2983 = vrsqrt.pop %v2969
    %v2984 = vmul.f32 %v2983, %v2969
    %v2985 = vmul.f32 %v2984, %v2983
    %v2986 = vmul.f32 0.5, %v2985
    %v2987 = vsub.f32 1.5, %v2986
    %v2988 = vmul.f32 %v2983, %v2987
    %vm2989 = vweird.f32 %v2969
    %vm2990 = vweird.f32 %v2983
    %vm2991 = vmor %vm2989, %vm2990
    %v2992 = vsel %vm2991, %v2983, %v2988
    %v2993 = vrsqrt.pop %v2970
    %v2994 = vmul.f32 %v2993, %v2970
    %v2995 = vmul.f32 %v2994, %v2993
    %v2996 = vmul.f32 0.5, %v2995
    %v2997 = vsub.f32 1.5, %v2996
    %v2998 = vmul.f32 %v2993, %v2997
    %vm2999 = vweird.f32 %v2970
    %vm3000 = vweird.f32 %v2993
    %vm3001 = vmor %vm2999, %vm3000
    %v3002 = vsel %vm3001, %v2993, %v2998
    %v3003 = vrsqrt.pop %v2971
    %v3004 = vmul.f32 %v3003, %v2971
    %v3005 = vmul.f32 %v3004, %v3003
    %v3006 = vmul.f32 0.5, %v3005
    %v3007 = vsub.f32 1.5, %v3006
    %v3008 = vmul.f32 %v3003, %v3007
    %vm3009 = vweird.f32 %v2971
    %vm3010 = vweird.f32 %v3003
    %vm3011 = vmor %vm3009, %vm3010
    %v3012 = vsel %vm3011, %v3003, %v3008
    %v3013 = vrsqrt.pop %v2972
    %v3014 = vmul.f32 %v3013, %v2972
    %v3015 = vmul.f32 %v3014, %v3013
    %v3016 = vmul.f32 0.5, %v3015
    %v3017 = vsub.f32 1.5, %v3016
    %v3018 = vmul.f32 %v3013, %v3017
    %vm3019 = vweird.f32 %v2972
    %vm3020 = vweird.f32 %v3013
    %vm3021 = vmor %vm3019, %vm3020
    %v3022 = vsel %vm3021, %v3013, %v3018
    %v3023 = vmul.f32 %v2938, %v2982
    %v3024 = vmul.f32 %v2939, %v2992
    %v3025 = vmul.f32 %v2940, %v3002
    %v3026 = vmul.f32 %v2941, %v3012
    %v3027 = vmul.f32 %v2942, %v3022
    %v3028 = vperm.slane %v1714, 1
    %v3029 = vmul.f32 %v3023, %v3028
    %v3030 = vmul.f32 %v3024, %v3028
    %v3031 = vmul.f32 %v3025, %v3028
    %v3032 = vmul.f32 %v3026, %v3028
    %v3033 = vmul.f32 %v3027, %v3028
    %v3034 = vperm.slane %v1714, 2
    %v3035 = vadd.f32 %v3029, %v3034
    %v3036 = vadd.f32 %v3030, %v3034
    %v3037 = vadd.f32 %v3031, %v3034
    %v3038 = vadd.f32 %v3032, %v3034
    %v3039 = vadd.f32 %v3033, %v3034
    %v3040 = vperm.slane %v1714, 3
    %v3042 = vsel %vm129, %v3035, 0
    %v3045 = vsel %vm129, %v3036, 0
    %v3048 = vsel %vm129, %v3037, 0
    %v3051 = vsel %vm129, %v3038, 0
    %v3054 = vsel %vm129, %v3039, 0
    %3056 = vmatpush.msra.mxu0 0.0
    %3057 = vmatpush.msra.mxu0 0.0
    %3058 = vmatpush.msra.mxu0 0.0
    %3059 = vmatpush.msra.mxu0 0.0
    %3060 = vmatpush.msra.mxu0 0.0
    %3061 = vmatpush.msra.mxu0 0.0
    %3062 = vmatpush.msra.mxu0 0.0
    %3063 = vmatpush.msra.mxu0 0.0
    %3064 = vmatpush.msra.mxu0 0.0
    %3065 = vmatpush.msra.mxu0 0.0
    %3066 = vmatpush.msra.mxu0 0.0
    %3067 = vmatpush.msra.mxu0 0.0
    %3068 = vmatpush.msra.mxu0 %v1703
    %3069 = vmatpush.msra.mxu0 %v1702
    %3070 = vmatpush.msra.mxu0 %v1701
    %3071 = vmatpush.msra.mxu0 %v1700
    %3072 = vmatmul.f32.gmra.mxu0 %v3042
    %v3073 = vpop.f32.mrf.mxu0
    %v3074 = vadd.f32 %v3040, %v3073
    %3075 = vmatmul.f32.gmra.mxu0 %v3045
    %v3076 = vpop.f32.mrf.mxu0
    %v3077 = vadd.f32 %v3040, %v3076
    %3078 = vmatmul.f32.gmra.mxu0 %v3048
    %v3079 = vpop.f32.mrf.mxu0
    %v3080 = vadd.f32 %v3040, %v3079
    %3081 = vmatmul.f32.gmra.mxu0 %v3051
    %v3082 = vpop.f32.mrf.mxu0
    %v3083 = vadd.f32 %v3040, %v3082
    %3084 = vmatmul.f32.gmra.mxu0 %v3054
    %v3085 = vpop.f32.mrf.mxu0
    %v3086 = vadd.f32 %v3040, %v3085
    %3087 = vdwg.mxu0
    %v3088 = vmax.f32 %v3074, 0.0
    %v3089 = vmax.f32 %v3077, 0.0
    %v3090 = vmax.f32 %v3080, 0.0
    %v3091 = vmax.f32 %v3083, 0.0
    %v3092 = vmax.f32 %v3086, 0.0
    %v3093 = vperm.slane %v1714, 4
    %v3095 = vsel %vm59, %v3088, 0
    %v3098 = vsel %vm59, %v3089, 0
    %v3101 = vsel %vm59, %v3090, 0
    %v3104 = vsel %vm59, %v3091, 0
    %v3107 = vsel %vm59, %v3092, 0
    %3109 = vmatpush.msra.mxu0 0.0
    %3110 = vmatpush.msra.mxu0 0.0
    %3111 = vmatpush.msra.mxu0 0.0
    %3112 = vmatpush.msra.mxu0 0.0
    %3113 = vmatpush.msra.mxu0 0.0
    %3114 = vmatpush.msra.mxu0 0.0
    %3115 = vmatpush.msra.mxu0 0.0
    %3116 = vmatpush.msra.mxu0 0.0
    %3117 = vmatpush.msra.mxu0 %v1712
    %3118 = vmatpush.msra.mxu0 %v1711
    %3119 = vmatpush.msra.mxu0 %v1710
    %3120 = vmatpush.msra.mxu0 %v1709
    %3121 = vmatpush.msra.mxu0 %v1708
    %3122 = vmatpush.msra.mxu0 %v1707
    %3123 = vmatpush.msra.mxu0 %v1706
    %3124 = vmatpush.msra.mxu0 %v1705
    %3125 = vmatmul.f32.gmra.mxu0 %v3095
    %v3126 = vpop.f32.mrf.mxu0
    %v3127 = vadd.f32 %v3093, %v3126
    %3128 = vmatmul.f32.gmra.mxu0 %v3098
    %v3129 = vpop.f32.mrf.mxu0
    %v3130 = vadd.f32 %v3093, %v3129
    %3131 = vmatmul.f32.gmra.mxu0 %v3101
    %v3132 = vpop.f32.mrf.mxu0
    %v3133 = vadd.f32 %v3093, %v3132
    %3134 = vmatmul.f32.gmra.mxu0 %v3104
    %v3135 = vpop.f32.mrf.mxu0
    %v3136 = vadd.f32 %v3093, %v3135
    %3137 = vmatmul.f32.gmra.mxu0 %v3107
    %v3138 = vpop.f32.mrf.mxu0
    %v3139 = vadd.f32 %v3093, %v3138
    %3140 = vdwg.mxu0
    %v3141 = vadd.f32 %v3035, %v3127
    %v3142 = vadd.f32 %v3036, %v3130
    %v3143 = vadd.f32 %v3037, %v3133
    %v3144 = vadd.f32 %v3038, %v3136
    %v3145 = vadd.f32 %v3039, %v3139
    %v3146 = vsel %vm129, %v3141, 0.0
    %3147 = vadd.xlane.f32.xlu0 %v3146
    %v3148 = vpop.xlane.xlu0 %3147
    %v3149 = vsel %vm129, %v3142, 0.0
    %3150 = vadd.xlane.f32.xlu0 %v3149
    %v3151 = vpop.xlane.xlu0 %3150
    %v3152 = vsel %vm129, %v3143, 0.0
    %3153 = vadd.xlane.f32.xlu0 %v3152
    %v3154 = vpop.xlane.xlu0 %3153
    %v3155 = vsel %vm129, %v3144, 0.0
    %3156 = vadd.xlane.f32.xlu0 %v3155
    %v3157 = vpop.xlane.xlu0 %3156
    %v3158 = vsel %vm1348, %v3145, 0.0
    %3159 = vadd.xlane.f32.xlu0 %v3158
    %v3160 = vpop.xlane.xlu0 %3159
    %v3161 = vmul.f32 %v3148, %v1358
    %v3162 = vmul.f32 %v3151, %v1358
    %v3163 = vmul.f32 %v3154, %v1358
    %v3164 = vmul.f32 %v3157, %v1358
    %v3165 = vmul.f32 %v3160, %v1358
    %v3166 = vsub.f32 %v3141, %v3161
    %v3167 = vsub.f32 %v3142, %v3162
    %v3168 = vsub.f32 %v3143, %v3163
    %v3169 = vsub.f32 %v3144, %v3164
    %v3170 = vsub.f32 %v3145, %v3165
    %v3171 = vmul.f32 %v3166, %v3166
    %v3172 = vmul.f32 %v3167, %v3167
    %v3173 = vmul.f32 %v3168, %v3168
    %v3174 = vmul.f32 %v3169, %v3169
    %v3175 = vmul.f32 %v3170, %v3170
    %v3176 = vsel %vm129, %v3171, 0.0
    %3177 = vadd.xlane.f32.xlu0 %v3176
    %v3178 = vpop.xlane.xlu0 %3177
    %v3179 = vsel %vm129, %v3172, 0.0
    %3180 = vadd.xlane.f32.xlu0 %v3179
    %v3181 = vpop.xlane.xlu0 %3180
    %v3182 = vsel %vm129, %v3173, 0.0
    %3183 = vadd.xlane.f32.xlu0 %v3182
    %v3184 = vpop.xlane.xlu0 %3183
    %v3185 = vsel %vm129, %v3174, 0.0
    %3186 = vadd.xlane.f32.xlu0 %v3185
    %v3187 = vpop.xlane.xlu0 %3186
    %v3188 = vsel %vm1348, %v3175, 0.0
    %3189 = vadd.xlane.f32.xlu0 %v3188
    %v3190 = vpop.xlane.xlu0 %3189
    %v3191 = vmul.f32 %v3178, %v1358
    %v3192 = vmul.f32 %v3181, %v1358
    %v3193 = vmul.f32 %v3184, %v1358
    %v3194 = vmul.f32 %v3187, %v1358
    %v3195 = vmul.f32 %v3190, %v1358
    %v3196 = vadd.f32 %v3191, 1e-05
    %v3197 = vadd.f32 %v3192, 1e-05
    %v3198 = vadd.f32 %v3193, 1e-05
    %v3199 = vadd.f32 %v3194, 1e-05
    %v3200 = vadd.f32 %v3195, 1e-05
    %v3201 = vrsqrt.pop %v3196
    %v3202 = vmul.f32 %v3201, %v3196
    %v3203 = vmul.f32 %v3202, %v3201
    %v3204 = vmul.f32 0.5, %v3203
    %v3205 = vsub.f32 1.5, %v3204
    %v3206 = vmul.f32 %v3201, %v3205
    %vm3207 = vweird.f32 %v3196
    %vm3208 = vweird.f32 %v3201
    %vm3209 = vmor %vm3207, %vm3208
    %v3210 = vsel %vm3209, %v3201, %v3206
    %v3211 = vrsqrt.pop %v3197
    %v3212 = vmul.f32 %v3211, %v3197
    %v3213 = vmul.f32 %v3212, %v3211
    %v3214 = vmul.f32 0.5, %v3213
    %v3215 = vsub.f32 1.5, %v3214
    %v3216 = vmul.f32 %v3211, %v3215
    %vm3217 = vweird.f32 %v3197
    %vm3218 = vweird.f32 %v3211
    %vm3219 = vmor %vm3217, %vm3218
    %v3220 = vsel %vm3219, %v3211, %v3216
    %v3221 = vrsqrt.pop %v3198
    %v3222 = vmul.f32 %v3221, %v3198
    %v3223 = vmul.f32 %v3222, %v3221
    %v3224 = vmul.f32 0.5, %v3223
    %v3225 = vsub.f32 1.5, %v3224
    %v3226 = vmul.f32 %v3221, %v3225
    %vm3227 = vweird.f32 %v3198
    %vm3228 = vweird.f32 %v3221
    %vm3229 = vmor %vm3227, %vm3228
    %v3230 = vsel %vm3229, %v3221, %v3226
    %v3231 = vrsqrt.pop %v3199
    %v3232 = vmul.f32 %v3231, %v3199
    %v3233 = vmul.f32 %v3232, %v3231
    %v3234 = vmul.f32 0.5, %v3233
    %v3235 = vsub.f32 1.5, %v3234
    %v3236 = vmul.f32 %v3231, %v3235
    %vm3237 = vweird.f32 %v3199
    %vm3238 = vweird.f32 %v3231
    %vm3239 = vmor %vm3237, %vm3238
    %v3240 = vsel %vm3239, %v3231, %v3236
    %v3241 = vrsqrt.pop %v3200
    %v3242 = vmul.f32 %v3241, %v3200
    %v3243 = vmul.f32 %v3242, %v3241
    %v3244 = vmul.f32 0.5, %v3243
    %v3245 = vsub.f32 1.5, %v3244
    %v3246 = vmul.f32 %v3241, %v3245
    %vm3247 = vweird.f32 %v3200
    %vm3248 = vweird.f32 %v3241
    %vm3249 = vmor %vm3247, %vm3248
    %v3250 = vsel %vm3249, %v3241, %v3246
    %v3251 = vmul.f32 %v3166, %v3210
    %v3252 = vmul.f32 %v3167, %v3220
    %v3253 = vmul.f32 %v3168, %v3230
    %v3254 = vmul.f32 %v3169, %v3240
    %v3255 = vmul.f32 %v3170, %v3250
    %v3256 = vperm.slane %v1714, 5
    %v3257 = vmul.f32 %v3251, %v3256
    %v3258 = vmul.f32 %v3252, %v3256
    %v3259 = vmul.f32 %v3253, %v3256
    %v3260 = vmul.f32 %v3254, %v3256
    %v3261 = vmul.f32 %v3255, %v3256
    %v3262 = vperm.slane %v1714, 6
    %v3263 = vadd.f32 %v3257, %v3262
    %v3264 = vadd.f32 %v3258, %v3262
    %v3265 = vadd.f32 %v3259, %v3262
    %v3266 = vadd.f32 %v3260, %v3262
    %v3267 = vadd.f32 %v3261, %v3262
    %v3268 = vsel %vm129, %v3263, 0.0
    %v3269 = vsel %vm129, %v3264, 0.0
    %v3270 = vsel %vm129, %v3265, 0.0
    %v3271 = vsel %vm129, %v3266, 0.0
    %v3272 = vsel %vm129, %v3267, 0.0
    %3273 = vst [vmem:[%s11] sm:$0xff] %v3268
    %3274 = vst [vmem:[%s11 + $0x8] sm:$0xff] %v3269
    %3275 = vst [vmem:[%s11 + $0x10] sm:$0xff] %v3270
    %3276 = vst [vmem:[%s11 + $0x18] sm:$0xff] %v3271
    %3277 = vst [vmem:[%s11 + $0x20] sm:$0x3] %v3272
    %v3278 = vld [vmem:[%s4] sm:$0x3]
    %v3280 = vsel %vm276, %v3278, 0
    %v3283 = vsel %vm418, %v3267, 0
    %3285 = vmatpush.msra.mxu0 0.0
    %3286 = vmatpush.msra.mxu0 0.0
    %3287 = vmatpush.msra.mxu0 0.0
    %3288 = vmatpush.msra.mxu0 0.0
    %3289 = vmatpush.msra.mxu0 0.0
    %3290 = vmatpush.msra.mxu0 0.0
    %3291 = vmatpush.msra.mxu0 0.0
    %3292 = vmatpush.msra.mxu0 0.0
    %3293 = vmatpush.msra.mxu0 0.0
    %3294 = vmatpush.msra.mxu0 0.0
    %3295 = vmatpush.msra.mxu0 0.0
    %3296 = vmatpush.msra.mxu0 %v3283
    %3297 = vmatpush.msra.mxu0 %v3266
    %3298 = vmatpush.msra.mxu0 %v3265
    %3299 = vmatpush.msra.mxu0 %v3264
    %3300 = vmatpush.msra.mxu0 %v3263
    %3301 = vmatmul.f32.gmra.mxu0 %v3280
    %v3302 = vpop.f32.mrf.mxu0
    %v3303 = vadd.f32 0.0, %v3302
    %3304 = vdwg.mxu0
    %v3305 = vld [vmem:[%s9] sm:$0xff]
    %v3306 = vld [vmem:[%s9 + $0x8] sm:$0xff]
    %v3307 = vld [vmem:[%s9 + $0x10] sm:$0xff]
    %v3308 = vld [vmem:[%s9 + $0x18] sm:$0xff]
    %v3309 = vld [vmem:[%s10] sm:$0x1]
    %v3311 = vperm.slane %v3309, 0
    %v3314 = vsel %vm129, %v3303, 0
    %3316 = vmatpush.msra.mxu0 0.0
    %3317 = vmatpush.msra.mxu0 0.0
    %3318 = vmatpush.msra.mxu0 0.0
    %3319 = vmatpush.msra.mxu0 0.0
    %3320 = vmatpush.msra.mxu0 0.0
    %3321 = vmatpush.msra.mxu0 0.0
    %3322 = vmatpush.msra.mxu0 0.0
    %3323 = vmatpush.msra.mxu0 0.0
    %3324 = vmatpush.msra.mxu0 0.0
    %3325 = vmatpush.msra.mxu0 0.0
    %3326 = vmatpush.msra.mxu0 0.0
    %3327 = vmatpush.msra.mxu0 0.0
    %3328 = vmatpush.msra.mxu0 %v3308
    %3329 = vmatpush.msra.mxu0 %v3307
    %3330 = vmatpush.msra.mxu0 %v3306
    %3331 = vmatpush.msra.mxu0 %v3305
    %3332 = vmatmul.f32.gmra.mxu0 %v3314
    %v3333 = vpop.f32.mrf.mxu0
    %v3334 = vadd.f32 %v3311, %v3333
    %3335 = vdwg.mxu0
    %v3336 = vsel %vm418, %v3334, -inf
    %3337 = vmax.xlane.f32.xlu0 %v3336
    %v3338 = vpop.xlane.xlu0 %3337
    %v3339 = vsub.f32 %v3334, %v3338
    %v3340 = vmul.f32 %v3339, 1.442695
    %v3341 = vpow.pop %v3340
    %v3342 = vsel %vm418, %v3341, 0.0
    %3343 = vadd.xlane.f32.xlu0 %v3342
    %v3344 = vpop.xlane.xlu0 %3343
    %v3345 = vrcp.pop %v3344
    %v3346 = vmul.f32 %v3344, %v3345
    %v3347 = vsub.f32 1.0, %v3346
    %v3348 = vmul.f32 %v3345, %v3347
    %v3349 = vadd.f32 %v3345, %v3348
    %vm3350 = vweird.f32 %v3344
    %vm3351 = vweird.f32 %v3345
    %vm3352 = vmor %vm3350, %vm3351
    %v3353 = vsel %vm3352, %v3345, %v3349
    %v3354 = vand.u32 2147483647, %v3344
    %vm3355 = vcmp.eq.f32.partialorder %v3354, 8.507059e+37
    %v3356 = vand.u32 %v3344, 2147483648
    %v3357 = vor.u32 1.1754944e-38, %v3356
    %v3358 = vsel %vm3355, %v3357, %v3353
    %v3359 = vmul.f32 %v3341, %v3358
    %3360 = vst [vmem:[#allocation2] sm:$0x3] %v3359
    // Predicated region
    $region46: #{vit_forward.1} parent=1 // pred_check
      _
    $region47: #{vit_forward.1} parent=1 // pred_check_branch
      %3362 = sbr.rel (0) target = $region49
    $region48: #{vit_forward.1} parent=1 // pred_region
      _
    $region49: #{vit_forward.1} parent=1 // pred_fallthru
      _
    // Predicated region
    $region50: #{vit_forward.1} parent=1 // pred_check
      _
    $region51: #{vit_forward.1} parent=1 // pred_check_branch
      %3364 = sbr.rel (0) target = $region53
    $region52: #{vit_forward.1} parent=1 // pred_region
      %3366 = vsyncadd [#allocation3], 0
      %s3368 = sshll.u32 [#allocation2], 4
      %s3369 = int_to_ptr.vmem [resolvable:$true] %s3368
      %s3370 = sshll.u32 %s12, 4
      %s3371 = int_to_ptr.hbm [resolvable:$true] %s3370
      %3373 = dma.vmem_to_hbm [thread:$0]  %s3369, 32, %s3371, [#allocation3]
    $region53: #{vit_forward.1} parent=1 // pred_fallthru
      _
    // Predicated region
    $region54: #{vit_forward.1} parent=1 // pred_check
      _
    $region55: #{vit_forward.1} parent=1 // pred_check_branch
      %3375 = sbr.rel (0) target = $region57
    $region56: #{vit_forward.1} parent=1 // pred_region
      _
    $region57: #{vit_forward.1} parent=1 // pred_fallthru
      _
    // Predicated region
    $region58: #{vit_forward.1} parent=1 // pred_check
      _
    $region59: #{vit_forward.1} parent=1 // pred_check_branch
      %3377 = sbr.rel (0) target = $region61
    $region60: #{vit_forward.1} parent=1 // pred_region
      %3379 = dma.done [#allocation3], 32
    $region61: #{vit_forward.1} parent=1 // pred_fallthru
      _
    %3380 = vsyncpa [#allocation3], 1

</llo_original>
